<compile_context>
chip_gen: v6e
topology: v6e:2x2x1
jax: 0.10.0
libtpu: 0.0.40
codegen_flags: <defaults>
</compile_context>

<pallas_src>
import math
from functools import partial

import jax
import jax.numpy as jnp
from jax.experimental import pallas as pl
from jax.experimental.pallas import tpu as pltpu


# --------------------------------------------------------------------------- attention core
def _split_heads(x2, T, nb, H, d, seq_major, compute_dtype):
    """(rows, E) -> (nb*H, T, d). rows are (t, b)-ordered if seq_major else (b, t)."""
    x2 = x2.astype(compute_dtype)
    if seq_major:
        x4 = x2.reshape(T, nb, H, d)
        x4 = jnp.transpose(x4, (1, 2, 0, 3))            # (nb, H, T, d)
    else:
        x4 = x2.reshape(nb, T, H, d)
        x4 = jnp.transpose(x4, (0, 2, 1, 3))            # (nb, H, T, d)
    return x4.reshape(nb * H, T, d)


def _attend_heads(q2, k2, v2, *, num_heads, nb, L, S, seq_major, compute_dtype):
    """q2: (rows_q, E) f32 (1/sqrt(d) already folded into the q projection);
    k2/v2: (rows_kv, E) f32.  Returns lane-dense (rows_q, E) f32 head outputs."""
    E = q2.shape[-1]
    d = E // num_heads
    qh = _split_heads(q2, L, nb, num_heads, d, seq_major, compute_dtype)
    kh = _split_heads(k2, S, nb, num_heads, d, seq_major, compute_dtype)
    vh = _split_heads(v2, S, nb, num_heads, d, seq_major, compute_dtype)
    # merged (batch*head) MXU contractions; softmax math stays in f32
    s = jnp.einsum("bld,bsd->bls", qh, kh, preferred_element_type=jnp.float32)
    s = s - jnp.max(s, axis=-1, keepdims=True)
    p = jnp.exp(s)
    p = p * pl.reciprocal(jnp.sum(p, axis=-1, keepdims=True), approx=True)
    o = jnp.einsum("bls,bsd->bld", p.astype(compute_dtype), vh,
                   preferred_element_type=jnp.float32)   # (nb*H, L, d) f32
    o4 = o.reshape(nb, num_heads, L, d)
    if seq_major:
        o4 = jnp.transpose(o4, (2, 0, 1, 3))             # (L, nb, H, d)
        return o4.reshape(L * nb, E)
    o4 = jnp.transpose(o4, (0, 2, 1, 3))                 # (nb, L, H, d)
    return o4.reshape(nb * L, E)


def _out_project(o2, w_out_ref, b_out_ref, out_ref, compute_dtype):
    out = jnp.dot(o2.astype(compute_dtype), w_out_ref[...],
                  preferred_element_type=jnp.float32) + b_out_ref[...]
    out_ref[...] = out.reshape(out_ref.shape).astype(out_ref.dtype)


# --------------------------------------------------------------------------- kernels
def _mha_self_kernel(x_ref, w_in_ref, b_in_ref, w_out_ref, b_out_ref, out_ref, *,
                     num_heads, nb, L, seq_major, compute_dtype):
    """Self-attention: fused (rows,E)x(E,3E) QKV projection."""
    E = x_ref.shape[-1]
    x2 = x_ref[...].reshape(nb * L, E).astype(compute_dtype)
    qkv = jnp.dot(x2, w_in_ref[...], preferred_element_type=jnp.float32) + b_in_ref[...]
    o2 = _attend_heads(qkv[:, :E], qkv[:, E:2 * E], qkv[:, 2 * E:],
                       num_heads=num_heads, nb=nb, L=L, S=L,
                       seq_major=seq_major, compute_dtype=compute_dtype)
    _out_project(o2, w_out_ref, b_out_ref, out_ref, compute_dtype)


def _mha_kvshared_kernel(q_ref, kv_ref, w_in_ref, b_in_ref, w_out_ref, b_out_ref, out_ref, *,
                         num_heads, nb, L, S, seq_major, compute_dtype):
    """key is value (encoder-decoder): fused (rows,E)x(E,2E) K/V projection."""
    E = q_ref.shape[-1]
    q2 = q_ref[...].reshape(nb * L, E).astype(compute_dtype)
    kv2 = kv_ref[...].reshape(nb * S, E).astype(compute_dtype)
    w_in, b_in = w_in_ref[...], b_in_ref[...]
    q = jnp.dot(q2, w_in[:, :E], preferred_element_type=jnp.float32) + b_in[:, :E]
    kv = jnp.dot(kv2, w_in[:, E:], preferred_element_type=jnp.float32) + b_in[:, E:]
    o2 = _attend_heads(q, kv[:, :E], kv[:, E:],
                       num_heads=num_heads, nb=nb, L=L, S=S,
                       seq_major=seq_major, compute_dtype=compute_dtype)
    _out_project(o2, w_out_ref, b_out_ref, out_ref, compute_dtype)


def _mha_cross_kernel(q_ref, k_ref, v_ref, w_in_ref, b_in_ref, w_out_ref, b_out_ref, out_ref, *,
                      num_heads, nb, L, S, seq_major, compute_dtype):
    """General cross-attention: distinct q / k / v inputs."""
    E = q_ref.shape[-1]
    q2 = q_ref[...].reshape(nb * L, E).astype(compute_dtype)
    k2 = k_ref[...].reshape(nb * S, E).astype(compute_dtype)
    v2 = v_ref[...].reshape(nb * S, E).astype(compute_dtype)
    w_in, b_in = w_in_ref[...], b_in_ref[...]
    q = jnp.dot(q2, w_in[:, :E], preferred_element_type=jnp.float32) + b_in[:, :E]
    k = jnp.dot(k2, w_in[:, E:2 * E], preferred_element_type=jnp.float32) + b_in[:, E:2 * E]
    v = jnp.dot(v2, w_in[:, 2 * E:], preferred_element_type=jnp.float32) + b_in[:, 2 * E:]
    o2 = _attend_heads(q, k, v, num_heads=num_heads, nb=nb, L=L, S=S,
                       seq_major=seq_major, compute_dtype=compute_dtype)
    _out_project(o2, w_out_ref, b_out_ref, out_ref, compute_dtype)


# --------------------------------------------------------------------------- planning helpers
def _num_tensorcores():
    try:
        dev = jax.devices()[0]
        if "v7" in str(getattr(dev, "device_kind", "")).lower():
            return 2
        return max(1, int(getattr(dev, "num_cores", 1) or 1))
    except Exception:
        return 1


def _vmem_budget():
    """(physical VMEM bytes, budget for this kernel) - generation aware."""
    cap = 64 * 1024 * 1024                  # conservative default (v7x per-core VMEM)
    try:
        info = pltpu.get_tpu_info()
        cap = int(getattr(info, "vmem_capacity_bytes", cap) or cap)
    except Exception:
        pass
    return cap, (cap * 3) // 4              # leave headroom for compiler scratch / spills


def _per_batch_vmem_bytes(L, S, E, H, n_kv_inputs, in_itemsize, c_itemsize):
    """Approximate per-batch-element VMEM footprint (counts double-buffered I/O blocks,
    projection temporaries and (8,128) lane padding of head-minor / score tensors)."""
    f32 = 4
    d = max(E // H, 1)
    pad_d = max(1, 128 // d) if d < 128 else 1
    pad_s = max(1, 128 // S) if S < 128 else 1
    io = 2 * L * E * in_itemsize                           # q/x input block (double-buffered)
    io += 2 * n_kv_inputs * S * E * in_itemsize            # k/v (or fused kv) input blocks
    io += 2 * L * E * in_itemsize                          # output block
    tmp = L * 3 * E * f32                                  # projected q/k/v (f32)
    tmp += (L + 2 * S) * E * (f32 + c_itemsize) * pad_d    # head-major copies (+ bf16 casts)
    tmp += H * L * S * (f32 + c_itemsize) * pad_s          # scores / softmax / cast probs
    tmp += 2 * L * E * f32                                 # merged heads + out-proj result
    return int(io + tmp)


def _pick_batch_block(N, L, per_batch_bytes, fixed_bytes, vmem_budget, n_cores):
    """Largest divisor of N whose footprint fits the budget (maximises MXU M fill).  On
    multi-TensorCore parts (v7x) split into >= n_cores grid steps only when each step still
    keeps >=128 matmul rows; single-core parts (v5e/v6e) always keep the biggest block."""
    avail = max(vmem_budget - fixed_bytes, per_batch_bytes)
    nb = int(min(N, max(1, avail // per_batch_bytes)))
    while N % nb:
        nb -= 1
    if n_cores > 1 and nb > 1 and (N // nb) < n_cores:
        cand = nb
        while cand > 1 and (N // cand) < n_cores:
            cand -= 1
            while cand > 1 and N % cand:
                cand -= 1
        if cand * L >= 128:
            nb = cand
    return nb


# --------------------------------------------------------------------------- wrapper
def multihead_attention(query, key, value, params, num_heads, *,
                        compute_dtype=jnp.bfloat16, batch_block=None):
    """query: (L, N, E); key/value: (S, N, E).  Returns (attn_output (L, N, E), None)."""
    L, N, E = query.shape
    S = key.shape[0]
    assert E % num_heads == 0, "embed_dim must be divisible by num_heads"
    # NOTE: identity-based dispatch, like PyTorch's own fast-path check.  Output is correct
    # either way; only the fused-projection fast paths depend on it.
    self_attn = (query is key) and (key is value)
    kv_shared = (key is value) and not self_attn
    cdt = jnp.dtype(compute_dtype)

    # Weights: pre-transpose once; fold 1/sqrt(head_dim) into the q projection; cast the
    # matmul operands to the MXU compute dtype (biases stay f32, added post-accumulation).
    d = E // num_heads
    scale = 1.0 / math.sqrt(d)
    scale_vec = jnp.concatenate([jnp.full((E,), scale, jnp.float32),
                                 jnp.ones((2 * E,), jnp.float32)])
    w_in_t = (params["in_proj_weight"].astype(jnp.float32).T * scale_vec[None, :]).astype(cdt)
    b_in = (params["in_proj_bias"].astype(jnp.float32) * scale_vec)[None, :]        # (1, 3E) f32
    w_out_t = params["out_proj_weight"].astype(jnp.float32).T.astype(cdt)            # (E, E)
    b_out = params["out_proj_bias"].astype(jnp.float32)[None, :]                     # (1, E) f32

    # Batch blocking under a generation-aware VMEM budget.
    n_cores = _num_tensorcores()
    vmem_cap, vmem_budget = _vmem_budget()
    weight_bytes = 2 * (w_in_t.size * w_in_t.dtype.itemsize
                        + w_out_t.size * w_out_t.dtype.itemsize
                        + (b_in.size + b_out.size) * 4)
    n_kv = 0 if self_attn else (1 if kv_shared else 2)
    per_b = _per_batch_vmem_bytes(L, S, E, num_heads, n_kv, 4, cdt.itemsize)
    if batch_block is not None:
        nb = int(batch_block)
        assert N % nb == 0, "batch_block must divide the batch size"
    else:
        nb = _pick_batch_block(N, L, per_b, weight_bytes, vmem_budget, n_cores)
    seq_major = (nb == N)        # whole batch per block -> consume native (L, N, E) layout
    grid = (N // nb,)

    if seq_major:
        def dspec(T):
            return pl.BlockSpec((T, nb, E), lambda i: (0, 0, 0))
        out_shape = jax.ShapeDtypeStruct((L, N, E), query.dtype)
        to_blocked = lambda a: a                            # no wrapper transposes
    else:
        def dspec(T):
            return pl.BlockSpec((nb, T, E), lambda i: (i, 0, 0))
        out_shape = jax.ShapeDtypeStruct((N, L, E), query.dtype)
        to_blocked = lambda a: jnp.transpose(a, (1, 0, 2))  # batch-major blocked layout
    out_spec = dspec(L)

    kw = dict(num_heads=num_heads, nb=nb, L=L, seq_major=seq_major, compute_dtype=cdt)
    if self_attn:
        kernel = partial(_mha_self_kernel, **kw)
        data = [to_blocked(query)]
        data_specs = [dspec(L)]
    elif kv_shared:
        kernel = partial(_mha_kvshared_kernel, S=S, **kw)
        data = [to_blocked(query), to_blocked(key)]
        data_specs = [dspec(L), dspec(S)]
    else:
        kernel = partial(_mha_cross_kernel, S=S, **kw)
        data = [to_blocked(query), to_blocked(key), to_blocked(value)]
        data_specs = [dspec(L), dspec(S), dspec(S)]

    compiler_params = pltpu.CompilerParams(
        dimension_semantics=("parallel",),
        vmem_limit_bytes=int(min(vmem_budget, vmem_cap)))

    def run(weight_buffering):
        wkw = {} if weight_buffering is None else {"pipeline_mode": weight_buffering}
        const = lambda i: (0, 0)
        w_specs = [pl.BlockSpec((E, 3 * E), const, **wkw),
                   pl.BlockSpec((1, 3 * E), const, **wkw),
                   pl.BlockSpec((E, E), const, **wkw),
                   pl.BlockSpec((1, E), const, **wkw)]
        return pl.pallas_call(
            kernel,
            out_shape=out_shape,
            grid_spec=pltpu.PrefetchScalarGridSpec(
                num_scalar_prefetch=0, grid=grid,
                in_specs=data_specs + w_specs, out_specs=out_spec),
            compiler_params=compiler_params,
        )(*data, w_in_t, b_in, w_out_t, b_out)

    try:
        # Grid-invariant weight/bias blocks: single-buffer them (halves their VMEM footprint).
        out_b = run(pl.Buffered(1))
    except Exception:
        out_b = run(None)        # fallback if this JAX rejects pipeline_mode on BlockSpec

    attn_output = out_b if seq_major else jnp.transpose(out_b, (1, 0, 2))
    return attn_output, None     # TODO(synk): need_weights attention-weight output


# --------------------------------------------------------------------------- reference & init
def _reference_mha(query, key, value, params, num_heads):
    L, N, E = query.shape
    S = key.shape[0]
    d = E // num_heads
    in_w, in_b = params["in_proj_weight"], params["in_proj_bias"]
    wq, wk, wv = in_w[:E], in_w[E:2 * E], in_w[2 * E:]
    bq, bk, bv = in_b[:E], in_b[E:2 * E], in_b[2 * E:]
    q = jnp.einsum("lne,fe->lnf", query, wq) + bq
    k = jnp.einsum("sne,fe->snf", key, wk) + bk
    v = jnp.einsum("sne,fe->snf", value, wv) + bv
    q = q.reshape(L, N, num_heads, d).transpose(1, 2, 0, 3)
    k = k.reshape(S, N, num_heads, d).transpose(1, 2, 0, 3)
    v = v.reshape(S, N, num_heads, d).transpose(1, 2, 0, 3)
    scores = jnp.einsum("nhld,nhsd->nhls", q, k) / math.sqrt(d)
    p = jax.nn.softmax(scores, axis=-1)
    o = jnp.einsum("nhls,nhsd->nhld", p, v)
    o = o.transpose(2, 0, 1, 3).reshape(L, N, E)
    return jnp.einsum("lne,fe->lnf", o, params["out_proj_weight"]) + params["out_proj_bias"]


def init_params(key, embed_dim):
    """Mirrors MultiheadAttention._reset_parameters (xavier_uniform in_proj, zero biases)."""
    k1, k2 = jax.random.split(key)
    E = embed_dim
    bound = math.sqrt(6.0 / (E + 3 * E))
    in_proj_weight = jax.random.uniform(k1, (3 * E, E), jnp.float32, -bound, bound)
    in_proj_bias = jnp.zeros((3 * E,), jnp.float32)
    lin_bound = 1.0 / math.sqrt(E)
    out_proj_weight = jax.random.uniform(k2, (E, E), jnp.float32, -lin_bound, lin_bound)
    out_proj_bias = jnp.zeros((E,), jnp.float32)
    return {"in_proj_weight": in_proj_weight, "in_proj_bias": in_proj_bias,
            "out_proj_weight": out_proj_weight, "out_proj_bias": out_proj_bias}


if __name__ == "__main__":
    embed_dim, num_heads = 128, 4          # E = 128 -> lane-dense (full 128-lane) stores
    L, S, N = 8, 16, 2

    root = jax.random.PRNGKey(0)
    kp, kx, kq, kk, kv = jax.random.split(root, 5)
    params = init_params(kp, embed_dim)

    # 1) self-attention (query is key is value): fused-QKV path, bf16 MXU compute ----------
    x = jax.random.normal(kx, (L, N, embed_dim), jnp.float32)
    out_self, w_self = multihead_attention(x, x, x, params, num_heads)
    out_self = jax.block_until_ready(out_self)
    ref_self = _reference_mha(x, x, x, params, num_heads)
    assert out_self.shape == (L, N, embed_dim)
    assert w_self is None
    assert jnp.allclose(out_self, ref_self, atol=3e-2, rtol=3e-2), "self-attn (bf16) mismatch"

    # 2) self-attention, f32 compute path (tight parity with nn.MultiheadAttention) --------
    out_f32, _ = multihead_attention(x, x, x, params, num_heads, compute_dtype=jnp.float32)
    out_f32 = jax.block_until_ready(out_f32)
    assert jnp.allclose(out_f32, ref_self, atol=2e-3, rtol=2e-3), "self-attn (f32) mismatch"

    # 3) cross-attention with distinct q / k / v --------------------------------------------
    q = jax.random.normal(kq, (L, N, embed_dim), jnp.float32)
    k = jax.random.normal(kk, (S, N, embed_dim), jnp.float32)
    v = jax.random.normal(kv, (S, N, embed_dim), jnp.float32)
    out_x, _ = multihead_attention(q, k, v, params, num_heads)
    out_x = jax.block_until_ready(out_x)
    ref_x = _reference_mha(q, k, v, params, num_heads)
    assert jnp.allclose(out_x, ref_x, atol=3e-2, rtol=3e-2), "cross-attn mismatch"

    # 4) encoder-decoder style shared-KV path, forced multi-step (batch-major) blocking -----
    N2 = 4
    q2 = jax.random.normal(jax.random.fold_in(root, 1), (L, N2, embed_dim), jnp.float32)
    kv2 = jax.random.normal(jax.random.fold_in(root, 2), (S, N2, embed_dim), jnp.float32)
    out_kv, _ = multihead_attention(q2, kv2, kv2, params, num_heads, batch_block=2)
    out_kv = jax.block_until_ready(out_kv)
    ref_kv = _reference_mha(q2, kv2, kv2, params, num_heads)
    assert jnp.allclose(out_kv, ref_kv, atol=3e-2, rtol=3e-2), "shared-KV attn mismatch"

    print("KERNEL_OK")
</pallas_src>

<mosaic_0001>
module attributes {stable_mosaic.version = 11 : i64} {
  func.func @_mha_self_kernel(%arg0: i32, %arg1: memref<8x2x128xf32, #tpu.memory_space<vmem>>, %arg2: memref<128x384xbf16, #tpu.memory_space<vmem>>, %arg3: memref<1x384xf32, #tpu.memory_space<vmem>>, %arg4: memref<128x128xbf16, #tpu.memory_space<vmem>>, %arg5: memref<1x128xf32, #tpu.memory_space<vmem>>, %arg6: memref<8x2x128xf32, #tpu.memory_space<vmem>>) attributes {dimension_semantics = [#tpu.dimension_semantics<parallel>], iteration_bounds = array<i64: 1>, scalar_prefetch = 0 : i64, scratch_operands = 0 : i64, tpu.core_type = #tpu.core_type<tc>, window_params = [{pipeline_mode = #tpu.pipeline_mode<synchronous>, transform_indices = @transform_0, window_bounds = array<i64: 8, 2, 128>}, {pipeline_mode = #tpu.pipeline_mode<synchronous>, transform_indices = @transform_1, window_bounds = array<i64: 128, 384>}, {pipeline_mode = #tpu.pipeline_mode<synchronous>, transform_indices = @transform_2, window_bounds = array<i64: 1, 384>}, {pipeline_mode = #tpu.pipeline_mode<synchronous>, transform_indices = @transform_3, window_bounds = array<i64: 128, 128>}, {pipeline_mode = #tpu.pipeline_mode<synchronous>, transform_indices = @transform_4, window_bounds = array<i64: 1, 128>}, {pipeline_mode = #tpu.pipeline_mode<synchronous>, transform_indices = @transform_5, window_bounds = array<i64: 8, 2, 128>}]} {
    %c0 = arith.constant 0 : index
    %c0_0 = arith.constant 0 : index
    %c0_1 = arith.constant 0 : index
    %0 = vector.load %arg1[%c0, %c0_0, %c0_1] : memref<8x2x128xf32, #tpu.memory_space<vmem>>, vector<8x2x128xf32>
    %1 = vector.shape_cast %0 : vector<8x2x128xf32> to vector<16x128xf32>
    %2 = arith.truncf %1 : vector<16x128xf32> to vector<16x128xbf16>
    %c0_2 = arith.constant 0 : index
    %c0_3 = arith.constant 0 : index
    %3 = vector.load %arg2[%c0_2, %c0_3] : memref<128x384xbf16, #tpu.memory_space<vmem>>, vector<128x384xbf16>
    %cst = arith.constant dense<0.000000e+00> : vector<16x384xf32>
    %4 = tpu.matmul %2, %3, %cst {dimension_numbers = #tpu.dot_dimension_numbers<[1], [0], [0], [1], [0, 0, 1, 1], [], []>} : vector<16x128xbf16>, vector<128x384xbf16>, vector<16x384xf32> -> vector<16x384xf32>
    %c0_4 = arith.constant 0 : index
    %c0_5 = arith.constant 0 : index
    %5 = vector.load %arg3[%c0_4, %c0_5] : memref<1x384xf32, #tpu.memory_space<vmem>>, vector<1x384xf32>
    %6 = vector.broadcast %5 : vector<1x384xf32> to vector<16x384xf32>
    %7 = arith.addf %4, %6 : vector<16x384xf32>
    %8 = vector.extract_strided_slice %7 {offsets = [0, 0], sizes = [16, 128], strides = [1, 1]} : vector<16x384xf32> to vector<16x128xf32>
    %9 = vector.extract_strided_slice %7 {offsets = [0, 128], sizes = [16, 128], strides = [1, 1]} : vector<16x384xf32> to vector<16x128xf32>
    %10 = vector.extract_strided_slice %7 {offsets = [0, 256], sizes = [16, 128], strides = [1, 1]} : vector<16x384xf32> to vector<16x128xf32>
    %11 = arith.truncf %8 : vector<16x128xf32> to vector<16x128xbf16>
    %12 = vector.shape_cast %11 : vector<16x128xbf16> to vector<8x2x4x32xbf16>
    %13 = tpu.transpose %12, [1, 2, 0, 3] : vector<8x2x4x32xbf16> -> vector<2x4x8x32xbf16>
    %14 = vector.shape_cast %13 : vector<2x4x8x32xbf16> to vector<8x8x32xbf16>
    %15 = arith.truncf %9 : vector<16x128xf32> to vector<16x128xbf16>
    %16 = vector.shape_cast %15 : vector<16x128xbf16> to vector<8x2x4x32xbf16>
    %17 = tpu.transpose %16, [1, 2, 0, 3] : vector<8x2x4x32xbf16> -> vector<2x4x8x32xbf16>
    %18 = vector.shape_cast %17 : vector<2x4x8x32xbf16> to vector<8x8x32xbf16>
    %19 = arith.truncf %10 : vector<16x128xf32> to vector<16x128xbf16>
    %20 = vector.shape_cast %19 : vector<16x128xbf16> to vector<8x2x4x32xbf16>
    %21 = tpu.transpose %20, [1, 2, 0, 3] : vector<8x2x4x32xbf16> -> vector<2x4x8x32xbf16>
    %22 = vector.shape_cast %21 : vector<2x4x8x32xbf16> to vector<8x8x32xbf16>
    "tpu.trace_start"() <{level = 10 : i32, message = "bld,bsd->bls"}> : () -> ()
    %cst_6 = arith.constant dense<0.000000e+00> : vector<8x8x8xf32>
    %23 = tpu.matmul %14, %18, %cst_6 {dimension_numbers = #tpu.dot_dimension_numbers<[2], [2], [1], [1], [0, 0, 0, 1, 1, 1], [0], [0]>} : vector<8x8x32xbf16>, vector<8x8x32xbf16>, vector<8x8x8xf32> -> vector<8x8x8xf32>
    "tpu.trace_stop"() : () -> ()
    %cst_7 = arith.constant dense<0xFF800000> : vector<8x8xf32>
    %24 = vector.multi_reduction <maximumf>, %23, %cst_7 [2] : vector<8x8x8xf32> to vector<8x8xf32>
    %25 = vector.shape_cast %24 : vector<8x8xf32> to vector<8x8x1xf32>
    %26 = vector.broadcast %25 : vector<8x8x1xf32> to vector<8x8x8xf32>
    %27 = arith.subf %23, %26 : vector<8x8x8xf32>
    %28 = math.exp %27 : vector<8x8x8xf32>
    %cst_8 = arith.constant dense<0.000000e+00> : vector<8x8xf32>
    %29 = vector.multi_reduction <add>, %28, %cst_8 [2] : vector<8x8x8xf32> to vector<8x8xf32>
    %30 = vector.shape_cast %29 : vector<8x8xf32> to vector<8x8x1xf32>
    %31 = tpu.reciprocal %30 {approx = true} : vector<8x8x1xf32> -> vector<8x8x1xf32>
    %32 = vector.broadcast %31 : vector<8x8x1xf32> to vector<8x8x8xf32>
    %33 = arith.mulf %28, %32 : vector<8x8x8xf32>
    %34 = arith.truncf %33 : vector<8x8x8xf32> to vector<8x8x8xbf16>
    "tpu.trace_start"() <{level = 10 : i32, message = "bls,bsd->bld"}> : () -> ()
    %cst_9 = arith.constant dense<0.000000e+00> : vector<8x8x32xf32>
    %35 = tpu.matmul %34, %22, %cst_9 {dimension_numbers = #tpu.dot_dimension_numbers<[2], [1], [1], [2], [0, 0, 0, 1, 1, 2], [0], [0]>} : vector<8x8x8xbf16>, vector<8x8x32xbf16>, vector<8x8x32xf32> -> vector<8x8x32xf32>
    "tpu.trace_stop"() : () -> ()
    %36 = vector.shape_cast %35 : vector<8x8x32xf32> to vector<2x4x8x32xf32>
    %37 = tpu.transpose %36, [2, 0, 1, 3] : vector<2x4x8x32xf32> -> vector<8x2x4x32xf32>
    %38 = vector.shape_cast %37 : vector<8x2x4x32xf32> to vector<16x128xf32>
    %39 = arith.truncf %38 : vector<16x128xf32> to vector<16x128xbf16>
    %c0_10 = arith.constant 0 : index
    %c0_11 = arith.constant 0 : index
    %40 = vector.load %arg4[%c0_10, %c0_11] : memref<128x128xbf16, #tpu.memory_space<vmem>>, vector<128x128xbf16>
    %cst_12 = arith.constant dense<0.000000e+00> : vector<16x128xf32>
    %41 = tpu.matmul %39, %40, %cst_12 {dimension_numbers = #tpu.dot_dimension_numbers<[1], [0], [0], [1], [0, 0, 1, 1], [], []>} : vector<16x128xbf16>, vector<128x128xbf16>, vector<16x128xf32> -> vector<16x128xf32>
    %c0_13 = arith.constant 0 : index
    %c0_14 = arith.constant 0 : index
    %42 = vector.load %arg5[%c0_13, %c0_14] : memref<1x128xf32, #tpu.memory_space<vmem>>, vector<1x128xf32>
    %43 = vector.broadcast %42 : vector<1x128xf32> to vector<16x128xf32>
    %44 = arith.addf %41, %43 : vector<16x128xf32>
    %45 = vector.shape_cast %44 : vector<16x128xf32> to vector<8x2x128xf32>
    %c0_15 = arith.constant 0 : index
    %c0_16 = arith.constant 0 : index
    %c0_17 = arith.constant 0 : index
    %46 = vector.load %arg6[%c0_15, %c0_16, %c0_17] : memref<8x2x128xf32, #tpu.memory_space<vmem>>, vector<8x2x128xf32>
    tpu.vector_store %arg6[%c0_15, %c0_16, %c0_17], %45 {strides = array<i32>} : memref<8x2x128xf32, #tpu.memory_space<vmem>>, vector<8x2x128xf32>,
    return
  }
  func.func @transform_0(%arg0: i32) -> (i32, i32, i32) {
    %c0_i32 = arith.constant 0 : i32
    %c0_i32_0 = arith.constant 0 : i32
    %c0_i32_1 = arith.constant 0 : i32
    %c0_i32_2 = arith.constant 0 : i32
    return %c0_i32, %c0_i32_0, %c0_i32_1 : i32, i32, i32
  }
  func.func @transform_1(%arg0: i32) -> (i32, i32) {
    %c0_i32 = arith.constant 0 : i32
    %c0_i32_0 = arith.constant 0 : i32
    %c0_i32_1 = arith.constant 0 : i32
    return %c0_i32, %c0_i32_0 : i32, i32
  }
  func.func @transform_2(%arg0: i32) -> (i32, i32) {
    %c0_i32 = arith.constant 0 : i32
    %c0_i32_0 = arith.constant 0 : i32
    %c0_i32_1 = arith.constant 0 : i32
    return %c0_i32, %c0_i32_0 : i32, i32
  }
  func.func @transform_3(%arg0: i32) -> (i32, i32) {
    %c0_i32 = arith.constant 0 : i32
    %c0_i32_0 = arith.constant 0 : i32
    %c0_i32_1 = arith.constant 0 : i32
    return %c0_i32, %c0_i32_0 : i32, i32
  }
  func.func @transform_4(%arg0: i32) -> (i32, i32) {
    %c0_i32 = arith.constant 0 : i32
    %c0_i32_0 = arith.constant 0 : i32
    %c0_i32_1 = arith.constant 0 : i32
    return %c0_i32, %c0_i32_0 : i32, i32
  }
  func.func @transform_5(%arg0: i32) -> (i32, i32, i32) {
    %c0_i32 = arith.constant 0 : i32
    %c0_i32_0 = arith.constant 0 : i32
    %c0_i32_1 = arith.constant 0 : i32
    %c0_i32_2 = arith.constant 0 : i32
    return %c0_i32, %c0_i32_0, %c0_i32_1 : i32, i32, i32
  }
}

module attributes {stable_mosaic.version = 11 : i64} {
  func.func @_mha_self_kernel(%arg0: i32, %arg1: memref<8x2x128xf32, #tpu.memory_space<vmem>>, %arg2: memref<128x384xbf16, #tpu.memory_space<vmem>>, %arg3: memref<1x384xf32, #tpu.memory_space<vmem>>, %arg4: memref<128x128xbf16, #tpu.memory_space<vmem>>, %arg5: memref<1x128xf32, #tpu.memory_space<vmem>>, %arg6: memref<8x2x128xf32, #tpu.memory_space<vmem>>) attributes {dimension_semantics = [#tpu.dimension_semantics<parallel>], iteration_bounds = array<i64: 1>, scalar_prefetch = 0 : i64, scratch_operands = 0 : i64, tpu.core_type = #tpu.core_type<tc>, window_params = [{pipeline_mode = #tpu.pipeline_mode<synchronous>, transform_indices = @transform_0, window_bounds = array<i64: 8, 2, 128>}, {pipeline_mode = #tpu.pipeline_mode<synchronous>, transform_indices = @transform_1, window_bounds = array<i64: 128, 384>}, {pipeline_mode = #tpu.pipeline_mode<synchronous>, transform_indices = @transform_2, window_bounds = array<i64: 1, 384>}, {pipeline_mode = #tpu.pipeline_mode<synchronous>, transform_indices = @transform_3, window_bounds = array<i64: 128, 128>}, {pipeline_mode = #tpu.pipeline_mode<synchronous>, transform_indices = @transform_4, window_bounds = array<i64: 1, 128>}, {pipeline_mode = #tpu.pipeline_mode<synchronous>, transform_indices = @transform_5, window_bounds = array<i64: 8, 2, 128>}]} {
    %c0 = arith.constant 0 : index
    %c0_0 = arith.constant 0 : index
    %c0_1 = arith.constant 0 : index
    %0 = vector.load %arg1[%c0, %c0_0, %c0_1] : memref<8x2x128xf32, #tpu.memory_space<vmem>>, vector<8x2x128xf32>
    %1 = vector.shape_cast %0 : vector<8x2x128xf32> to vector<16x128xf32>
    %2 = arith.truncf %1 : vector<16x128xf32> to vector<16x128xbf16>
    %c0_2 = arith.constant 0 : index
    %c0_3 = arith.constant 0 : index
    %3 = vector.load %arg2[%c0_2, %c0_3] : memref<128x384xbf16, #tpu.memory_space<vmem>>, vector<128x384xbf16>
    %cst = arith.constant dense<0.000000e+00> : vector<16x384xf32>
    %4 = tpu.matmul %2, %3, %cst {dimension_numbers = #tpu.dot_dimension_numbers<[1], [0], [0], [1], [0, 0, 1, 1], [], []>} : vector<16x128xbf16>, vector<128x384xbf16>, vector<16x384xf32> -> vector<16x384xf32>
    %c0_4 = arith.constant 0 : index
    %c0_5 = arith.constant 0 : index
    %5 = vector.load %arg3[%c0_4, %c0_5] : memref<1x384xf32, #tpu.memory_space<vmem>>, vector<1x384xf32>
    %6 = vector.broadcast %5 : vector<1x384xf32> to vector<16x384xf32>
    %7 = arith.addf %4, %6 : vector<16x384xf32>
    %8 = vector.extract_strided_slice %7 {offsets = [0, 0], sizes = [16, 128], strides = [1, 1]} : vector<16x384xf32> to vector<16x128xf32>
    %9 = vector.extract_strided_slice %7 {offsets = [0, 128], sizes = [16, 128], strides = [1, 1]} : vector<16x384xf32> to vector<16x128xf32>
    %10 = vector.extract_strided_slice %7 {offsets = [0, 256], sizes = [16, 128], strides = [1, 1]} : vector<16x384xf32> to vector<16x128xf32>
    %11 = arith.truncf %8 : vector<16x128xf32> to vector<16x128xbf16>
    %12 = vector.shape_cast %11 : vector<16x128xbf16> to vector<8x2x4x32xbf16>
    %13 = tpu.transpose %12, [1, 2, 0, 3] : vector<8x2x4x32xbf16> -> vector<2x4x8x32xbf16>
    %14 = vector.shape_cast %13 : vector<2x4x8x32xbf16> to vector<8x8x32xbf16>
    %15 = arith.truncf %9 : vector<16x128xf32> to vector<16x128xbf16>
    %16 = vector.shape_cast %15 : vector<16x128xbf16> to vector<8x2x4x32xbf16>
    %17 = tpu.transpose %16, [1, 2, 0, 3] : vector<8x2x4x32xbf16> -> vector<2x4x8x32xbf16>
    %18 = vector.shape_cast %17 : vector<2x4x8x32xbf16> to vector<8x8x32xbf16>
    %19 = arith.truncf %10 : vector<16x128xf32> to vector<16x128xbf16>
    %20 = vector.shape_cast %19 : vector<16x128xbf16> to vector<8x2x4x32xbf16>
    %21 = tpu.transpose %20, [1, 2, 0, 3] : vector<8x2x4x32xbf16> -> vector<2x4x8x32xbf16>
    %22 = vector.shape_cast %21 : vector<2x4x8x32xbf16> to vector<8x8x32xbf16>
    "tpu.trace_start"() <{level = 10 : i32, message = "bld,bsd->bls"}> : () -> ()
    %cst_6 = arith.constant dense<0.000000e+00> : vector<8x8x8xf32>
    %23 = tpu.matmul %14, %18, %cst_6 {dimension_numbers = #tpu.dot_dimension_numbers<[2], [2], [1], [1], [0, 0, 0, 1, 1, 1], [0], [0]>} : vector<8x8x32xbf16>, vector<8x8x32xbf16>, vector<8x8x8xf32> -> vector<8x8x8xf32>
    "tpu.trace_stop"() : () -> ()
    %cst_7 = arith.constant dense<0xFF800000> : vector<8x8xf32>
    %24 = vector.multi_reduction <maximumf>, %23, %cst_7 [2] : vector<8x8x8xf32> to vector<8x8xf32>
    %25 = vector.shape_cast %24 : vector<8x8xf32> to vector<8x8x1xf32>
    %26 = vector.broadcast %25 : vector<8x8x1xf32> to vector<8x8x8xf32>
    %27 = arith.subf %23, %26 : vector<8x8x8xf32>
    %28 = math.exp %27 : vector<8x8x8xf32>
    %cst_8 = arith.constant dense<0.000000e+00> : vector<8x8xf32>
    %29 = vector.multi_reduction <add>, %28, %cst_8 [2] : vector<8x8x8xf32> to vector<8x8xf32>
    %30 = vector.shape_cast %29 : vector<8x8xf32> to vector<8x8x1xf32>
    %31 = tpu.reciprocal %30 {approx = true} : vector<8x8x1xf32> -> vector<8x8x1xf32>
    %32 = vector.broadcast %31 : vector<8x8x1xf32> to vector<8x8x8xf32>
    %33 = arith.mulf %28, %32 : vector<8x8x8xf32>
    %34 = arith.truncf %33 : vector<8x8x8xf32> to vector<8x8x8xbf16>
    "tpu.trace_start"() <{level = 10 : i32, message = "bls,bsd->bld"}> : () -> ()
    %cst_9 = arith.constant dense<0.000000e+00> : vector<8x8x32xf32>
    %35 = tpu.matmul %34, %22, %cst_9 {dimension_numbers = #tpu.dot_dimension_numbers<[2], [1], [1], [2], [0, 0, 0, 1, 1, 2], [0], [0]>} : vector<8x8x8xbf16>, vector<8x8x32xbf16>, vector<8x8x32xf32> -> vector<8x8x32xf32>
    "tpu.trace_stop"() : () -> ()
    %36 = vector.shape_cast %35 : vector<8x8x32xf32> to vector<2x4x8x32xf32>
    %37 = tpu.transpose %36, [2, 0, 1, 3] : vector<2x4x8x32xf32> -> vector<8x2x4x32xf32>
    %38 = vector.shape_cast %37 : vector<8x2x4x32xf32> to vector<16x128xf32>
    %39 = arith.truncf %38 : vector<16x128xf32> to vector<16x128xbf16>
    %c0_10 = arith.constant 0 : index
    %c0_11 = arith.constant 0 : index
    %40 = vector.load %arg4[%c0_10, %c0_11] : memref<128x128xbf16, #tpu.memory_space<vmem>>, vector<128x128xbf16>
    %cst_12 = arith.constant dense<0.000000e+00> : vector<16x128xf32>
    %41 = tpu.matmul %39, %40, %cst_12 {dimension_numbers = #tpu.dot_dimension_numbers<[1], [0], [0], [1], [0, 0, 1, 1], [], []>} : vector<16x128xbf16>, vector<128x128xbf16>, vector<16x128xf32> -> vector<16x128xf32>
    %c0_13 = arith.constant 0 : index
    %c0_14 = arith.constant 0 : index
    %42 = vector.load %arg5[%c0_13, %c0_14] : memref<1x128xf32, #tpu.memory_space<vmem>>, vector<1x128xf32>
    %43 = vector.broadcast %42 : vector<1x128xf32> to vector<16x128xf32>
    %44 = arith.addf %41, %43 : vector<16x128xf32>
    %45 = vector.shape_cast %44 : vector<16x128xf32> to vector<8x2x128xf32>
    %c0_15 = arith.constant 0 : index
    %c0_16 = arith.constant 0 : index
    %c0_17 = arith.constant 0 : index
    %46 = vector.load %arg6[%c0_15, %c0_16, %c0_17] : memref<8x2x128xf32, #tpu.memory_space<vmem>>, vector<8x2x128xf32>
    tpu.vector_store %arg6[%c0_15, %c0_16, %c0_17], %45 {strides = array<i32>} : memref<8x2x128xf32, #tpu.memory_space<vmem>>, vector<8x2x128xf32>,
    return
  }
  func.func @transform_0(%arg0: i32) -> (i32, i32, i32) {
    %c0_i32 = arith.constant 0 : i32
    %c0_i32_0 = arith.constant 0 : i32
    %c0_i32_1 = arith.constant 0 : i32
    %c0_i32_2 = arith.constant 0 : i32
    return %c0_i32, %c0_i32_0, %c0_i32_1 : i32, i32, i32
  }
  func.func @transform_1(%arg0: i32) -> (i32, i32) {
    %c0_i32 = arith.constant 0 : i32
    %c0_i32_0 = arith.constant 0 : i32
    %c0_i32_1 = arith.constant 0 : i32
    return %c0_i32, %c0_i32_0 : i32, i32
  }
  func.func @transform_2(%arg0: i32) -> (i32, i32) {
    %c0_i32 = arith.constant 0 : i32
    %c0_i32_0 = arith.constant 0 : i32
    %c0_i32_1 = arith.constant 0 : i32
    return %c0_i32, %c0_i32_0 : i32, i32
  }
  func.func @transform_3(%arg0: i32) -> (i32, i32) {
    %c0_i32 = arith.constant 0 : i32
    %c0_i32_0 = arith.constant 0 : i32
    %c0_i32_1 = arith.constant 0 : i32
    return %c0_i32, %c0_i32_0 : i32, i32
  }
  func.func @transform_4(%arg0: i32) -> (i32, i32) {
    %c0_i32 = arith.constant 0 : i32
    %c0_i32_0 = arith.constant 0 : i32
    %c0_i32_1 = arith.constant 0 : i32
    return %c0_i32, %c0_i32_0 : i32, i32
  }
  func.func @transform_5(%arg0: i32) -> (i32, i32, i32) {
    %c0_i32 = arith.constant 0 : i32
    %c0_i32_0 = arith.constant 0 : i32
    %c0_i32_1 = arith.constant 0 : i32
    %c0_i32_2 = arith.constant 0 : i32
    return %c0_i32, %c0_i32_0, %c0_i32_1 : i32, i32, i32
  }
}

</mosaic_0001>

<llo_original>
// kernel: tpu_custom_call.1
$region0: #{tpu_custom_call.1}
  #allocation0 [shape = 'u32[]', space=smem, size = 0x4, offset = 0x4, fixed_abs, tag = 'smem constant byte address 0x4 - core index']
  #allocation1 [shape = 'u32[144,128]{1,0:T(1,128)}', space=vmem, size = 0x12000, scoped, tag = 'internal scratch']
  %s0 = inlined_call_operand.hbm [shape: f32[8,2,128], index: 0, kind: input, shape index: {}]
  %s1 = inlined_call_operand.hbm [shape: bf16[128,384], index: 1, kind: input, shape index: {}]
  %s2 = inlined_call_operand.vmem [shape: f32[1,384], index: 2, kind: input, shape index: {}]
  %s3 = inlined_call_operand.hbm [shape: bf16[128,128], index: 3, kind: input, shape index: {}]
  %s4 = inlined_call_operand.vmem [shape: f32[1,128], index: 4, kind: input, shape index: {}]
  %s5 = inlined_call_operand.hbm [shape: f32[8,2,128], index: 5, kind: output, shape index: {}]
  %s6 = sld [smem:[#allocation0]]
  $region42: #{tpu_custom_call.1} parent=0
    _
  %s8 = ssub.s32 1, %s6
  %s9 = scalar_select 0, %s8, %s6
  $region1: #{tpu_custom_call.1} parent=0
    #allocation2 [shape = 'u8[8192]{0}', space=vmem, size = 0x2000, scoped, tag = 'input window, operand 0, single buffered']
    #allocation3 [shape = 's32[1]{0}', space=sflag, size = 0x4, scoped, tag = 'scoped memory for tpu_custom_call.1']
    #allocation4 [shape = 's32[1]{0}', space=sflag, size = 0x4, scoped, tag = 'scoped memory for tpu_custom_call.1']
    #allocation5 [shape = 'u8[98304]{0}', space=vmem, size = 0x18000, scoped, tag = 'input window, operand 1, single buffered']
    #allocation6 [shape = 's32[1]{0}', space=sflag, size = 0x4, scoped, tag = 'scoped memory for tpu_custom_call.1']
    #allocation7 [shape = 'u8[32768]{0}', space=vmem, size = 0x8000, scoped, tag = 'input window, operand 3, single buffered']
    #allocation8 [shape = 'u8[8192]{0}', space=vmem, size = 0x2000, scoped, tag = 'output window, operand 0, single buffered']
    %10 = vsyncpa [#allocation3], 0
    %11 = vsyncpa [#allocation6], 0
    %12 = vsyncpa [#allocation4], 0
    // Predicated region
    $region2: #{tpu_custom_call.1} parent=1 // pred_check
      _
    $region3: #{tpu_custom_call.1} parent=1 // pred_check_branch
      %14 = sbr.rel (0) target = $region5
    $region4: #{tpu_custom_call.1} parent=1 // pred_region
      %s16 = ssub.s32 256, 256
      %17 = vsyncadd [#allocation3], %s16
      %s18 = sshll.u32 [#allocation2], 4
      %s19 = int_to_ptr.vmem [resolvable:$true] %s18
      %24 = dma.hbm_to_vmem [thread:$0]  %s0, 256, %s19, [#allocation3], 32, 32, 2
    $region5: #{tpu_custom_call.1} parent=1 // pred_fallthru
      _
    // Predicated region
    $region6: #{tpu_custom_call.1} parent=1 // pred_check
      _
    $region7: #{tpu_custom_call.1} parent=1 // pred_check_branch
      %26 = sbr.rel (0) target = $region9
    $region8: #{tpu_custom_call.1} parent=1 // pred_region
      %s28 = ssub.s32 3072, 3072
      %29 = vsyncadd [#allocation6], %s28
      %s30 = sshll.u32 [#allocation5], 4
      %s31 = int_to_ptr.vmem [resolvable:$true] %s30
      %36 = dma.hbm_to_vmem [thread:$0]  %s1, 3072, %s31, [#allocation6], 192, 192, 12
    $region9: #{tpu_custom_call.1} parent=1 // pred_fallthru
      _
    // Predicated region
    $region10: #{tpu_custom_call.1} parent=1 // pred_check
      _
    $region11: #{tpu_custom_call.1} parent=1 // pred_check_branch
      %38 = sbr.rel (0) target = $region13
    $region12: #{tpu_custom_call.1} parent=1 // pred_region
      _
    $region13: #{tpu_custom_call.1} parent=1 // pred_fallthru
      _
    // Predicated region
    $region14: #{tpu_custom_call.1} parent=1 // pred_check
      _
    $region15: #{tpu_custom_call.1} parent=1 // pred_check_branch
      %40 = sbr.rel (0) target = $region17
    $region16: #{tpu_custom_call.1} parent=1 // pred_region
      %s42 = ssub.s32 1024, 1024
      %43 = vsyncadd [#allocation6], %s42
      %s44 = sshll.u32 [#allocation7], 4
      %s45 = int_to_ptr.vmem [resolvable:$true] %s44
      %50 = dma.hbm_to_vmem [thread:$0]  %s3, 1024, %s45, [#allocation6], 64, 64, 4
    $region17: #{tpu_custom_call.1} parent=1 // pred_fallthru
      _
    // Predicated region
    $region18: #{tpu_custom_call.1} parent=1 // pred_check
      _
    $region19: #{tpu_custom_call.1} parent=1 // pred_check_branch
      %52 = sbr.rel (0) target = $region21
    $region20: #{tpu_custom_call.1} parent=1 // pred_region
      _
    $region21: #{tpu_custom_call.1} parent=1 // pred_fallthru
      _
    // Predicated region
    $region22: #{tpu_custom_call.1} parent=1 // pred_check
      _
    $region23: #{tpu_custom_call.1} parent=1 // pred_check_branch
      %54 = sbr.rel (0) target = $region25
    $region24: #{tpu_custom_call.1} parent=1 // pred_region
      %55 = dma.done [#allocation3], 256
    $region25: #{tpu_custom_call.1} parent=1 // pred_fallthru
      _
    // Predicated region
    $region26: #{tpu_custom_call.1} parent=1 // pred_check
      _
    $region27: #{tpu_custom_call.1} parent=1 // pred_check_branch
      %57 = sbr.rel (0) target = $region29
    $region28: #{tpu_custom_call.1} parent=1 // pred_region
      %58 = dma.done [#allocation6], 3072
    $region29: #{tpu_custom_call.1} parent=1 // pred_fallthru
      _
    // Predicated region
    $region30: #{tpu_custom_call.1} parent=1 // pred_check
      _
    $region31: #{tpu_custom_call.1} parent=1 // pred_check_branch
      %60 = sbr.rel (0) target = $region33
    $region32: #{tpu_custom_call.1} parent=1 // pred_region
      %61 = dma.done [#allocation6], 1024
    $region33: #{tpu_custom_call.1} parent=1 // pred_fallthru
      _
    %v63 = vld [vmem:[#allocation2] sm:$0x3]
    %v64 = vld [vmem:[#allocation2 + $0x2] sm:$0x3]
    %v65 = vld [vmem:[#allocation2 + $0x4] sm:$0x3]
    %v66 = vld [vmem:[#allocation2 + $0x6] sm:$0x3]
    %v67 = vld [vmem:[#allocation2 + $0x8] sm:$0x3]
    %v68 = vld [vmem:[#allocation2 + $0xa] sm:$0x3]
    %v69 = vld [vmem:[#allocation2 + $0xc] sm:$0x3]
    %v70 = vld [vmem:[#allocation2 + $0xe] sm:$0x3]
    %v79 = vcombine.low %v63, %v64
    %v80 = vcombine.low %v65, %v66
    %v82 = vunpack.c.l.s4 1983009808
    %v83 = vunpack.c.0.s8 %v82
    %v84 = vlaneseq
    %v85 = vshrl.u32 %v84, 7
    %v86 = vsub.s32 %v83, %v85
    %v87 = vrot.slane %v79, %v86
    %v89 = vunpack.c.l.s4 1983009808
    %v90 = vunpack.c.0.s8 %v89
    %v91 = vlaneseq
    %v92 = vshrl.u32 %v91, 7
    %v93 = vsub.s32 %v90, %v92
    %v94 = vrot.slane %v80, %v93
    %v95 = vcombine.low %v87, %v94
    %v96 = vcombine.low %v67, %v68
    %v97 = vcombine.low %v69, %v70
    %v99 = vunpack.c.l.s4 1983009808
    %v100 = vunpack.c.0.s8 %v99
    %v101 = vlaneseq
    %v102 = vshrl.u32 %v101, 7
    %v103 = vsub.s32 %v100, %v102
    %v104 = vrot.slane %v96, %v103
    %v106 = vunpack.c.l.s4 1983009808
    %v107 = vunpack.c.0.s8 %v106
    %v108 = vlaneseq
    %v109 = vshrl.u32 %v108, 7
    %v110 = vsub.s32 %v107, %v109
    %v111 = vrot.slane %v97, %v110
    %v112 = vcombine.low %v104, %v111
    %v115 = vpack.c.bf16 %v112, %v95
    %v116 = vld [vmem:[#allocation5] sm:$0xff]
    %v117 = vld [vmem:[#allocation5 + $0x8] sm:$0xf]
    %v118 = vld [vmem:[#allocation5 + $0xc] sm:$0xff]
    %v119 = vld [vmem:[#allocation5 + $0x14] sm:$0xf]
    %v120 = vld [vmem:[#allocation5 + $0x18] sm:$0xff]
    %v121 = vld [vmem:[#allocation5 + $0x20] sm:$0xf]
    %v122 = vld [vmem:[#allocation5 + $0x24] sm:$0xff]
    %v123 = vld [vmem:[#allocation5 + $0x2c] sm:$0xf]
    %v124 = vld [vmem:[#allocation5 + $0x30] sm:$0xff]
    %v125 = vld [vmem:[#allocation5 + $0x38] sm:$0xf]
    %v126 = vld [vmem:[#allocation5 + $0x3c] sm:$0xff]
    %v127 = vld [vmem:[#allocation5 + $0x44] sm:$0xf]
    %v128 = vld [vmem:[#allocation5 + $0x48] sm:$0xff]
    %v129 = vld [vmem:[#allocation5 + $0x50] sm:$0xf]
    %v130 = vld [vmem:[#allocation5 + $0x54] sm:$0xff]
    %v131 = vld [vmem:[#allocation5 + $0x5c] sm:$0xf]
    %v132 = vld [vmem:[#allocation5 + $0x60] sm:$0xff]
    %v133 = vld [vmem:[#allocation5 + $0x68] sm:$0xf]
    %v134 = vld [vmem:[#allocation5 + $0x6c] sm:$0xff]
    %v135 = vld [vmem:[#allocation5 + $0x74] sm:$0xf]
    %v136 = vld [vmem:[#allocation5 + $0x78] sm:$0xff]
    %v137 = vld [vmem:[#allocation5 + $0x80] sm:$0xf]
    %v138 = vld [vmem:[#allocation5 + $0x84] sm:$0xff]
    %v139 = vld [vmem:[#allocation5 + $0x8c] sm:$0xf]
    %v140 = vld [vmem:[#allocation5 + $0x90] sm:$0xff]
    %v141 = vld [vmem:[#allocation5 + $0x98] sm:$0xf]
    %v142 = vld [vmem:[#allocation5 + $0x9c] sm:$0xff]
    %v143 = vld [vmem:[#allocation5 + $0xa4] sm:$0xf]
    %v144 = vld [vmem:[#allocation5 + $0xa8] sm:$0xff]
    %v145 = vld [vmem:[#allocation5 + $0xb0] sm:$0xf]
    %v146 = vld [vmem:[#allocation5 + $0xb4] sm:$0xff]
    %v147 = vld [vmem:[#allocation5 + $0xbc] sm:$0xf]
    %v148 = vld [vmem:[%s2] sm:$0x7]
    %v150 = vlaneseq
    %v151 = vshrl.u32 %v150, 7
    %v152 = vsub.s32 0, %v151
    %v153 = vrot.slane %v148, %v152
    %v154 = vlaneseq
    %v155 = vshrl.u32 %v154, 7
    %v156 = vsub.s32 1, %v155
    %v157 = vrot.slane %v148, %v156
    %v158 = vlaneseq
    %v159 = vshrl.u32 %v158, 7
    %v160 = vsub.s32 2, %v159
    %v161 = vrot.slane %v148, %v160
    %v197 = vunpack.c.l.b16 %v116
    %v198 = vunpack.c.h.b16 %v116
    %v199 = vunpack.c.l.b16 %v117
    %v200 = vunpack.c.l.b16 %v118
    %v201 = vunpack.c.h.b16 %v118
    %v202 = vunpack.c.l.b16 %v119
    %v203 = vunpack.c.l.b16 %v120
    %v204 = vunpack.c.h.b16 %v120
    %v205 = vunpack.c.l.b16 %v121
    %v206 = vunpack.c.l.b16 %v122
    %v207 = vunpack.c.h.b16 %v122
    %v208 = vunpack.c.l.b16 %v123
    %v209 = vunpack.c.l.b16 %v124
    %v210 = vunpack.c.h.b16 %v124
    %v211 = vunpack.c.l.b16 %v125
    %v212 = vunpack.c.l.b16 %v126
    %v213 = vunpack.c.h.b16 %v126
    %v214 = vunpack.c.l.b16 %v127
    %v215 = vunpack.c.l.b16 %v128
    %v216 = vunpack.c.h.b16 %v128
    %v217 = vunpack.c.l.b16 %v129
    %v218 = vunpack.c.l.b16 %v130
    %v219 = vunpack.c.h.b16 %v130
    %v220 = vunpack.c.l.b16 %v131
    %v221 = vunpack.c.l.b16 %v132
    %v222 = vunpack.c.h.b16 %v132
    %v223 = vunpack.c.l.b16 %v133
    %v224 = vunpack.c.l.b16 %v134
    %v225 = vunpack.c.h.b16 %v134
    %v226 = vunpack.c.l.b16 %v135
    %v227 = vunpack.c.l.b16 %v136
    %v228 = vunpack.c.h.b16 %v136
    %v229 = vunpack.c.l.b16 %v137
    %v230 = vunpack.c.l.b16 %v138
    %v231 = vunpack.c.h.b16 %v138
    %v232 = vunpack.c.l.b16 %v139
    %v233 = vunpack.c.l.b16 %v140
    %v234 = vunpack.c.h.b16 %v140
    %v235 = vunpack.c.l.b16 %v141
    %v236 = vunpack.c.l.b16 %v142
    %v237 = vunpack.c.h.b16 %v142
    %v238 = vunpack.c.l.b16 %v143
    %v239 = vunpack.c.l.b16 %v144
    %v240 = vunpack.c.h.b16 %v144
    %v241 = vunpack.c.l.b16 %v145
    %v242 = vunpack.c.l.b16 %v146
    %v243 = vunpack.c.h.b16 %v146
    %v244 = vunpack.c.l.b16 %v147
    %v245 = vpack.c.b16 %v200, %v197
    %v246 = vpack.c.b16 %v201, %v198
    %v247 = vpack.c.b16 %v202, %v199
    %v248 = vpack.c.b16 %v206, %v203
    %v249 = vpack.c.b16 %v207, %v204
    %v250 = vpack.c.b16 %v208, %v205
    %v251 = vpack.c.b16 %v212, %v209
    %v252 = vpack.c.b16 %v213, %v210
    %v253 = vpack.c.b16 %v214, %v211
    %v254 = vpack.c.b16 %v218, %v215
    %v255 = vpack.c.b16 %v219, %v216
    %v256 = vpack.c.b16 %v220, %v217
    %v257 = vpack.c.b16 %v224, %v221
    %v258 = vpack.c.b16 %v225, %v222
    %v259 = vpack.c.b16 %v226, %v223
    %v260 = vpack.c.b16 %v230, %v227
    %v261 = vpack.c.b16 %v231, %v228
    %v262 = vpack.c.b16 %v232, %v229
    %v263 = vpack.c.b16 %v236, %v233
    %v264 = vpack.c.b16 %v237, %v234
    %v265 = vpack.c.b16 %v238, %v235
    %v266 = vpack.c.b16 %v242, %v239
    %v267 = vpack.c.b16 %v243, %v240
    %v268 = vpack.c.b16 %v244, %v241
    %293 = vmatprep.subr.bf16.mxu0 %v267
    %294 = vmatpush1.bf16.msra.mxu0 %v266
    %295 = vmatprep.subr.bf16.mxu0 %v264
    %296 = vmatpush1.bf16.msra.mxu0 %v263
    %297 = vmatprep.subr.bf16.mxu0 %v261
    %298 = vmatpush1.bf16.msra.mxu0 %v260
    %299 = vmatprep.subr.bf16.mxu0 %v258
    %300 = vmatpush1.bf16.msra.mxu0 %v257
    %301 = vmatprep.subr.bf16.mxu0 %v255
    %302 = vmatpush1.bf16.msra.mxu0 %v254
    %303 = vmatprep.subr.bf16.mxu0 %v252
    %304 = vmatpush1.bf16.msra.mxu0 %v251
    %305 = vmatprep.subr.bf16.mxu0 %v249
    %306 = vmatpush1.bf16.msra.mxu0 %v248
    %307 = vmatprep.subr.bf16.mxu0 %v246
    %308 = vmatpush1.bf16.msra.mxu0 %v245
    %309 = vmatprep.subr.bf16.mxu0 0
    %310 = vmatpush2.bf16.msra.mxu0 0
    %311 = vmatprep.subr.bf16.mxu0 0
    %312 = vmatpush2.bf16.msra.mxu0 0
    %313 = vmatprep.subr.bf16.mxu0 0
    %314 = vmatpush2.bf16.msra.mxu0 0
    %315 = vmatprep.subr.bf16.mxu0 0
    %316 = vmatpush2.bf16.msra.mxu0 0
    %317 = vmatprep.subr.bf16.mxu0 0
    %318 = vmatpush2.bf16.msra.mxu0 0
    %319 = vmatprep.subr.bf16.mxu0 0
    %320 = vmatpush2.bf16.msra.mxu0 0
    %321 = vmatprep.subr.bf16.mxu0 0
    %322 = vmatpush2.bf16.msra.mxu0 0
    %323 = vmatprep.subr.bf16.mxu0 0
    %324 = vmatpush2.bf16.msra.mxu0 0
    %325 = vmatprep.mubr.bf16.mxu0 0
    %326 = vmatmul.mubr.bf16.gmra.mxu0 %v115
    %v327 = vpop.f32.mrf.mxu0
    %v328 = vadd.f32 %v153, %v327
    %v329 = vpop.f32.mrf.mxu0
    %v330 = vadd.f32 %v157, %v329
    %v331 = vpop.f32.mrf.mxu0
    %v332 = vadd.f32 %v153, %v331
    %v333 = vpop.f32.mrf.mxu0
    %v334 = vadd.f32 %v157, %v333
    %335 = vdwg.mxu0
    %336 = vmatprep.subr.bf16.mxu0 0
    %337 = vmatpush1.bf16.msra.mxu0 %v268
    %338 = vmatprep.subr.bf16.mxu0 0
    %339 = vmatpush1.bf16.msra.mxu0 %v265
    %340 = vmatprep.subr.bf16.mxu0 0
    %341 = vmatpush1.bf16.msra.mxu0 %v262
    %342 = vmatprep.subr.bf16.mxu0 0
    %343 = vmatpush1.bf16.msra.mxu0 %v259
    %344 = vmatprep.subr.bf16.mxu0 0
    %345 = vmatpush1.bf16.msra.mxu0 %v256
    %346 = vmatprep.subr.bf16.mxu0 0
    %347 = vmatpush1.bf16.msra.mxu0 %v253
    %348 = vmatprep.subr.bf16.mxu0 0
    %349 = vmatpush1.bf16.msra.mxu0 %v250
    %350 = vmatprep.subr.bf16.mxu0 0
    %351 = vmatpush1.bf16.msra.mxu0 %v247
    %352 = vmatprep.subr.bf16.mxu0 0
    %353 = vmatpush2.bf16.msra.mxu0 0
    %354 = vmatprep.subr.bf16.mxu0 0
    %355 = vmatpush2.bf16.msra.mxu0 0
    %356 = vmatprep.subr.bf16.mxu0 0
    %357 = vmatpush2.bf16.msra.mxu0 0
    %358 = vmatprep.subr.bf16.mxu0 0
    %359 = vmatpush2.bf16.msra.mxu0 0
    %360 = vmatprep.subr.bf16.mxu0 0
    %361 = vmatpush2.bf16.msra.mxu0 0
    %362 = vmatprep.subr.bf16.mxu0 0
    %363 = vmatpush2.bf16.msra.mxu0 0
    %364 = vmatprep.subr.bf16.mxu0 0
    %365 = vmatpush2.bf16.msra.mxu0 0
    %366 = vmatprep.subr.bf16.mxu0 0
    %367 = vmatpush2.bf16.msra.mxu0 0
    %368 = vmatprep.mubr.bf16.mxu0 0
    %369 = vmatmul.mubr.bf16.gmra.mxu0 %v115
    %v370 = vpop.f32.mrf.mxu0
    %v371 = vadd.f32 %v161, %v370
    %v372 = vpop.f32.mrf.mxu0
    %v373 = vpop.f32.mrf.mxu0
    %v374 = vadd.f32 %v161, %v373
    %v375 = vpop.f32.mrf.mxu0
    %376 = vdwg.mxu0
    %v377 = vpack.c.bf16 %v332, %v328
    %379 = vrot.lane.b32.xlu0 %v377, 96
    %v380 = vpop.permute.xlu0 %379
    %381 = vrot.lane.b32.xlu0 %v377, 64
    %v382 = vpop.permute.xlu0 %381
    %383 = vrot.lane.b32.xlu0 %v377, 32
    %v384 = vpop.permute.xlu0 %383
    %v387 = vpack.i.b16 %v380, %v377
    %v389 = vshrl.u32 %v377, 16
    %v390 = vshrl.u32 %v380, 16
    %v391 = vpack.i.b16 %v390, %v389
    %v395 = vpack.i.b16 %v384, %v382
    %v397 = vshrl.u32 %v382, 16
    %v398 = vshrl.u32 %v384, 16
    %v399 = vpack.i.b16 %v398, %v397
    %v402 = vpack.i.b16 0, 0
    %v404 = vshrl.u32 0, 16
    %v405 = vpack.i.b16 %v404, %v404
    %v407 = vcombine.high %v387, %v402
    %v409 = vunpack.c.l.s4 1983009808
    %v410 = vunpack.c.0.s8 %v409
    %v411 = vlaneseq
    %v412 = vshrl.u32 %v411, 7
    %v413 = vsub.s32 %v410, %v412
    %v414 = vrot.slane %v387, %v413
    %v416 = vunpack.c.l.s4 1983009808
    %v417 = vunpack.c.0.s8 %v416
    %v418 = vlaneseq
    %v419 = vshrl.u32 %v418, 7
    %v420 = vsub.s32 %v417, %v419
    %v421 = vrot.slane %v407, %v420
    %v422 = vcombine.high %v395, %v402
    %v424 = vunpack.c.l.s4 1983009808
    %v425 = vunpack.c.0.s8 %v424
    %v426 = vlaneseq
    %v427 = vshrl.u32 %v426, 7
    %v428 = vsub.s32 %v425, %v427
    %v429 = vrot.slane %v395, %v428
    %v431 = vunpack.c.l.s4 1983009808
    %v432 = vunpack.c.0.s8 %v431
    %v433 = vlaneseq
    %v434 = vshrl.u32 %v433, 7
    %v435 = vsub.s32 %v432, %v434
    %v436 = vrot.slane %v422, %v435
    %v437 = vcombine.low %v414, %v429
    %v438 = vcombine.high %v414, %v429
    %v440 = vunpack.c.l.s4 1934713408
    %v441 = vunpack.c.0.s8 %v440
    %v442 = vlaneseq
    %v443 = vshrl.u32 %v442, 7
    %v444 = vsub.s32 %v441, %v443
    %v445 = vrot.slane %v437, %v444
    %v447 = vunpack.c.l.s4 1934713408
    %v448 = vunpack.c.0.s8 %v447
    %v449 = vlaneseq
    %v450 = vshrl.u32 %v449, 7
    %v451 = vsub.s32 %v448, %v450
    %v452 = vrot.slane %v438, %v451
    %v453 = vcombine.low %v421, %v436
    %v454 = vcombine.high %v421, %v436
    %v456 = vunpack.c.l.s4 1934713408
    %v457 = vunpack.c.0.s8 %v456
    %v458 = vlaneseq
    %v459 = vshrl.u32 %v458, 7
    %v460 = vsub.s32 %v457, %v459
    %v461 = vrot.slane %v453, %v460
    %v463 = vunpack.c.l.s4 1934713408
    %v464 = vunpack.c.0.s8 %v463
    %v465 = vlaneseq
    %v466 = vshrl.u32 %v465, 7
    %v467 = vsub.s32 %v464, %v466
    %v468 = vrot.slane %v454, %v467
    %v469 = vcombine.high %v445, 0
    %v470 = vcombine.high %v452, 0
    %v471 = vcombine.high %v461, 0
    %v472 = vcombine.high %v468, 0
    %v473 = vcombine.high %v391, %v405
    %v475 = vunpack.c.l.s4 1983009808
    %v476 = vunpack.c.0.s8 %v475
    %v477 = vlaneseq
    %v478 = vshrl.u32 %v477, 7
    %v479 = vsub.s32 %v476, %v478
    %v480 = vrot.slane %v391, %v479
    %v482 = vunpack.c.l.s4 1983009808
    %v483 = vunpack.c.0.s8 %v482
    %v484 = vlaneseq
    %v485 = vshrl.u32 %v484, 7
    %v486 = vsub.s32 %v483, %v485
    %v487 = vrot.slane %v473, %v486
    %v488 = vcombine.high %v399, %v405
    %v490 = vunpack.c.l.s4 1983009808
    %v491 = vunpack.c.0.s8 %v490
    %v492 = vlaneseq
    %v493 = vshrl.u32 %v492, 7
    %v494 = vsub.s32 %v491, %v493
    %v495 = vrot.slane %v399, %v494
    %v497 = vunpack.c.l.s4 1983009808
    %v498 = vunpack.c.0.s8 %v497
    %v499 = vlaneseq
    %v500 = vshrl.u32 %v499, 7
    %v501 = vsub.s32 %v498, %v500
    %v502 = vrot.slane %v488, %v501
    %v503 = vcombine.low %v480, %v495
    %v504 = vcombine.high %v480, %v495
    %v506 = vunpack.c.l.s4 1934713408
    %v507 = vunpack.c.0.s8 %v506
    %v508 = vlaneseq
    %v509 = vshrl.u32 %v508, 7
    %v510 = vsub.s32 %v507, %v509
    %v511 = vrot.slane %v503, %v510
    %v513 = vunpack.c.l.s4 1934713408
    %v514 = vunpack.c.0.s8 %v513
    %v515 = vlaneseq
    %v516 = vshrl.u32 %v515, 7
    %v517 = vsub.s32 %v514, %v516
    %v518 = vrot.slane %v504, %v517
    %v519 = vcombine.low %v487, %v502
    %v520 = vcombine.high %v487, %v502
    %v522 = vunpack.c.l.s4 1934713408
    %v523 = vunpack.c.0.s8 %v522
    %v524 = vlaneseq
    %v525 = vshrl.u32 %v524, 7
    %v526 = vsub.s32 %v523, %v525
    %v527 = vrot.slane %v519, %v526
    %v529 = vunpack.c.l.s4 1934713408
    %v530 = vunpack.c.0.s8 %v529
    %v531 = vlaneseq
    %v532 = vshrl.u32 %v531, 7
    %v533 = vsub.s32 %v530, %v532
    %v534 = vrot.slane %v520, %v533
    %v535 = vcombine.high %v511, 0
    %v536 = vcombine.high %v518, 0
    %v537 = vcombine.high %v527, 0
    %v538 = vcombine.high %v534, 0
    %v539 = vcombine.low %v445, %v461
    %v541 = vunpack.c.l.s4 1983009808
    %v542 = vunpack.c.0.s8 %v541
    %v543 = vlaneseq
    %v544 = vshrl.u32 %v543, 7
    %v545 = vsub.s32 %v542, %v544
    %v546 = vrot.slane %v539, %v545
    %v547 = vcombine.low %v452, %v468
    %v549 = vunpack.c.l.s4 1983009808
    %v550 = vunpack.c.0.s8 %v549
    %v551 = vlaneseq
    %v552 = vshrl.u32 %v551, 7
    %v553 = vsub.s32 %v550, %v552
    %v554 = vrot.slane %v547, %v553
    %v555 = vcombine.low %v546, %v554
    %v557 = vunpack.c.l.s4 1934713408
    %v558 = vunpack.c.0.s8 %v557
    %v559 = vlaneseq
    %v560 = vshrl.u32 %v559, 7
    %v561 = vsub.s32 %v558, %v560
    %v562 = vrot.slane %v555, %v561
    %v563 = vcombine.high %v562, 0
    %v564 = vcombine.low %v469, %v471
    %v566 = vunpack.c.l.s4 1983009808
    %v567 = vunpack.c.0.s8 %v566
    %v568 = vlaneseq
    %v569 = vshrl.u32 %v568, 7
    %v570 = vsub.s32 %v567, %v569
    %v571 = vrot.slane %v564, %v570
    %v572 = vcombine.low %v470, %v472
    %v574 = vunpack.c.l.s4 1983009808
    %v575 = vunpack.c.0.s8 %v574
    %v576 = vlaneseq
    %v577 = vshrl.u32 %v576, 7
    %v578 = vsub.s32 %v575, %v577
    %v579 = vrot.slane %v572, %v578
    %v580 = vcombine.low %v571, %v579
    %v582 = vunpack.c.l.s4 1934713408
    %v583 = vunpack.c.0.s8 %v582
    %v584 = vlaneseq
    %v585 = vshrl.u32 %v584, 7
    %v586 = vsub.s32 %v583, %v585
    %v587 = vrot.slane %v580, %v586
    %v588 = vcombine.high %v587, 0
    %v589 = vcombine.low %v511, %v527
    %v591 = vunpack.c.l.s4 1983009808
    %v592 = vunpack.c.0.s8 %v591
    %v593 = vlaneseq
    %v594 = vshrl.u32 %v593, 7
    %v595 = vsub.s32 %v592, %v594
    %v596 = vrot.slane %v589, %v595
    %v597 = vcombine.low %v518, %v534
    %v599 = vunpack.c.l.s4 1983009808
    %v600 = vunpack.c.0.s8 %v599
    %v601 = vlaneseq
    %v602 = vshrl.u32 %v601, 7
    %v603 = vsub.s32 %v600, %v602
    %v604 = vrot.slane %v597, %v603
    %v605 = vcombine.low %v596, %v604
    %v607 = vunpack.c.l.s4 1934713408
    %v608 = vunpack.c.0.s8 %v607
    %v609 = vlaneseq
    %v610 = vshrl.u32 %v609, 7
    %v611 = vsub.s32 %v608, %v610
    %v612 = vrot.slane %v605, %v611
    %v613 = vcombine.high %v612, 0
    %v614 = vcombine.low %v535, %v537
    %v616 = vunpack.c.l.s4 1983009808
    %v617 = vunpack.c.0.s8 %v616
    %v618 = vlaneseq
    %v619 = vshrl.u32 %v618, 7
    %v620 = vsub.s32 %v617, %v619
    %v621 = vrot.slane %v614, %v620
    %v622 = vcombine.low %v536, %v538
    %v624 = vunpack.c.l.s4 1983009808
    %v625 = vunpack.c.0.s8 %v624
    %v626 = vlaneseq
    %v627 = vshrl.u32 %v626, 7
    %v628 = vsub.s32 %v625, %v627
    %v629 = vrot.slane %v622, %v628
    %v630 = vcombine.low %v621, %v629
    %v632 = vunpack.c.l.s4 1934713408
    %v633 = vunpack.c.0.s8 %v632
    %v634 = vlaneseq
    %v635 = vshrl.u32 %v634, 7
    %v636 = vsub.s32 %v633, %v635
    %v637 = vrot.slane %v630, %v636
    %v638 = vcombine.high %v637, 0
    %v641 = vpack.i.b16 %v587, %v562
    %v642 = vshrl.u32 %v562, 16
    %v643 = vshrl.u32 %v587, 16
    %v644 = vpack.i.b16 %v643, %v642
    %v647 = vpack.i.b16 %v588, %v563
    %v648 = vshrl.u32 %v563, 16
    %v649 = vshrl.u32 %v588, 16
    %v650 = vpack.i.b16 %v649, %v648
    %v653 = vpack.i.b16 %v637, %v612
    %v654 = vshrl.u32 %v612, 16
    %v655 = vshrl.u32 %v637, 16
    %v656 = vpack.i.b16 %v655, %v654
    %v659 = vpack.i.b16 %v638, %v613
    %v660 = vshrl.u32 %v613, 16
    %v661 = vshrl.u32 %v638, 16
    %v662 = vpack.i.b16 %v661, %v660
    %v663 = vpack.c.bf16 %v334, %v330
    %665 = vrot.lane.b32.xlu0 %v663, 96
    %v666 = vpop.permute.xlu0 %665
    %667 = vrot.lane.b32.xlu0 %v663, 64
    %v668 = vpop.permute.xlu0 %667
    %669 = vrot.lane.b32.xlu0 %v663, 32
    %v670 = vpop.permute.xlu0 %669
    %v673 = vpack.i.b16 %v666, %v663
    %v675 = vshrl.u32 %v663, 16
    %v676 = vshrl.u32 %v666, 16
    %v677 = vpack.i.b16 %v676, %v675
    %v681 = vpack.i.b16 %v670, %v668
    %v683 = vshrl.u32 %v668, 16
    %v684 = vshrl.u32 %v670, 16
    %v685 = vpack.i.b16 %v684, %v683
    %v687 = vcombine.high %v673, %v402
    %v689 = vunpack.c.l.s4 1983009808
    %v690 = vunpack.c.0.s8 %v689
    %v691 = vlaneseq
    %v692 = vshrl.u32 %v691, 7
    %v693 = vsub.s32 %v690, %v692
    %v694 = vrot.slane %v673, %v693
    %v696 = vunpack.c.l.s4 1983009808
    %v697 = vunpack.c.0.s8 %v696
    %v698 = vlaneseq
    %v699 = vshrl.u32 %v698, 7
    %v700 = vsub.s32 %v697, %v699
    %v701 = vrot.slane %v687, %v700
    %v702 = vcombine.high %v681, %v402
    %v704 = vunpack.c.l.s4 1983009808
    %v705 = vunpack.c.0.s8 %v704
    %v706 = vlaneseq
    %v707 = vshrl.u32 %v706, 7
    %v708 = vsub.s32 %v705, %v707
    %v709 = vrot.slane %v681, %v708
    %v711 = vunpack.c.l.s4 1983009808
    %v712 = vunpack.c.0.s8 %v711
    %v713 = vlaneseq
    %v714 = vshrl.u32 %v713, 7
    %v715 = vsub.s32 %v712, %v714
    %v716 = vrot.slane %v702, %v715
    %v717 = vcombine.low %v694, %v709
    %v718 = vcombine.high %v694, %v709
    %v720 = vunpack.c.l.s4 1934713408
    %v721 = vunpack.c.0.s8 %v720
    %v722 = vlaneseq
    %v723 = vshrl.u32 %v722, 7
    %v724 = vsub.s32 %v721, %v723
    %v725 = vrot.slane %v717, %v724
    %v727 = vunpack.c.l.s4 1934713408
    %v728 = vunpack.c.0.s8 %v727
    %v729 = vlaneseq
    %v730 = vshrl.u32 %v729, 7
    %v731 = vsub.s32 %v728, %v730
    %v732 = vrot.slane %v718, %v731
    %v733 = vcombine.low %v701, %v716
    %v734 = vcombine.high %v701, %v716
    %v736 = vunpack.c.l.s4 1934713408
    %v737 = vunpack.c.0.s8 %v736
    %v738 = vlaneseq
    %v739 = vshrl.u32 %v738, 7
    %v740 = vsub.s32 %v737, %v739
    %v741 = vrot.slane %v733, %v740
    %v743 = vunpack.c.l.s4 1934713408
    %v744 = vunpack.c.0.s8 %v743
    %v745 = vlaneseq
    %v746 = vshrl.u32 %v745, 7
    %v747 = vsub.s32 %v744, %v746
    %v748 = vrot.slane %v734, %v747
    %v749 = vcombine.high %v725, 0
    %v750 = vcombine.high %v732, 0
    %v751 = vcombine.high %v741, 0
    %v752 = vcombine.high %v748, 0
    %v753 = vcombine.high %v677, %v405
    %v755 = vunpack.c.l.s4 1983009808
    %v756 = vunpack.c.0.s8 %v755
    %v757 = vlaneseq
    %v758 = vshrl.u32 %v757, 7
    %v759 = vsub.s32 %v756, %v758
    %v760 = vrot.slane %v677, %v759
    %v762 = vunpack.c.l.s4 1983009808
    %v763 = vunpack.c.0.s8 %v762
    %v764 = vlaneseq
    %v765 = vshrl.u32 %v764, 7
    %v766 = vsub.s32 %v763, %v765
    %v767 = vrot.slane %v753, %v766
    %v768 = vcombine.high %v685, %v405
    %v770 = vunpack.c.l.s4 1983009808
    %v771 = vunpack.c.0.s8 %v770
    %v772 = vlaneseq
    %v773 = vshrl.u32 %v772, 7
    %v774 = vsub.s32 %v771, %v773
    %v775 = vrot.slane %v685, %v774
    %v777 = vunpack.c.l.s4 1983009808
    %v778 = vunpack.c.0.s8 %v777
    %v779 = vlaneseq
    %v780 = vshrl.u32 %v779, 7
    %v781 = vsub.s32 %v778, %v780
    %v782 = vrot.slane %v768, %v781
    %v783 = vcombine.low %v760, %v775
    %v784 = vcombine.high %v760, %v775
    %v786 = vunpack.c.l.s4 1934713408
    %v787 = vunpack.c.0.s8 %v786
    %v788 = vlaneseq
    %v789 = vshrl.u32 %v788, 7
    %v790 = vsub.s32 %v787, %v789
    %v791 = vrot.slane %v783, %v790
    %v793 = vunpack.c.l.s4 1934713408
    %v794 = vunpack.c.0.s8 %v793
    %v795 = vlaneseq
    %v796 = vshrl.u32 %v795, 7
    %v797 = vsub.s32 %v794, %v796
    %v798 = vrot.slane %v784, %v797
    %v799 = vcombine.low %v767, %v782
    %v800 = vcombine.high %v767, %v782
    %v802 = vunpack.c.l.s4 1934713408
    %v803 = vunpack.c.0.s8 %v802
    %v804 = vlaneseq
    %v805 = vshrl.u32 %v804, 7
    %v806 = vsub.s32 %v803, %v805
    %v807 = vrot.slane %v799, %v806
    %v809 = vunpack.c.l.s4 1934713408
    %v810 = vunpack.c.0.s8 %v809
    %v811 = vlaneseq
    %v812 = vshrl.u32 %v811, 7
    %v813 = vsub.s32 %v810, %v812
    %v814 = vrot.slane %v800, %v813
    %v815 = vcombine.high %v791, 0
    %v816 = vcombine.high %v798, 0
    %v817 = vcombine.high %v807, 0
    %v818 = vcombine.high %v814, 0
    %v819 = vcombine.low %v725, %v741
    %v821 = vunpack.c.l.s4 1983009808
    %v822 = vunpack.c.0.s8 %v821
    %v823 = vlaneseq
    %v824 = vshrl.u32 %v823, 7
    %v825 = vsub.s32 %v822, %v824
    %v826 = vrot.slane %v819, %v825
    %v827 = vcombine.low %v732, %v748
    %v829 = vunpack.c.l.s4 1983009808
    %v830 = vunpack.c.0.s8 %v829
    %v831 = vlaneseq
    %v832 = vshrl.u32 %v831, 7
    %v833 = vsub.s32 %v830, %v832
    %v834 = vrot.slane %v827, %v833
    %v835 = vcombine.low %v826, %v834
    %v837 = vunpack.c.l.s4 1934713408
    %v838 = vunpack.c.0.s8 %v837
    %v839 = vlaneseq
    %v840 = vshrl.u32 %v839, 7
    %v841 = vsub.s32 %v838, %v840
    %v842 = vrot.slane %v835, %v841
    %v843 = vcombine.high %v842, 0
    %v844 = vcombine.low %v749, %v751
    %v846 = vunpack.c.l.s4 1983009808
    %v847 = vunpack.c.0.s8 %v846
    %v848 = vlaneseq
    %v849 = vshrl.u32 %v848, 7
    %v850 = vsub.s32 %v847, %v849
    %v851 = vrot.slane %v844, %v850
    %v852 = vcombine.low %v750, %v752
    %v854 = vunpack.c.l.s4 1983009808
    %v855 = vunpack.c.0.s8 %v854
    %v856 = vlaneseq
    %v857 = vshrl.u32 %v856, 7
    %v858 = vsub.s32 %v855, %v857
    %v859 = vrot.slane %v852, %v858
    %v860 = vcombine.low %v851, %v859
    %v862 = vunpack.c.l.s4 1934713408
    %v863 = vunpack.c.0.s8 %v862
    %v864 = vlaneseq
    %v865 = vshrl.u32 %v864, 7
    %v866 = vsub.s32 %v863, %v865
    %v867 = vrot.slane %v860, %v866
    %v868 = vcombine.high %v867, 0
    %v869 = vcombine.low %v791, %v807
    %v871 = vunpack.c.l.s4 1983009808
    %v872 = vunpack.c.0.s8 %v871
    %v873 = vlaneseq
    %v874 = vshrl.u32 %v873, 7
    %v875 = vsub.s32 %v872, %v874
    %v876 = vrot.slane %v869, %v875
    %v877 = vcombine.low %v798, %v814
    %v879 = vunpack.c.l.s4 1983009808
    %v880 = vunpack.c.0.s8 %v879
    %v881 = vlaneseq
    %v882 = vshrl.u32 %v881, 7
    %v883 = vsub.s32 %v880, %v882
    %v884 = vrot.slane %v877, %v883
    %v885 = vcombine.low %v876, %v884
    %v887 = vunpack.c.l.s4 1934713408
    %v888 = vunpack.c.0.s8 %v887
    %v889 = vlaneseq
    %v890 = vshrl.u32 %v889, 7
    %v891 = vsub.s32 %v888, %v890
    %v892 = vrot.slane %v885, %v891
    %v893 = vcombine.high %v892, 0
    %v894 = vcombine.low %v815, %v817
    %v896 = vunpack.c.l.s4 1983009808
    %v897 = vunpack.c.0.s8 %v896
    %v898 = vlaneseq
    %v899 = vshrl.u32 %v898, 7
    %v900 = vsub.s32 %v897, %v899
    %v901 = vrot.slane %v894, %v900
    %v902 = vcombine.low %v816, %v818
    %v904 = vunpack.c.l.s4 1983009808
    %v905 = vunpack.c.0.s8 %v904
    %v906 = vlaneseq
    %v907 = vshrl.u32 %v906, 7
    %v908 = vsub.s32 %v905, %v907
    %v909 = vrot.slane %v902, %v908
    %v910 = vcombine.low %v901, %v909
    %v912 = vunpack.c.l.s4 1934713408
    %v913 = vunpack.c.0.s8 %v912
    %v914 = vlaneseq
    %v915 = vshrl.u32 %v914, 7
    %v916 = vsub.s32 %v913, %v915
    %v917 = vrot.slane %v910, %v916
    %v918 = vcombine.high %v917, 0
    %v921 = vpack.i.b16 %v867, %v842
    %v922 = vshrl.u32 %v842, 16
    %v923 = vshrl.u32 %v867, 16
    %v924 = vpack.i.b16 %v923, %v922
    %v927 = vpack.i.b16 %v868, %v843
    %v928 = vshrl.u32 %v843, 16
    %v929 = vshrl.u32 %v868, 16
    %v930 = vpack.i.b16 %v929, %v928
    %v933 = vpack.i.b16 %v917, %v892
    %v934 = vshrl.u32 %v892, 16
    %v935 = vshrl.u32 %v917, 16
    %v936 = vpack.i.b16 %v935, %v934
    %v939 = vpack.i.b16 %v918, %v893
    %v940 = vshrl.u32 %v893, 16
    %v941 = vshrl.u32 %v918, 16
    %v942 = vpack.i.b16 %v941, %v940
    %v943 = vpack.c.bf16 %v374, %v371
    %945 = vrot.lane.b32.xlu0 %v943, 96
    %v946 = vpop.permute.xlu0 %945
    %947 = vrot.lane.b32.xlu0 %v943, 64
    %v948 = vpop.permute.xlu0 %947
    %949 = vrot.lane.b32.xlu0 %v943, 32
    %v950 = vpop.permute.xlu0 %949
    %v953 = vpack.i.b16 %v946, %v943
    %v955 = vshrl.u32 %v943, 16
    %v956 = vshrl.u32 %v946, 16
    %v957 = vpack.i.b16 %v956, %v955
    %v961 = vpack.i.b16 %v950, %v948
    %v963 = vshrl.u32 %v948, 16
    %v964 = vshrl.u32 %v950, 16
    %v965 = vpack.i.b16 %v964, %v963
    %v967 = vcombine.high %v953, %v402
    %v969 = vunpack.c.l.s4 1983009808
    %v970 = vunpack.c.0.s8 %v969
    %v971 = vlaneseq
    %v972 = vshrl.u32 %v971, 7
    %v973 = vsub.s32 %v970, %v972
    %v974 = vrot.slane %v953, %v973
    %v976 = vunpack.c.l.s4 1983009808
    %v977 = vunpack.c.0.s8 %v976
    %v978 = vlaneseq
    %v979 = vshrl.u32 %v978, 7
    %v980 = vsub.s32 %v977, %v979
    %v981 = vrot.slane %v967, %v980
    %v982 = vcombine.high %v961, %v402
    %v984 = vunpack.c.l.s4 1983009808
    %v985 = vunpack.c.0.s8 %v984
    %v986 = vlaneseq
    %v987 = vshrl.u32 %v986, 7
    %v988 = vsub.s32 %v985, %v987
    %v989 = vrot.slane %v961, %v988
    %v991 = vunpack.c.l.s4 1983009808
    %v992 = vunpack.c.0.s8 %v991
    %v993 = vlaneseq
    %v994 = vshrl.u32 %v993, 7
    %v995 = vsub.s32 %v992, %v994
    %v996 = vrot.slane %v982, %v995
    %v997 = vcombine.low %v974, %v989
    %v998 = vcombine.high %v974, %v989
    %v1000 = vunpack.c.l.s4 1934713408
    %v1001 = vunpack.c.0.s8 %v1000
    %v1002 = vlaneseq
    %v1003 = vshrl.u32 %v1002, 7
    %v1004 = vsub.s32 %v1001, %v1003
    %v1005 = vrot.slane %v997, %v1004
    %v1007 = vunpack.c.l.s4 1934713408
    %v1008 = vunpack.c.0.s8 %v1007
    %v1009 = vlaneseq
    %v1010 = vshrl.u32 %v1009, 7
    %v1011 = vsub.s32 %v1008, %v1010
    %v1012 = vrot.slane %v998, %v1011
    %v1013 = vcombine.low %v981, %v996
    %v1014 = vcombine.high %v981, %v996
    %v1016 = vunpack.c.l.s4 1934713408
    %v1017 = vunpack.c.0.s8 %v1016
    %v1018 = vlaneseq
    %v1019 = vshrl.u32 %v1018, 7
    %v1020 = vsub.s32 %v1017, %v1019
    %v1021 = vrot.slane %v1013, %v1020
    %v1023 = vunpack.c.l.s4 1934713408
    %v1024 = vunpack.c.0.s8 %v1023
    %v1025 = vlaneseq
    %v1026 = vshrl.u32 %v1025, 7
    %v1027 = vsub.s32 %v1024, %v1026
    %v1028 = vrot.slane %v1014, %v1027
    %v1029 = vcombine.high %v1005, 0
    %v1030 = vcombine.high %v1012, 0
    %v1031 = vcombine.high %v1021, 0
    %v1032 = vcombine.high %v1028, 0
    %v1033 = vcombine.high %v957, %v405
    %v1035 = vunpack.c.l.s4 1983009808
    %v1036 = vunpack.c.0.s8 %v1035
    %v1037 = vlaneseq
    %v1038 = vshrl.u32 %v1037, 7
    %v1039 = vsub.s32 %v1036, %v1038
    %v1040 = vrot.slane %v957, %v1039
    %v1042 = vunpack.c.l.s4 1983009808
    %v1043 = vunpack.c.0.s8 %v1042
    %v1044 = vlaneseq
    %v1045 = vshrl.u32 %v1044, 7
    %v1046 = vsub.s32 %v1043, %v1045
    %v1047 = vrot.slane %v1033, %v1046
    %v1048 = vcombine.high %v965, %v405
    %v1050 = vunpack.c.l.s4 1983009808
    %v1051 = vunpack.c.0.s8 %v1050
    %v1052 = vlaneseq
    %v1053 = vshrl.u32 %v1052, 7
    %v1054 = vsub.s32 %v1051, %v1053
    %v1055 = vrot.slane %v965, %v1054
    %v1057 = vunpack.c.l.s4 1983009808
    %v1058 = vunpack.c.0.s8 %v1057
    %v1059 = vlaneseq
    %v1060 = vshrl.u32 %v1059, 7
    %v1061 = vsub.s32 %v1058, %v1060
    %v1062 = vrot.slane %v1048, %v1061
    %v1063 = vcombine.low %v1040, %v1055
    %v1064 = vcombine.high %v1040, %v1055
    %v1066 = vunpack.c.l.s4 1934713408
    %v1067 = vunpack.c.0.s8 %v1066
    %v1068 = vlaneseq
    %v1069 = vshrl.u32 %v1068, 7
    %v1070 = vsub.s32 %v1067, %v1069
    %v1071 = vrot.slane %v1063, %v1070
    %v1073 = vunpack.c.l.s4 1934713408
    %v1074 = vunpack.c.0.s8 %v1073
    %v1075 = vlaneseq
    %v1076 = vshrl.u32 %v1075, 7
    %v1077 = vsub.s32 %v1074, %v1076
    %v1078 = vrot.slane %v1064, %v1077
    %v1079 = vcombine.low %v1047, %v1062
    %v1080 = vcombine.high %v1047, %v1062
    %v1082 = vunpack.c.l.s4 1934713408
    %v1083 = vunpack.c.0.s8 %v1082
    %v1084 = vlaneseq
    %v1085 = vshrl.u32 %v1084, 7
    %v1086 = vsub.s32 %v1083, %v1085
    %v1087 = vrot.slane %v1079, %v1086
    %v1089 = vunpack.c.l.s4 1934713408
    %v1090 = vunpack.c.0.s8 %v1089
    %v1091 = vlaneseq
    %v1092 = vshrl.u32 %v1091, 7
    %v1093 = vsub.s32 %v1090, %v1092
    %v1094 = vrot.slane %v1080, %v1093
    %v1095 = vcombine.high %v1071, 0
    %v1096 = vcombine.high %v1078, 0
    %v1097 = vcombine.high %v1087, 0
    %v1098 = vcombine.high %v1094, 0
    %v1099 = vcombine.low %v1005, %v1021
    %v1101 = vunpack.c.l.s4 1983009808
    %v1102 = vunpack.c.0.s8 %v1101
    %v1103 = vlaneseq
    %v1104 = vshrl.u32 %v1103, 7
    %v1105 = vsub.s32 %v1102, %v1104
    %v1106 = vrot.slane %v1099, %v1105
    %v1107 = vcombine.low %v1012, %v1028
    %v1109 = vunpack.c.l.s4 1983009808
    %v1110 = vunpack.c.0.s8 %v1109
    %v1111 = vlaneseq
    %v1112 = vshrl.u32 %v1111, 7
    %v1113 = vsub.s32 %v1110, %v1112
    %v1114 = vrot.slane %v1107, %v1113
    %v1115 = vcombine.low %v1106, %v1114
    %v1117 = vunpack.c.l.s4 1934713408
    %v1118 = vunpack.c.0.s8 %v1117
    %v1119 = vlaneseq
    %v1120 = vshrl.u32 %v1119, 7
    %v1121 = vsub.s32 %v1118, %v1120
    %v1122 = vrot.slane %v1115, %v1121
    %v1123 = vcombine.high %v1122, 0
    %v1124 = vcombine.low %v1029, %v1031
    %v1126 = vunpack.c.l.s4 1983009808
    %v1127 = vunpack.c.0.s8 %v1126
    %v1128 = vlaneseq
    %v1129 = vshrl.u32 %v1128, 7
    %v1130 = vsub.s32 %v1127, %v1129
    %v1131 = vrot.slane %v1124, %v1130
    %v1132 = vcombine.low %v1030, %v1032
    %v1134 = vunpack.c.l.s4 1983009808
    %v1135 = vunpack.c.0.s8 %v1134
    %v1136 = vlaneseq
    %v1137 = vshrl.u32 %v1136, 7
    %v1138 = vsub.s32 %v1135, %v1137
    %v1139 = vrot.slane %v1132, %v1138
    %v1140 = vcombine.low %v1131, %v1139
    %v1142 = vunpack.c.l.s4 1934713408
    %v1143 = vunpack.c.0.s8 %v1142
    %v1144 = vlaneseq
    %v1145 = vshrl.u32 %v1144, 7
    %v1146 = vsub.s32 %v1143, %v1145
    %v1147 = vrot.slane %v1140, %v1146
    %v1148 = vcombine.high %v1147, 0
    %v1149 = vcombine.low %v1071, %v1087
    %v1151 = vunpack.c.l.s4 1983009808
    %v1152 = vunpack.c.0.s8 %v1151
    %v1153 = vlaneseq
    %v1154 = vshrl.u32 %v1153, 7
    %v1155 = vsub.s32 %v1152, %v1154
    %v1156 = vrot.slane %v1149, %v1155
    %v1157 = vcombine.low %v1078, %v1094
    %v1159 = vunpack.c.l.s4 1983009808
    %v1160 = vunpack.c.0.s8 %v1159
    %v1161 = vlaneseq
    %v1162 = vshrl.u32 %v1161, 7
    %v1163 = vsub.s32 %v1160, %v1162
    %v1164 = vrot.slane %v1157, %v1163
    %v1165 = vcombine.low %v1156, %v1164
    %v1167 = vunpack.c.l.s4 1934713408
    %v1168 = vunpack.c.0.s8 %v1167
    %v1169 = vlaneseq
    %v1170 = vshrl.u32 %v1169, 7
    %v1171 = vsub.s32 %v1168, %v1170
    %v1172 = vrot.slane %v1165, %v1171
    %v1173 = vcombine.high %v1172, 0
    %v1174 = vcombine.low %v1095, %v1097
    %v1176 = vunpack.c.l.s4 1983009808
    %v1177 = vunpack.c.0.s8 %v1176
    %v1178 = vlaneseq
    %v1179 = vshrl.u32 %v1178, 7
    %v1180 = vsub.s32 %v1177, %v1179
    %v1181 = vrot.slane %v1174, %v1180
    %v1182 = vcombine.low %v1096, %v1098
    %v1184 = vunpack.c.l.s4 1983009808
    %v1185 = vunpack.c.0.s8 %v1184
    %v1186 = vlaneseq
    %v1187 = vshrl.u32 %v1186, 7
    %v1188 = vsub.s32 %v1185, %v1187
    %v1189 = vrot.slane %v1182, %v1188
    %v1190 = vcombine.low %v1181, %v1189
    %v1192 = vunpack.c.l.s4 1934713408
    %v1193 = vunpack.c.0.s8 %v1192
    %v1194 = vlaneseq
    %v1195 = vshrl.u32 %v1194, 7
    %v1196 = vsub.s32 %v1193, %v1195
    %v1197 = vrot.slane %v1190, %v1196
    %v1198 = vcombine.high %v1197, 0
    %v1201 = vpack.i.b16 %v1147, %v1122
    %v1202 = vshrl.u32 %v1122, 16
    %v1203 = vshrl.u32 %v1147, 16
    %v1204 = vpack.i.b16 %v1203, %v1202
    %v1207 = vpack.i.b16 %v1148, %v1123
    %v1208 = vshrl.u32 %v1123, 16
    %v1209 = vshrl.u32 %v1148, 16
    %v1210 = vpack.i.b16 %v1209, %v1208
    %v1213 = vpack.i.b16 %v1197, %v1172
    %v1214 = vshrl.u32 %v1172, 16
    %v1215 = vshrl.u32 %v1197, 16
    %v1216 = vpack.i.b16 %v1215, %v1214
    %v1219 = vpack.i.b16 %v1198, %v1173
    %v1220 = vshrl.u32 %v1173, 16
    %v1221 = vshrl.u32 %v1198, 16
    %v1222 = vpack.i.b16 %v1221, %v1220
    %vm1223 = vcmask 261120
    %v1225 = vsel %vm1223, %v641, 0
    %v1228 = vsel %vm1223, %v921, 0
    %1230 = vmatprep.subr.bf16.mxu0 0
    %1231 = vmatpush1.bf16.xpose.msra.mxu0 0
    %1232 = vmatprep.subr.bf16.mxu0 0
    %1233 = vmatpush1.bf16.xpose.msra.mxu0 0
    %1234 = vmatprep.subr.bf16.mxu0 0
    %1235 = vmatpush1.bf16.xpose.msra.mxu0 0
    %1236 = vmatprep.subr.bf16.mxu0 0
    %1237 = vmatpush1.bf16.xpose.msra.mxu0 0
    %1238 = vmatprep.subr.bf16.mxu0 0
    %1239 = vmatpush1.bf16.xpose.msra.mxu0 0
    %1240 = vmatprep.subr.bf16.mxu0 0
    %1241 = vmatpush1.bf16.xpose.msra.mxu0 0
    %1242 = vmatprep.subr.bf16.mxu0 0
    %1243 = vmatpush1.bf16.xpose.msra.mxu0 0
    %1244 = vmatprep.subr.bf16.mxu0 0
    %1245 = vmatpush1.bf16.xpose.msra.mxu0 %v1228
    %1246 = vmatprep.subr.bf16.mxu0 0
    %1247 = vmatpush2.bf16.xpose.msra.mxu0 0
    %1248 = vmatprep.subr.bf16.mxu0 0
    %1249 = vmatpush2.bf16.xpose.msra.mxu0 0
    %1250 = vmatprep.subr.bf16.mxu0 0
    %1251 = vmatpush2.bf16.xpose.msra.mxu0 0
    %1252 = vmatprep.subr.bf16.mxu0 0
    %1253 = vmatpush2.bf16.xpose.msra.mxu0 0
    %1254 = vmatprep.subr.bf16.mxu0 0
    %1255 = vmatpush2.bf16.xpose.msra.mxu0 0
    %1256 = vmatprep.subr.bf16.mxu0 0
    %1257 = vmatpush2.bf16.xpose.msra.mxu0 0
    %1258 = vmatprep.subr.bf16.mxu0 0
    %1259 = vmatpush2.bf16.xpose.msra.mxu0 0
    %1260 = vmatprep.subr.bf16.mxu0 0
    %1261 = vmatpush2.bf16.xpose.msra.mxu0 0
    %1262 = vmatprep.mubr.bf16.mxu0 0
    %1263 = vmatmul.mubr.bf16.gmra.mxu0 %v1225
    %v1264 = vpop.f32.mrf.mxu0
    %v1265 = vadd.f32 0.0, %v1264
    %v1266 = vpop.f32.mrf.mxu0
    %v1267 = vpop.f32.mrf.mxu0
    %v1268 = vpop.f32.mrf.mxu0
    %1269 = vdwg.mxu0
    %v1271 = vsel %vm1223, %v644, 0
    %v1274 = vsel %vm1223, %v924, 0
    %1276 = vmatprep.subr.bf16.mxu0 0
    %1277 = vmatpush1.bf16.xpose.msra.mxu0 0
    %1278 = vmatprep.subr.bf16.mxu0 0
    %1279 = vmatpush1.bf16.xpose.msra.mxu0 0
    %1280 = vmatprep.subr.bf16.mxu0 0
    %1281 = vmatpush1.bf16.xpose.msra.mxu0 0
    %1282 = vmatprep.subr.bf16.mxu0 0
    %1283 = vmatpush1.bf16.xpose.msra.mxu0 0
    %1284 = vmatprep.subr.bf16.mxu0 0
    %1285 = vmatpush1.bf16.xpose.msra.mxu0 0
    %1286 = vmatprep.subr.bf16.mxu0 0
    %1287 = vmatpush1.bf16.xpose.msra.mxu0 0
    %1288 = vmatprep.subr.bf16.mxu0 0
    %1289 = vmatpush1.bf16.xpose.msra.mxu0 0
    %1290 = vmatprep.subr.bf16.mxu0 0
    %1291 = vmatpush1.bf16.xpose.msra.mxu0 %v1274
    %1292 = vmatprep.subr.bf16.mxu0 0
    %1293 = vmatpush2.bf16.xpose.msra.mxu0 0
    %1294 = vmatprep.subr.bf16.mxu0 0
    %1295 = vmatpush2.bf16.xpose.msra.mxu0 0
    %1296 = vmatprep.subr.bf16.mxu0 0
    %1297 = vmatpush2.bf16.xpose.msra.mxu0 0
    %1298 = vmatprep.subr.bf16.mxu0 0
    %1299 = vmatpush2.bf16.xpose.msra.mxu0 0
    %1300 = vmatprep.subr.bf16.mxu0 0
    %1301 = vmatpush2.bf16.xpose.msra.mxu0 0
    %1302 = vmatprep.subr.bf16.mxu0 0
    %1303 = vmatpush2.bf16.xpose.msra.mxu0 0
    %1304 = vmatprep.subr.bf16.mxu0 0
    %1305 = vmatpush2.bf16.xpose.msra.mxu0 0
    %1306 = vmatprep.subr.bf16.mxu0 0
    %1307 = vmatpush2.bf16.xpose.msra.mxu0 0
    %1308 = vmatprep.mubr.bf16.mxu0 0
    %1309 = vmatmul.mubr.bf16.gmra.mxu0 %v1271
    %v1310 = vpop.f32.mrf.mxu0
    %v1311 = vadd.f32 0.0, %v1310
    %v1312 = vpop.f32.mrf.mxu0
    %v1313 = vpop.f32.mrf.mxu0
    %v1314 = vpop.f32.mrf.mxu0
    %1315 = vdwg.mxu0
    %v1317 = vsel %vm1223, %v647, 0
    %v1320 = vsel %vm1223, %v927, 0
    %1322 = vmatprep.subr.bf16.mxu0 0
    %1323 = vmatpush1.bf16.xpose.msra.mxu0 0
    %1324 = vmatprep.subr.bf16.mxu0 0
    %1325 = vmatpush1.bf16.xpose.msra.mxu0 0
    %1326 = vmatprep.subr.bf16.mxu0 0
    %1327 = vmatpush1.bf16.xpose.msra.mxu0 0
    %1328 = vmatprep.subr.bf16.mxu0 0
    %1329 = vmatpush1.bf16.xpose.msra.mxu0 0
    %1330 = vmatprep.subr.bf16.mxu0 0
    %1331 = vmatpush1.bf16.xpose.msra.mxu0 0
    %1332 = vmatprep.subr.bf16.mxu0 0
    %1333 = vmatpush1.bf16.xpose.msra.mxu0 0
    %1334 = vmatprep.subr.bf16.mxu0 0
    %1335 = vmatpush1.bf16.xpose.msra.mxu0 0
    %1336 = vmatprep.subr.bf16.mxu0 0
    %1337 = vmatpush1.bf16.xpose.msra.mxu0 %v1320
    %1338 = vmatprep.subr.bf16.mxu0 0
    %1339 = vmatpush2.bf16.xpose.msra.mxu0 0
    %1340 = vmatprep.subr.bf16.mxu0 0
    %1341 = vmatpush2.bf16.xpose.msra.mxu0 0
    %1342 = vmatprep.subr.bf16.mxu0 0
    %1343 = vmatpush2.bf16.xpose.msra.mxu0 0
    %1344 = vmatprep.subr.bf16.mxu0 0
    %1345 = vmatpush2.bf16.xpose.msra.mxu0 0
    %1346 = vmatprep.subr.bf16.mxu0 0
    %1347 = vmatpush2.bf16.xpose.msra.mxu0 0
    %1348 = vmatprep.subr.bf16.mxu0 0
    %1349 = vmatpush2.bf16.xpose.msra.mxu0 0
    %1350 = vmatprep.subr.bf16.mxu0 0
    %1351 = vmatpush2.bf16.xpose.msra.mxu0 0
    %1352 = vmatprep.subr.bf16.mxu0 0
    %1353 = vmatpush2.bf16.xpose.msra.mxu0 0
    %1354 = vmatprep.mubr.bf16.mxu0 0
    %1355 = vmatmul.mubr.bf16.gmra.mxu0 %v1317
    %v1356 = vpop.f32.mrf.mxu0
    %v1357 = vadd.f32 0.0, %v1356
    %v1358 = vpop.f32.mrf.mxu0
    %v1359 = vpop.f32.mrf.mxu0
    %v1360 = vpop.f32.mrf.mxu0
    %1361 = vdwg.mxu0
    %v1363 = vsel %vm1223, %v650, 0
    %v1366 = vsel %vm1223, %v930, 0
    %1368 = vmatprep.subr.bf16.mxu0 0
    %1369 = vmatpush1.bf16.xpose.msra.mxu0 0
    %1370 = vmatprep.subr.bf16.mxu0 0
    %1371 = vmatpush1.bf16.xpose.msra.mxu0 0
    %1372 = vmatprep.subr.bf16.mxu0 0
    %1373 = vmatpush1.bf16.xpose.msra.mxu0 0
    %1374 = vmatprep.subr.bf16.mxu0 0
    %1375 = vmatpush1.bf16.xpose.msra.mxu0 0
    %1376 = vmatprep.subr.bf16.mxu0 0
    %1377 = vmatpush1.bf16.xpose.msra.mxu0 0
    %1378 = vmatprep.subr.bf16.mxu0 0
    %1379 = vmatpush1.bf16.xpose.msra.mxu0 0
    %1380 = vmatprep.subr.bf16.mxu0 0
    %1381 = vmatpush1.bf16.xpose.msra.mxu0 0
    %1382 = vmatprep.subr.bf16.mxu0 0
    %1383 = vmatpush1.bf16.xpose.msra.mxu0 %v1366
    %1384 = vmatprep.subr.bf16.mxu0 0
    %1385 = vmatpush2.bf16.xpose.msra.mxu0 0
    %1386 = vmatprep.subr.bf16.mxu0 0
    %1387 = vmatpush2.bf16.xpose.msra.mxu0 0
    %1388 = vmatprep.subr.bf16.mxu0 0
    %1389 = vmatpush2.bf16.xpose.msra.mxu0 0
    %1390 = vmatprep.subr.bf16.mxu0 0
    %1391 = vmatpush2.bf16.xpose.msra.mxu0 0
    %1392 = vmatprep.subr.bf16.mxu0 0
    %1393 = vmatpush2.bf16.xpose.msra.mxu0 0
    %1394 = vmatprep.subr.bf16.mxu0 0
    %1395 = vmatpush2.bf16.xpose.msra.mxu0 0
    %1396 = vmatprep.subr.bf16.mxu0 0
    %1397 = vmatpush2.bf16.xpose.msra.mxu0 0
    %1398 = vmatprep.subr.bf16.mxu0 0
    %1399 = vmatpush2.bf16.xpose.msra.mxu0 0
    %1400 = vmatprep.mubr.bf16.mxu0 0
    %1401 = vmatmul.mubr.bf16.gmra.mxu0 %v1363
    %v1402 = vpop.f32.mrf.mxu0
    %v1403 = vadd.f32 0.0, %v1402
    %v1404 = vpop.f32.mrf.mxu0
    %v1405 = vpop.f32.mrf.mxu0
    %v1406 = vpop.f32.mrf.mxu0
    %1407 = vdwg.mxu0
    %v1409 = vsel %vm1223, %v653, 0
    %v1412 = vsel %vm1223, %v933, 0
    %1414 = vmatprep.subr.bf16.mxu0 0
    %1415 = vmatpush1.bf16.xpose.msra.mxu0 0
    %1416 = vmatprep.subr.bf16.mxu0 0
    %1417 = vmatpush1.bf16.xpose.msra.mxu0 0
    %1418 = vmatprep.subr.bf16.mxu0 0
    %1419 = vmatpush1.bf16.xpose.msra.mxu0 0
    %1420 = vmatprep.subr.bf16.mxu0 0
    %1421 = vmatpush1.bf16.xpose.msra.mxu0 0
    %1422 = vmatprep.subr.bf16.mxu0 0
    %1423 = vmatpush1.bf16.xpose.msra.mxu0 0
    %1424 = vmatprep.subr.bf16.mxu0 0
    %1425 = vmatpush1.bf16.xpose.msra.mxu0 0
    %1426 = vmatprep.subr.bf16.mxu0 0
    %1427 = vmatpush1.bf16.xpose.msra.mxu0 0
    %1428 = vmatprep.subr.bf16.mxu0 0
    %1429 = vmatpush1.bf16.xpose.msra.mxu0 %v1412
    %1430 = vmatprep.subr.bf16.mxu0 0
    %1431 = vmatpush2.bf16.xpose.msra.mxu0 0
    %1432 = vmatprep.subr.bf16.mxu0 0
    %1433 = vmatpush2.bf16.xpose.msra.mxu0 0
    %1434 = vmatprep.subr.bf16.mxu0 0
    %1435 = vmatpush2.bf16.xpose.msra.mxu0 0
    %1436 = vmatprep.subr.bf16.mxu0 0
    %1437 = vmatpush2.bf16.xpose.msra.mxu0 0
    %1438 = vmatprep.subr.bf16.mxu0 0
    %1439 = vmatpush2.bf16.xpose.msra.mxu0 0
    %1440 = vmatprep.subr.bf16.mxu0 0
    %1441 = vmatpush2.bf16.xpose.msra.mxu0 0
    %1442 = vmatprep.subr.bf16.mxu0 0
    %1443 = vmatpush2.bf16.xpose.msra.mxu0 0
    %1444 = vmatprep.subr.bf16.mxu0 0
    %1445 = vmatpush2.bf16.xpose.msra.mxu0 0
    %1446 = vmatprep.mubr.bf16.mxu0 0
    %1447 = vmatmul.mubr.bf16.gmra.mxu0 %v1409
    %v1448 = vpop.f32.mrf.mxu0
    %v1449 = vadd.f32 0.0, %v1448
    %v1450 = vpop.f32.mrf.mxu0
    %v1451 = vpop.f32.mrf.mxu0
    %v1452 = vpop.f32.mrf.mxu0
    %1453 = vdwg.mxu0
    %v1455 = vsel %vm1223, %v656, 0
    %v1458 = vsel %vm1223, %v936, 0
    %1460 = vmatprep.subr.bf16.mxu0 0
    %1461 = vmatpush1.bf16.xpose.msra.mxu0 0
    %1462 = vmatprep.subr.bf16.mxu0 0
    %1463 = vmatpush1.bf16.xpose.msra.mxu0 0
    %1464 = vmatprep.subr.bf16.mxu0 0
    %1465 = vmatpush1.bf16.xpose.msra.mxu0 0
    %1466 = vmatprep.subr.bf16.mxu0 0
    %1467 = vmatpush1.bf16.xpose.msra.mxu0 0
    %1468 = vmatprep.subr.bf16.mxu0 0
    %1469 = vmatpush1.bf16.xpose.msra.mxu0 0
    %1470 = vmatprep.subr.bf16.mxu0 0
    %1471 = vmatpush1.bf16.xpose.msra.mxu0 0
    %1472 = vmatprep.subr.bf16.mxu0 0
    %1473 = vmatpush1.bf16.xpose.msra.mxu0 0
    %1474 = vmatprep.subr.bf16.mxu0 0
    %1475 = vmatpush1.bf16.xpose.msra.mxu0 %v1458
    %1476 = vmatprep.subr.bf16.mxu0 0
    %1477 = vmatpush2.bf16.xpose.msra.mxu0 0
    %1478 = vmatprep.subr.bf16.mxu0 0
    %1479 = vmatpush2.bf16.xpose.msra.mxu0 0
    %1480 = vmatprep.subr.bf16.mxu0 0
    %1481 = vmatpush2.bf16.xpose.msra.mxu0 0
    %1482 = vmatprep.subr.bf16.mxu0 0
    %1483 = vmatpush2.bf16.xpose.msra.mxu0 0
    %1484 = vmatprep.subr.bf16.mxu0 0
    %1485 = vmatpush2.bf16.xpose.msra.mxu0 0
    %1486 = vmatprep.subr.bf16.mxu0 0
    %1487 = vmatpush2.bf16.xpose.msra.mxu0 0
    %1488 = vmatprep.subr.bf16.mxu0 0
    %1489 = vmatpush2.bf16.xpose.msra.mxu0 0
    %1490 = vmatprep.subr.bf16.mxu0 0
    %1491 = vmatpush2.bf16.xpose.msra.mxu0 0
    %1492 = vmatprep.mubr.bf16.mxu0 0
    %1493 = vmatmul.mubr.bf16.gmra.mxu0 %v1455
    %v1494 = vpop.f32.mrf.mxu0
    %v1495 = vadd.f32 0.0, %v1494
    %v1496 = vpop.f32.mrf.mxu0
    %v1497 = vpop.f32.mrf.mxu0
    %v1498 = vpop.f32.mrf.mxu0
    %1499 = vdwg.mxu0
    %v1501 = vsel %vm1223, %v659, 0
    %v1504 = vsel %vm1223, %v939, 0
    %1506 = vmatprep.subr.bf16.mxu0 0
    %1507 = vmatpush1.bf16.xpose.msra.mxu0 0
    %1508 = vmatprep.subr.bf16.mxu0 0
    %1509 = vmatpush1.bf16.xpose.msra.mxu0 0
    %1510 = vmatprep.subr.bf16.mxu0 0
    %1511 = vmatpush1.bf16.xpose.msra.mxu0 0
    %1512 = vmatprep.subr.bf16.mxu0 0
    %1513 = vmatpush1.bf16.xpose.msra.mxu0 0
    %1514 = vmatprep.subr.bf16.mxu0 0
    %1515 = vmatpush1.bf16.xpose.msra.mxu0 0
    %1516 = vmatprep.subr.bf16.mxu0 0
    %1517 = vmatpush1.bf16.xpose.msra.mxu0 0
    %1518 = vmatprep.subr.bf16.mxu0 0
    %1519 = vmatpush1.bf16.xpose.msra.mxu0 0
    %1520 = vmatprep.subr.bf16.mxu0 0
    %1521 = vmatpush1.bf16.xpose.msra.mxu0 %v1504
    %1522 = vmatprep.subr.bf16.mxu0 0
    %1523 = vmatpush2.bf16.xpose.msra.mxu0 0
    %1524 = vmatprep.subr.bf16.mxu0 0
    %1525 = vmatpush2.bf16.xpose.msra.mxu0 0
    %1526 = vmatprep.subr.bf16.mxu0 0
    %1527 = vmatpush2.bf16.xpose.msra.mxu0 0
    %1528 = vmatprep.subr.bf16.mxu0 0
    %1529 = vmatpush2.bf16.xpose.msra.mxu0 0
    %1530 = vmatprep.subr.bf16.mxu0 0
    %1531 = vmatpush2.bf16.xpose.msra.mxu0 0
    %1532 = vmatprep.subr.bf16.mxu0 0
    %1533 = vmatpush2.bf16.xpose.msra.mxu0 0
    %1534 = vmatprep.subr.bf16.mxu0 0
    %1535 = vmatpush2.bf16.xpose.msra.mxu0 0
    %1536 = vmatprep.subr.bf16.mxu0 0
    %1537 = vmatpush2.bf16.xpose.msra.mxu0 0
    %1538 = vmatprep.mubr.bf16.mxu0 0
    %1539 = vmatmul.mubr.bf16.gmra.mxu0 %v1501
    %v1540 = vpop.f32.mrf.mxu0
    %v1541 = vadd.f32 0.0, %v1540
    %v1542 = vpop.f32.mrf.mxu0
    %v1543 = vpop.f32.mrf.mxu0
    %v1544 = vpop.f32.mrf.mxu0
    %1545 = vdwg.mxu0
    %v1547 = vsel %vm1223, %v662, 0
    %v1550 = vsel %vm1223, %v942, 0
    %1552 = vmatprep.subr.bf16.mxu0 0
    %1553 = vmatpush1.bf16.xpose.msra.mxu0 0
    %1554 = vmatprep.subr.bf16.mxu0 0
    %1555 = vmatpush1.bf16.xpose.msra.mxu0 0
    %1556 = vmatprep.subr.bf16.mxu0 0
    %1557 = vmatpush1.bf16.xpose.msra.mxu0 0
    %1558 = vmatprep.subr.bf16.mxu0 0
    %1559 = vmatpush1.bf16.xpose.msra.mxu0 0
    %1560 = vmatprep.subr.bf16.mxu0 0
    %1561 = vmatpush1.bf16.xpose.msra.mxu0 0
    %1562 = vmatprep.subr.bf16.mxu0 0
    %1563 = vmatpush1.bf16.xpose.msra.mxu0 0
    %1564 = vmatprep.subr.bf16.mxu0 0
    %1565 = vmatpush1.bf16.xpose.msra.mxu0 0
    %1566 = vmatprep.subr.bf16.mxu0 0
    %1567 = vmatpush1.bf16.xpose.msra.mxu0 %v1550
    %1568 = vmatprep.subr.bf16.mxu0 0
    %1569 = vmatpush2.bf16.xpose.msra.mxu0 0
    %1570 = vmatprep.subr.bf16.mxu0 0
    %1571 = vmatpush2.bf16.xpose.msra.mxu0 0
    %1572 = vmatprep.subr.bf16.mxu0 0
    %1573 = vmatpush2.bf16.xpose.msra.mxu0 0
    %1574 = vmatprep.subr.bf16.mxu0 0
    %1575 = vmatpush2.bf16.xpose.msra.mxu0 0
    %1576 = vmatprep.subr.bf16.mxu0 0
    %1577 = vmatpush2.bf16.xpose.msra.mxu0 0
    %1578 = vmatprep.subr.bf16.mxu0 0
    %1579 = vmatpush2.bf16.xpose.msra.mxu0 0
    %1580 = vmatprep.subr.bf16.mxu0 0
    %1581 = vmatpush2.bf16.xpose.msra.mxu0 0
    %1582 = vmatprep.subr.bf16.mxu0 0
    %1583 = vmatpush2.bf16.xpose.msra.mxu0 0
    %1584 = vmatprep.mubr.bf16.mxu0 0
    %1585 = vmatmul.mubr.bf16.gmra.mxu0 %v1547
    %v1586 = vpop.f32.mrf.mxu0
    %v1587 = vadd.f32 0.0, %v1586
    %v1588 = vpop.f32.mrf.mxu0
    %v1589 = vpop.f32.mrf.mxu0
    %v1590 = vpop.f32.mrf.mxu0
    %1591 = vdwg.mxu0
    %vm1592 = vcmask 64512
    %v1593 = vsel %vm1592, %v1265, -inf
    %1594 = vmax.xlane.f32.xlu0 %v1593
    %v1595 = vpop.xlane.xlu0 %1594
    %v1596 = vsel %vm1592, %v1311, -inf
    %1597 = vmax.xlane.f32.xlu0 %v1596
    %v1598 = vpop.xlane.xlu0 %1597
    %v1599 = vsel %vm1592, %v1357, -inf
    %1600 = vmax.xlane.f32.xlu0 %v1599
    %v1601 = vpop.xlane.xlu0 %1600
    %v1602 = vsel %vm1592, %v1403, -inf
    %1603 = vmax.xlane.f32.xlu0 %v1602
    %v1604 = vpop.xlane.xlu0 %1603
    %v1605 = vsel %vm1592, %v1449, -inf
    %1606 = vmax.xlane.f32.xlu0 %v1605
    %v1607 = vpop.xlane.xlu0 %1606
    %v1608 = vsel %vm1592, %v1495, -inf
    %1609 = vmax.xlane.f32.xlu0 %v1608
    %v1610 = vpop.xlane.xlu0 %1609
    %v1611 = vsel %vm1592, %v1541, -inf
    %1612 = vmax.xlane.f32.xlu0 %v1611
    %v1613 = vpop.xlane.xlu0 %1612
    %v1614 = vsel %vm1592, %v1587, -inf
    %1615 = vmax.xlane.f32.xlu0 %v1614
    %v1616 = vpop.xlane.xlu0 %1615
    %v1617 = vsub.f32 %v1265, %v1595
    %v1618 = vsub.f32 %v1311, %v1598
    %v1619 = vsub.f32 %v1357, %v1601
    %v1620 = vsub.f32 %v1403, %v1604
    %v1621 = vsub.f32 %v1449, %v1607
    %v1622 = vsub.f32 %v1495, %v1610
    %v1623 = vsub.f32 %v1541, %v1613
    %v1624 = vsub.f32 %v1587, %v1616
    %v1625 = vmul.f32 %v1617, 1.442695
    %v1626 = vpow.pop %v1625
    %v1627 = vmul.f32 %v1618, 1.442695
    %v1628 = vpow.pop %v1627
    %v1629 = vmul.f32 %v1619, 1.442695
    %v1630 = vpow.pop %v1629
    %v1631 = vmul.f32 %v1620, 1.442695
    %v1632 = vpow.pop %v1631
    %v1633 = vmul.f32 %v1621, 1.442695
    %v1634 = vpow.pop %v1633
    %v1635 = vmul.f32 %v1622, 1.442695
    %v1636 = vpow.pop %v1635
    %v1637 = vmul.f32 %v1623, 1.442695
    %v1638 = vpow.pop %v1637
    %v1639 = vmul.f32 %v1624, 1.442695
    %v1640 = vpow.pop %v1639
    %v1641 = vsel %vm1592, %v1626, 0.0
    %1642 = vadd.xlane.f32.xlu0 %v1641
    %v1643 = vpop.xlane.xlu0 %1642
    %v1644 = vsel %vm1592, %v1628, 0.0
    %1645 = vadd.xlane.f32.xlu0 %v1644
    %v1646 = vpop.xlane.xlu0 %1645
    %v1647 = vsel %vm1592, %v1630, 0.0
    %1648 = vadd.xlane.f32.xlu0 %v1647
    %v1649 = vpop.xlane.xlu0 %1648
    %v1650 = vsel %vm1592, %v1632, 0.0
    %1651 = vadd.xlane.f32.xlu0 %v1650
    %v1652 = vpop.xlane.xlu0 %1651
    %v1653 = vsel %vm1592, %v1634, 0.0
    %1654 = vadd.xlane.f32.xlu0 %v1653
    %v1655 = vpop.xlane.xlu0 %1654
    %v1656 = vsel %vm1592, %v1636, 0.0
    %1657 = vadd.xlane.f32.xlu0 %v1656
    %v1658 = vpop.xlane.xlu0 %1657
    %v1659 = vsel %vm1592, %v1638, 0.0
    %1660 = vadd.xlane.f32.xlu0 %v1659
    %v1661 = vpop.xlane.xlu0 %1660
    %v1662 = vsel %vm1592, %v1640, 0.0
    %1663 = vadd.xlane.f32.xlu0 %v1662
    %v1664 = vpop.xlane.xlu0 %1663
    %v1665 = vrcp.pop %v1643
    %v1666 = vrcp.pop %v1646
    %v1667 = vrcp.pop %v1649
    %v1668 = vrcp.pop %v1652
    %v1669 = vrcp.pop %v1655
    %v1670 = vrcp.pop %v1658
    %v1671 = vrcp.pop %v1661
    %v1672 = vrcp.pop %v1664
    %v1673 = vmul.f32 %v1626, %v1665
    %v1674 = vmul.f32 %v1628, %v1666
    %v1675 = vmul.f32 %v1630, %v1667
    %v1676 = vmul.f32 %v1632, %v1668
    %v1677 = vmul.f32 %v1634, %v1669
    %v1678 = vmul.f32 %v1636, %v1670
    %v1679 = vmul.f32 %v1638, %v1671
    %v1680 = vmul.f32 %v1640, %v1672
    %v1681 = vpack.c.bf16 %v1673, %v1673
    %v1682 = vpack.c.bf16 %v1674, %v1674
    %v1683 = vpack.c.bf16 %v1675, %v1675
    %v1684 = vpack.c.bf16 %v1676, %v1676
    %v1685 = vpack.c.bf16 %v1677, %v1677
    %v1686 = vpack.c.bf16 %v1678, %v1678
    %v1687 = vpack.c.bf16 %v1679, %v1679
    %v1688 = vpack.c.bf16 %v1680, %v1680
    %v1690 = vsel %vm1592, %v1681, 0
    %vm1692 = vcmask 1043456
    %v1694 = vsel %vm1692, %v1201, 0
    %1696 = vmatprep.subr.bf16.mxu0 0
    %1697 = vmatpush1.bf16.msra.mxu0 0
    %1698 = vmatprep.subr.bf16.mxu0 0
    %1699 = vmatpush1.bf16.msra.mxu0 0
    %1700 = vmatprep.subr.bf16.mxu0 0
    %1701 = vmatpush1.bf16.msra.mxu0 0
    %1702 = vmatprep.subr.bf16.mxu0 0
    %1703 = vmatpush1.bf16.msra.mxu0 0
    %1704 = vmatprep.subr.bf16.mxu0 0
    %1705 = vmatpush1.bf16.msra.mxu0 0
    %1706 = vmatprep.subr.bf16.mxu0 0
    %1707 = vmatpush1.bf16.msra.mxu0 0
    %1708 = vmatprep.subr.bf16.mxu0 0
    %1709 = vmatpush1.bf16.msra.mxu0 0
    %1710 = vmatprep.subr.bf16.mxu0 0
    %1711 = vmatpush1.bf16.msra.mxu0 %v1694
    %1712 = vmatprep.subr.bf16.mxu0 0
    %1713 = vmatpush2.bf16.msra.mxu0 0
    %1714 = vmatprep.subr.bf16.mxu0 0
    %1715 = vmatpush2.bf16.msra.mxu0 0
    %1716 = vmatprep.subr.bf16.mxu0 0
    %1717 = vmatpush2.bf16.msra.mxu0 0
    %1718 = vmatprep.subr.bf16.mxu0 0
    %1719 = vmatpush2.bf16.msra.mxu0 0
    %1720 = vmatprep.subr.bf16.mxu0 0
    %1721 = vmatpush2.bf16.msra.mxu0 0
    %1722 = vmatprep.subr.bf16.mxu0 0
    %1723 = vmatpush2.bf16.msra.mxu0 0
    %1724 = vmatprep.subr.bf16.mxu0 0
    %1725 = vmatpush2.bf16.msra.mxu0 0
    %1726 = vmatprep.subr.bf16.mxu0 0
    %1727 = vmatpush2.bf16.msra.mxu0 0
    %1728 = vmatprep.mubr.bf16.mxu0 0
    %1729 = vmatmul.mubr.bf16.gmra.mxu0 %v1690
    %v1730 = vpop.f32.mrf.mxu0
    %v1731 = vadd.f32 0.0, %v1730
    %v1732 = vpop.f32.mrf.mxu0
    %v1733 = vpop.f32.mrf.mxu0
    %v1734 = vpop.f32.mrf.mxu0
    %1735 = vdwg.mxu0
    %v1737 = vsel %vm1592, %v1682, 0
    %v1740 = vsel %vm1692, %v1204, 0
    %1742 = vmatprep.subr.bf16.mxu0 0
    %1743 = vmatpush1.bf16.msra.mxu0 0
    %1744 = vmatprep.subr.bf16.mxu0 0
    %1745 = vmatpush1.bf16.msra.mxu0 0
    %1746 = vmatprep.subr.bf16.mxu0 0
    %1747 = vmatpush1.bf16.msra.mxu0 0
    %1748 = vmatprep.subr.bf16.mxu0 0
    %1749 = vmatpush1.bf16.msra.mxu0 0
    %1750 = vmatprep.subr.bf16.mxu0 0
    %1751 = vmatpush1.bf16.msra.mxu0 0
    %1752 = vmatprep.subr.bf16.mxu0 0
    %1753 = vmatpush1.bf16.msra.mxu0 0
    %1754 = vmatprep.subr.bf16.mxu0 0
    %1755 = vmatpush1.bf16.msra.mxu0 0
    %1756 = vmatprep.subr.bf16.mxu0 0
    %1757 = vmatpush1.bf16.msra.mxu0 %v1740
    %1758 = vmatprep.subr.bf16.mxu0 0
    %1759 = vmatpush2.bf16.msra.mxu0 0
    %1760 = vmatprep.subr.bf16.mxu0 0
    %1761 = vmatpush2.bf16.msra.mxu0 0
    %1762 = vmatprep.subr.bf16.mxu0 0
    %1763 = vmatpush2.bf16.msra.mxu0 0
    %1764 = vmatprep.subr.bf16.mxu0 0
    %1765 = vmatpush2.bf16.msra.mxu0 0
    %1766 = vmatprep.subr.bf16.mxu0 0
    %1767 = vmatpush2.bf16.msra.mxu0 0
    %1768 = vmatprep.subr.bf16.mxu0 0
    %1769 = vmatpush2.bf16.msra.mxu0 0
    %1770 = vmatprep.subr.bf16.mxu0 0
    %1771 = vmatpush2.bf16.msra.mxu0 0
    %1772 = vmatprep.subr.bf16.mxu0 0
    %1773 = vmatpush2.bf16.msra.mxu0 0
    %1774 = vmatprep.mubr.bf16.mxu0 0
    %1775 = vmatmul.mubr.bf16.gmra.mxu0 %v1737
    %v1776 = vpop.f32.mrf.mxu0
    %v1777 = vadd.f32 0.0, %v1776
    %v1778 = vpop.f32.mrf.mxu0
    %v1779 = vpop.f32.mrf.mxu0
    %v1780 = vpop.f32.mrf.mxu0
    %1781 = vdwg.mxu0
    %v1783 = vsel %vm1592, %v1683, 0
    %v1786 = vsel %vm1692, %v1207, 0
    %1788 = vmatprep.subr.bf16.mxu0 0
    %1789 = vmatpush1.bf16.msra.mxu0 0
    %1790 = vmatprep.subr.bf16.mxu0 0
    %1791 = vmatpush1.bf16.msra.mxu0 0
    %1792 = vmatprep.subr.bf16.mxu0 0
    %1793 = vmatpush1.bf16.msra.mxu0 0
    %1794 = vmatprep.subr.bf16.mxu0 0
    %1795 = vmatpush1.bf16.msra.mxu0 0
    %1796 = vmatprep.subr.bf16.mxu0 0
    %1797 = vmatpush1.bf16.msra.mxu0 0
    %1798 = vmatprep.subr.bf16.mxu0 0
    %1799 = vmatpush1.bf16.msra.mxu0 0
    %1800 = vmatprep.subr.bf16.mxu0 0
    %1801 = vmatpush1.bf16.msra.mxu0 0
    %1802 = vmatprep.subr.bf16.mxu0 0
    %1803 = vmatpush1.bf16.msra.mxu0 %v1786
    %1804 = vmatprep.subr.bf16.mxu0 0
    %1805 = vmatpush2.bf16.msra.mxu0 0
    %1806 = vmatprep.subr.bf16.mxu0 0
    %1807 = vmatpush2.bf16.msra.mxu0 0
    %1808 = vmatprep.subr.bf16.mxu0 0
    %1809 = vmatpush2.bf16.msra.mxu0 0
    %1810 = vmatprep.subr.bf16.mxu0 0
    %1811 = vmatpush2.bf16.msra.mxu0 0
    %1812 = vmatprep.subr.bf16.mxu0 0
    %1813 = vmatpush2.bf16.msra.mxu0 0
    %1814 = vmatprep.subr.bf16.mxu0 0
    %1815 = vmatpush2.bf16.msra.mxu0 0
    %1816 = vmatprep.subr.bf16.mxu0 0
    %1817 = vmatpush2.bf16.msra.mxu0 0
    %1818 = vmatprep.subr.bf16.mxu0 0
    %1819 = vmatpush2.bf16.msra.mxu0 0
    %1820 = vmatprep.mubr.bf16.mxu0 0
    %1821 = vmatmul.mubr.bf16.gmra.mxu0 %v1783
    %v1822 = vpop.f32.mrf.mxu0
    %v1823 = vadd.f32 0.0, %v1822
    %v1824 = vpop.f32.mrf.mxu0
    %v1825 = vpop.f32.mrf.mxu0
    %v1826 = vpop.f32.mrf.mxu0
    %1827 = vdwg.mxu0
    %v1829 = vsel %vm1592, %v1684, 0
    %v1832 = vsel %vm1692, %v1210, 0
    %1834 = vmatprep.subr.bf16.mxu0 0
    %1835 = vmatpush1.bf16.msra.mxu0 0
    %1836 = vmatprep.subr.bf16.mxu0 0
    %1837 = vmatpush1.bf16.msra.mxu0 0
    %1838 = vmatprep.subr.bf16.mxu0 0
    %1839 = vmatpush1.bf16.msra.mxu0 0
    %1840 = vmatprep.subr.bf16.mxu0 0
    %1841 = vmatpush1.bf16.msra.mxu0 0
    %1842 = vmatprep.subr.bf16.mxu0 0
    %1843 = vmatpush1.bf16.msra.mxu0 0
    %1844 = vmatprep.subr.bf16.mxu0 0
    %1845 = vmatpush1.bf16.msra.mxu0 0
    %1846 = vmatprep.subr.bf16.mxu0 0
    %1847 = vmatpush1.bf16.msra.mxu0 0
    %1848 = vmatprep.subr.bf16.mxu0 0
    %1849 = vmatpush1.bf16.msra.mxu0 %v1832
    %1850 = vmatprep.subr.bf16.mxu0 0
    %1851 = vmatpush2.bf16.msra.mxu0 0
    %1852 = vmatprep.subr.bf16.mxu0 0
    %1853 = vmatpush2.bf16.msra.mxu0 0
    %1854 = vmatprep.subr.bf16.mxu0 0
    %1855 = vmatpush2.bf16.msra.mxu0 0
    %1856 = vmatprep.subr.bf16.mxu0 0
    %1857 = vmatpush2.bf16.msra.mxu0 0
    %1858 = vmatprep.subr.bf16.mxu0 0
    %1859 = vmatpush2.bf16.msra.mxu0 0
    %1860 = vmatprep.subr.bf16.mxu0 0
    %1861 = vmatpush2.bf16.msra.mxu0 0
    %1862 = vmatprep.subr.bf16.mxu0 0
    %1863 = vmatpush2.bf16.msra.mxu0 0
    %1864 = vmatprep.subr.bf16.mxu0 0
    %1865 = vmatpush2.bf16.msra.mxu0 0
    %1866 = vmatprep.mubr.bf16.mxu0 0
    %1867 = vmatmul.mubr.bf16.gmra.mxu0 %v1829
    %v1868 = vpop.f32.mrf.mxu0
    %v1869 = vadd.f32 0.0, %v1868
    %v1870 = vpop.f32.mrf.mxu0
    %v1871 = vpop.f32.mrf.mxu0
    %v1872 = vpop.f32.mrf.mxu0
    %1873 = vdwg.mxu0
    %v1875 = vsel %vm1592, %v1685, 0
    %v1878 = vsel %vm1692, %v1213, 0
    %1880 = vmatprep.subr.bf16.mxu0 0
    %1881 = vmatpush1.bf16.msra.mxu0 0
    %1882 = vmatprep.subr.bf16.mxu0 0
    %1883 = vmatpush1.bf16.msra.mxu0 0
    %1884 = vmatprep.subr.bf16.mxu0 0
    %1885 = vmatpush1.bf16.msra.mxu0 0
    %1886 = vmatprep.subr.bf16.mxu0 0
    %1887 = vmatpush1.bf16.msra.mxu0 0
    %1888 = vmatprep.subr.bf16.mxu0 0
    %1889 = vmatpush1.bf16.msra.mxu0 0
    %1890 = vmatprep.subr.bf16.mxu0 0
    %1891 = vmatpush1.bf16.msra.mxu0 0
    %1892 = vmatprep.subr.bf16.mxu0 0
    %1893 = vmatpush1.bf16.msra.mxu0 0
    %1894 = vmatprep.subr.bf16.mxu0 0
    %1895 = vmatpush1.bf16.msra.mxu0 %v1878
    %1896 = vmatprep.subr.bf16.mxu0 0
    %1897 = vmatpush2.bf16.msra.mxu0 0
    %1898 = vmatprep.subr.bf16.mxu0 0
    %1899 = vmatpush2.bf16.msra.mxu0 0
    %1900 = vmatprep.subr.bf16.mxu0 0
    %1901 = vmatpush2.bf16.msra.mxu0 0
    %1902 = vmatprep.subr.bf16.mxu0 0
    %1903 = vmatpush2.bf16.msra.mxu0 0
    %1904 = vmatprep.subr.bf16.mxu0 0
    %1905 = vmatpush2.bf16.msra.mxu0 0
    %1906 = vmatprep.subr.bf16.mxu0 0
    %1907 = vmatpush2.bf16.msra.mxu0 0
    %1908 = vmatprep.subr.bf16.mxu0 0
    %1909 = vmatpush2.bf16.msra.mxu0 0
    %1910 = vmatprep.subr.bf16.mxu0 0
    %1911 = vmatpush2.bf16.msra.mxu0 0
    %1912 = vmatprep.mubr.bf16.mxu0 0
    %1913 = vmatmul.mubr.bf16.gmra.mxu0 %v1875
    %v1914 = vpop.f32.mrf.mxu0
    %v1915 = vadd.f32 0.0, %v1914
    %v1916 = vpop.f32.mrf.mxu0
    %v1917 = vpop.f32.mrf.mxu0
    %v1918 = vpop.f32.mrf.mxu0
    %1919 = vdwg.mxu0
    %v1921 = vsel %vm1592, %v1686, 0
    %v1924 = vsel %vm1692, %v1216, 0
    %1926 = vmatprep.subr.bf16.mxu0 0
    %1927 = vmatpush1.bf16.msra.mxu0 0
    %1928 = vmatprep.subr.bf16.mxu0 0
    %1929 = vmatpush1.bf16.msra.mxu0 0
    %1930 = vmatprep.subr.bf16.mxu0 0
    %1931 = vmatpush1.bf16.msra.mxu0 0
    %1932 = vmatprep.subr.bf16.mxu0 0
    %1933 = vmatpush1.bf16.msra.mxu0 0
    %1934 = vmatprep.subr.bf16.mxu0 0
    %1935 = vmatpush1.bf16.msra.mxu0 0
    %1936 = vmatprep.subr.bf16.mxu0 0
    %1937 = vmatpush1.bf16.msra.mxu0 0
    %1938 = vmatprep.subr.bf16.mxu0 0
    %1939 = vmatpush1.bf16.msra.mxu0 0
    %1940 = vmatprep.subr.bf16.mxu0 0
    %1941 = vmatpush1.bf16.msra.mxu0 %v1924
    %1942 = vmatprep.subr.bf16.mxu0 0
    %1943 = vmatpush2.bf16.msra.mxu0 0
    %1944 = vmatprep.subr.bf16.mxu0 0
    %1945 = vmatpush2.bf16.msra.mxu0 0
    %1946 = vmatprep.subr.bf16.mxu0 0
    %1947 = vmatpush2.bf16.msra.mxu0 0
    %1948 = vmatprep.subr.bf16.mxu0 0
    %1949 = vmatpush2.bf16.msra.mxu0 0
    %1950 = vmatprep.subr.bf16.mxu0 0
    %1951 = vmatpush2.bf16.msra.mxu0 0
    %1952 = vmatprep.subr.bf16.mxu0 0
    %1953 = vmatpush2.bf16.msra.mxu0 0
    %1954 = vmatprep.subr.bf16.mxu0 0
    %1955 = vmatpush2.bf16.msra.mxu0 0
    %1956 = vmatprep.subr.bf16.mxu0 0
    %1957 = vmatpush2.bf16.msra.mxu0 0
    %1958 = vmatprep.mubr.bf16.mxu0 0
    %1959 = vmatmul.mubr.bf16.gmra.mxu0 %v1921
    %v1960 = vpop.f32.mrf.mxu0
    %v1961 = vadd.f32 0.0, %v1960
    %v1962 = vpop.f32.mrf.mxu0
    %v1963 = vpop.f32.mrf.mxu0
    %v1964 = vpop.f32.mrf.mxu0
    %1965 = vdwg.mxu0
    %v1967 = vsel %vm1592, %v1687, 0
    %v1970 = vsel %vm1692, %v1219, 0
    %1972 = vmatprep.subr.bf16.mxu0 0
    %1973 = vmatpush1.bf16.msra.mxu0 0
    %1974 = vmatprep.subr.bf16.mxu0 0
    %1975 = vmatpush1.bf16.msra.mxu0 0
    %1976 = vmatprep.subr.bf16.mxu0 0
    %1977 = vmatpush1.bf16.msra.mxu0 0
    %1978 = vmatprep.subr.bf16.mxu0 0
    %1979 = vmatpush1.bf16.msra.mxu0 0
    %1980 = vmatprep.subr.bf16.mxu0 0
    %1981 = vmatpush1.bf16.msra.mxu0 0
    %1982 = vmatprep.subr.bf16.mxu0 0
    %1983 = vmatpush1.bf16.msra.mxu0 0
    %1984 = vmatprep.subr.bf16.mxu0 0
    %1985 = vmatpush1.bf16.msra.mxu0 0
    %1986 = vmatprep.subr.bf16.mxu0 0
    %1987 = vmatpush1.bf16.msra.mxu0 %v1970
    %1988 = vmatprep.subr.bf16.mxu0 0
    %1989 = vmatpush2.bf16.msra.mxu0 0
    %1990 = vmatprep.subr.bf16.mxu0 0
    %1991 = vmatpush2.bf16.msra.mxu0 0
    %1992 = vmatprep.subr.bf16.mxu0 0
    %1993 = vmatpush2.bf16.msra.mxu0 0
    %1994 = vmatprep.subr.bf16.mxu0 0
    %1995 = vmatpush2.bf16.msra.mxu0 0
    %1996 = vmatprep.subr.bf16.mxu0 0
    %1997 = vmatpush2.bf16.msra.mxu0 0
    %1998 = vmatprep.subr.bf16.mxu0 0
    %1999 = vmatpush2.bf16.msra.mxu0 0
    %2000 = vmatprep.subr.bf16.mxu0 0
    %2001 = vmatpush2.bf16.msra.mxu0 0
    %2002 = vmatprep.subr.bf16.mxu0 0
    %2003 = vmatpush2.bf16.msra.mxu0 0
    %2004 = vmatprep.mubr.bf16.mxu0 0
    %2005 = vmatmul.mubr.bf16.gmra.mxu0 %v1967
    %v2006 = vpop.f32.mrf.mxu0
    %v2007 = vadd.f32 0.0, %v2006
    %v2008 = vpop.f32.mrf.mxu0
    %v2009 = vpop.f32.mrf.mxu0
    %v2010 = vpop.f32.mrf.mxu0
    %2011 = vdwg.mxu0
    %v2013 = vsel %vm1592, %v1688, 0
    %v2016 = vsel %vm1692, %v1222, 0
    %2018 = vmatprep.subr.bf16.mxu0 0
    %2019 = vmatpush1.bf16.msra.mxu0 0
    %2020 = vmatprep.subr.bf16.mxu0 0
    %2021 = vmatpush1.bf16.msra.mxu0 0
    %2022 = vmatprep.subr.bf16.mxu0 0
    %2023 = vmatpush1.bf16.msra.mxu0 0
    %2024 = vmatprep.subr.bf16.mxu0 0
    %2025 = vmatpush1.bf16.msra.mxu0 0
    %2026 = vmatprep.subr.bf16.mxu0 0
    %2027 = vmatpush1.bf16.msra.mxu0 0
    %2028 = vmatprep.subr.bf16.mxu0 0
    %2029 = vmatpush1.bf16.msra.mxu0 0
    %2030 = vmatprep.subr.bf16.mxu0 0
    %2031 = vmatpush1.bf16.msra.mxu0 0
    %2032 = vmatprep.subr.bf16.mxu0 0
    %2033 = vmatpush1.bf16.msra.mxu0 %v2016
    %2034 = vmatprep.subr.bf16.mxu0 0
    %2035 = vmatpush2.bf16.msra.mxu0 0
    %2036 = vmatprep.subr.bf16.mxu0 0
    %2037 = vmatpush2.bf16.msra.mxu0 0
    %2038 = vmatprep.subr.bf16.mxu0 0
    %2039 = vmatpush2.bf16.msra.mxu0 0
    %2040 = vmatprep.subr.bf16.mxu0 0
    %2041 = vmatpush2.bf16.msra.mxu0 0
    %2042 = vmatprep.subr.bf16.mxu0 0
    %2043 = vmatpush2.bf16.msra.mxu0 0
    %2044 = vmatprep.subr.bf16.mxu0 0
    %2045 = vmatpush2.bf16.msra.mxu0 0
    %2046 = vmatprep.subr.bf16.mxu0 0
    %2047 = vmatpush2.bf16.msra.mxu0 0
    %2048 = vmatprep.subr.bf16.mxu0 0
    %2049 = vmatpush2.bf16.msra.mxu0 0
    %2050 = vmatprep.mubr.bf16.mxu0 0
    %2051 = vmatmul.mubr.bf16.gmra.mxu0 %v2013
    %v2052 = vpop.f32.mrf.mxu0
    %v2053 = vadd.f32 0.0, %v2052
    %v2054 = vpop.f32.mrf.mxu0
    %v2055 = vpop.f32.mrf.mxu0
    %v2056 = vpop.f32.mrf.mxu0
    %2057 = vdwg.mxu0
    %v2058 = vcombine.low %v1731, %v1823
    %v2059 = vcombine.high %v1731, %v1823
    %v2061 = vunpack.c.l.s4 1983009808
    %v2062 = vunpack.c.0.s8 %v2061
    %v2063 = vlaneseq
    %v2064 = vshrl.u32 %v2063, 7
    %v2065 = vsub.s32 %v2062, %v2064
    %v2066 = vrot.slane %v2058, %v2065
    %v2068 = vunpack.c.l.s4 1983009808
    %v2069 = vunpack.c.0.s8 %v2068
    %v2070 = vlaneseq
    %v2071 = vshrl.u32 %v2070, 7
    %v2072 = vsub.s32 %v2069, %v2071
    %v2073 = vrot.slane %v2059, %v2072
    %v2074 = vcombine.low %v1777, %v1869
    %v2075 = vcombine.high %v1777, %v1869
    %v2077 = vunpack.c.l.s4 1983009808
    %v2078 = vunpack.c.0.s8 %v2077
    %v2079 = vlaneseq
    %v2080 = vshrl.u32 %v2079, 7
    %v2081 = vsub.s32 %v2078, %v2080
    %v2082 = vrot.slane %v2074, %v2081
    %v2084 = vunpack.c.l.s4 1983009808
    %v2085 = vunpack.c.0.s8 %v2084
    %v2086 = vlaneseq
    %v2087 = vshrl.u32 %v2086, 7
    %v2088 = vsub.s32 %v2085, %v2087
    %v2089 = vrot.slane %v2075, %v2088
    %v2090 = vcombine.low %v2066, %v2082
    %v2091 = vcombine.high %v2066, %v2082
    %v2093 = vunpack.c.l.s4 1934713408
    %v2094 = vunpack.c.0.s8 %v2093
    %v2095 = vlaneseq
    %v2096 = vshrl.u32 %v2095, 7
    %v2097 = vsub.s32 %v2094, %v2096
    %v2098 = vrot.slane %v2090, %v2097
    %v2100 = vunpack.c.l.s4 1934713408
    %v2101 = vunpack.c.0.s8 %v2100
    %v2102 = vlaneseq
    %v2103 = vshrl.u32 %v2102, 7
    %v2104 = vsub.s32 %v2101, %v2103
    %v2105 = vrot.slane %v2091, %v2104
    %v2106 = vcombine.low %v2073, %v2089
    %v2107 = vcombine.high %v2073, %v2089
    %v2109 = vunpack.c.l.s4 1934713408
    %v2110 = vunpack.c.0.s8 %v2109
    %v2111 = vlaneseq
    %v2112 = vshrl.u32 %v2111, 7
    %v2113 = vsub.s32 %v2110, %v2112
    %v2114 = vrot.slane %v2106, %v2113
    %v2116 = vunpack.c.l.s4 1934713408
    %v2117 = vunpack.c.0.s8 %v2116
    %v2118 = vlaneseq
    %v2119 = vshrl.u32 %v2118, 7
    %v2120 = vsub.s32 %v2117, %v2119
    %v2121 = vrot.slane %v2107, %v2120
    %v2122 = vcombine.high %v2098, 0.0
    %v2123 = vcombine.high %v2105, 0.0
    %v2124 = vcombine.high %v2114, 0.0
    %v2125 = vcombine.high %v2121, 0.0
    %v2126 = vcombine.low %v1915, %v2007
    %v2127 = vcombine.high %v1915, %v2007
    %v2129 = vunpack.c.l.s4 1983009808
    %v2130 = vunpack.c.0.s8 %v2129
    %v2131 = vlaneseq
    %v2132 = vshrl.u32 %v2131, 7
    %v2133 = vsub.s32 %v2130, %v2132
    %v2134 = vrot.slane %v2126, %v2133
    %v2136 = vunpack.c.l.s4 1983009808
    %v2137 = vunpack.c.0.s8 %v2136
    %v2138 = vlaneseq
    %v2139 = vshrl.u32 %v2138, 7
    %v2140 = vsub.s32 %v2137, %v2139
    %v2141 = vrot.slane %v2127, %v2140
    %v2142 = vcombine.low %v1961, %v2053
    %v2143 = vcombine.high %v1961, %v2053
    %v2145 = vunpack.c.l.s4 1983009808
    %v2146 = vunpack.c.0.s8 %v2145
    %v2147 = vlaneseq
    %v2148 = vshrl.u32 %v2147, 7
    %v2149 = vsub.s32 %v2146, %v2148
    %v2150 = vrot.slane %v2142, %v2149
    %v2152 = vunpack.c.l.s4 1983009808
    %v2153 = vunpack.c.0.s8 %v2152
    %v2154 = vlaneseq
    %v2155 = vshrl.u32 %v2154, 7
    %v2156 = vsub.s32 %v2153, %v2155
    %v2157 = vrot.slane %v2143, %v2156
    %v2158 = vcombine.low %v2134, %v2150
    %v2159 = vcombine.high %v2134, %v2150
    %v2161 = vunpack.c.l.s4 1934713408
    %v2162 = vunpack.c.0.s8 %v2161
    %v2163 = vlaneseq
    %v2164 = vshrl.u32 %v2163, 7
    %v2165 = vsub.s32 %v2162, %v2164
    %v2166 = vrot.slane %v2158, %v2165
    %v2168 = vunpack.c.l.s4 1934713408
    %v2169 = vunpack.c.0.s8 %v2168
    %v2170 = vlaneseq
    %v2171 = vshrl.u32 %v2170, 7
    %v2172 = vsub.s32 %v2169, %v2171
    %v2173 = vrot.slane %v2159, %v2172
    %v2174 = vcombine.low %v2141, %v2157
    %v2175 = vcombine.high %v2141, %v2157
    %v2177 = vunpack.c.l.s4 1934713408
    %v2178 = vunpack.c.0.s8 %v2177
    %v2179 = vlaneseq
    %v2180 = vshrl.u32 %v2179, 7
    %v2181 = vsub.s32 %v2178, %v2180
    %v2182 = vrot.slane %v2174, %v2181
    %v2184 = vunpack.c.l.s4 1934713408
    %v2185 = vunpack.c.0.s8 %v2184
    %v2186 = vlaneseq
    %v2187 = vshrl.u32 %v2186, 7
    %v2188 = vsub.s32 %v2185, %v2187
    %v2189 = vrot.slane %v2175, %v2188
    %v2190 = vcombine.high %v2166, 0.0
    %v2191 = vcombine.high %v2173, 0.0
    %v2192 = vcombine.high %v2182, 0.0
    %v2193 = vcombine.high %v2189, 0.0
    %v2194 = vcombine.low %v2098, %v2122
    %v2196 = vunpack.c.l.s4 1983009808
    %v2197 = vunpack.c.0.s8 %v2196
    %v2198 = vlaneseq
    %v2199 = vshrl.u32 %v2198, 7
    %v2200 = vsub.s32 %v2197, %v2199
    %v2201 = vrot.slane %v2194, %v2200
    %v2202 = vcombine.low %v2166, %v2190
    %v2204 = vunpack.c.l.s4 1983009808
    %v2205 = vunpack.c.0.s8 %v2204
    %v2206 = vlaneseq
    %v2207 = vshrl.u32 %v2206, 7
    %v2208 = vsub.s32 %v2205, %v2207
    %v2209 = vrot.slane %v2202, %v2208
    %v2210 = vcombine.low %v2105, %v2123
    %v2212 = vunpack.c.l.s4 1983009808
    %v2213 = vunpack.c.0.s8 %v2212
    %v2214 = vlaneseq
    %v2215 = vshrl.u32 %v2214, 7
    %v2216 = vsub.s32 %v2213, %v2215
    %v2217 = vrot.slane %v2210, %v2216
    %v2218 = vcombine.low %v2173, %v2191
    %v2220 = vunpack.c.l.s4 1983009808
    %v2221 = vunpack.c.0.s8 %v2220
    %v2222 = vlaneseq
    %v2223 = vshrl.u32 %v2222, 7
    %v2224 = vsub.s32 %v2221, %v2223
    %v2225 = vrot.slane %v2218, %v2224
    %v2226 = vcombine.low %v2201, %v2209
    %v2227 = vcombine.high %v2201, %v2209
    %v2229 = vunpack.c.l.s4 1934713408
    %v2230 = vunpack.c.0.s8 %v2229
    %v2231 = vlaneseq
    %v2232 = vshrl.u32 %v2231, 7
    %v2233 = vsub.s32 %v2230, %v2232
    %v2234 = vrot.slane %v2226, %v2233
    %v2236 = vunpack.c.l.s4 1934713408
    %v2237 = vunpack.c.0.s8 %v2236
    %v2238 = vlaneseq
    %v2239 = vshrl.u32 %v2238, 7
    %v2240 = vsub.s32 %v2237, %v2239
    %v2241 = vrot.slane %v2227, %v2240
    %v2242 = vcombine.low %v2217, %v2225
    %v2243 = vcombine.high %v2217, %v2225
    %v2245 = vunpack.c.l.s4 1934713408
    %v2246 = vunpack.c.0.s8 %v2245
    %v2247 = vlaneseq
    %v2248 = vshrl.u32 %v2247, 7
    %v2249 = vsub.s32 %v2246, %v2248
    %v2250 = vrot.slane %v2242, %v2249
    %v2252 = vunpack.c.l.s4 1934713408
    %v2253 = vunpack.c.0.s8 %v2252
    %v2254 = vlaneseq
    %v2255 = vshrl.u32 %v2254, 7
    %v2256 = vsub.s32 %v2253, %v2255
    %v2257 = vrot.slane %v2243, %v2256
    %v2258 = vcombine.low %v2234, %v2250
    %v2259 = vcombine.high %v2234, %v2250
    %v2260 = vcombine.low %v2241, %v2257
    %v2261 = vcombine.high %v2241, %v2257
    %v2262 = vcombine.low %v2114, %v2124
    %v2264 = vunpack.c.l.s4 1983009808
    %v2265 = vunpack.c.0.s8 %v2264
    %v2266 = vlaneseq
    %v2267 = vshrl.u32 %v2266, 7
    %v2268 = vsub.s32 %v2265, %v2267
    %v2269 = vrot.slane %v2262, %v2268
    %v2270 = vcombine.low %v2182, %v2192
    %v2272 = vunpack.c.l.s4 1983009808
    %v2273 = vunpack.c.0.s8 %v2272
    %v2274 = vlaneseq
    %v2275 = vshrl.u32 %v2274, 7
    %v2276 = vsub.s32 %v2273, %v2275
    %v2277 = vrot.slane %v2270, %v2276
    %v2278 = vcombine.low %v2121, %v2125
    %v2280 = vunpack.c.l.s4 1983009808
    %v2281 = vunpack.c.0.s8 %v2280
    %v2282 = vlaneseq
    %v2283 = vshrl.u32 %v2282, 7
    %v2284 = vsub.s32 %v2281, %v2283
    %v2285 = vrot.slane %v2278, %v2284
    %v2286 = vcombine.low %v2189, %v2193
    %v2288 = vunpack.c.l.s4 1983009808
    %v2289 = vunpack.c.0.s8 %v2288
    %v2290 = vlaneseq
    %v2291 = vshrl.u32 %v2290, 7
    %v2292 = vsub.s32 %v2289, %v2291
    %v2293 = vrot.slane %v2286, %v2292
    %v2294 = vcombine.low %v2269, %v2277
    %v2295 = vcombine.high %v2269, %v2277
    %v2297 = vunpack.c.l.s4 1934713408
    %v2298 = vunpack.c.0.s8 %v2297
    %v2299 = vlaneseq
    %v2300 = vshrl.u32 %v2299, 7
    %v2301 = vsub.s32 %v2298, %v2300
    %v2302 = vrot.slane %v2294, %v2301
    %v2304 = vunpack.c.l.s4 1934713408
    %v2305 = vunpack.c.0.s8 %v2304
    %v2306 = vlaneseq
    %v2307 = vshrl.u32 %v2306, 7
    %v2308 = vsub.s32 %v2305, %v2307
    %v2309 = vrot.slane %v2295, %v2308
    %v2310 = vcombine.low %v2285, %v2293
    %v2311 = vcombine.high %v2285, %v2293
    %v2313 = vunpack.c.l.s4 1934713408
    %v2314 = vunpack.c.0.s8 %v2313
    %v2315 = vlaneseq
    %v2316 = vshrl.u32 %v2315, 7
    %v2317 = vsub.s32 %v2314, %v2316
    %v2318 = vrot.slane %v2310, %v2317
    %v2320 = vunpack.c.l.s4 1934713408
    %v2321 = vunpack.c.0.s8 %v2320
    %v2322 = vlaneseq
    %v2323 = vshrl.u32 %v2322, 7
    %v2324 = vsub.s32 %v2321, %v2323
    %v2325 = vrot.slane %v2311, %v2324
    %v2326 = vcombine.low %v2302, %v2318
    %v2327 = vcombine.high %v2302, %v2318
    %v2328 = vcombine.low %v2309, %v2325
    %v2329 = vcombine.high %v2309, %v2325
    %2332 = vrot.lane.b32.xlu0 %v2259, 32
    %v2333 = vpop.permute.xlu0 %2332
    %2334 = vrot.lane.b32.xlu0 %v2327, 32
    %v2335 = vpop.permute.xlu0 %2334
    %2340 = vrot.lane.b32.xlu0 %v2260, 64
    %v2341 = vpop.permute.xlu0 %2340
    %2342 = vrot.lane.b32.xlu0 %v2328, 64
    %v2343 = vpop.permute.xlu0 %2342
    %2348 = vrot.lane.b32.xlu0 %v2261, 96
    %v2349 = vpop.permute.xlu0 %2348
    %2350 = vrot.lane.b32.xlu0 %v2329, 96
    %v2351 = vpop.permute.xlu0 %2350
    %v2354 = vsel %vm1223, %v2258, %v2333
    %v2355 = vsel %vm1223, %v2326, %v2335
    %vm2356 = vcmask 523264
    %v2357 = vsel %vm2356, %v2354, %v2341
    %v2358 = vsel %vm2356, %v2355, %v2343
    %vm2359 = vcmask 785408
    %v2360 = vsel %vm2359, %v2357, %v2349
    %v2361 = vsel %vm2359, %v2358, %v2351
    %v2362 = vpack.c.bf16 %v2361, %v2360
    %v2363 = vld [vmem:[#allocation7] sm:$0xf]
    %v2364 = vld [vmem:[#allocation7 + $0x4] sm:$0xf]
    %v2365 = vld [vmem:[#allocation7 + $0x8] sm:$0xf]
    %v2366 = vld [vmem:[#allocation7 + $0xc] sm:$0xf]
    %v2367 = vld [vmem:[#allocation7 + $0x10] sm:$0xf]
    %v2368 = vld [vmem:[#allocation7 + $0x14] sm:$0xf]
    %v2369 = vld [vmem:[#allocation7 + $0x18] sm:$0xf]
    %v2370 = vld [vmem:[#allocation7 + $0x1c] sm:$0xf]
    %v2371 = vld [vmem:[#allocation7 + $0x20] sm:$0xf]
    %v2372 = vld [vmem:[#allocation7 + $0x24] sm:$0xf]
    %v2373 = vld [vmem:[#allocation7 + $0x28] sm:$0xf]
    %v2374 = vld [vmem:[#allocation7 + $0x2c] sm:$0xf]
    %v2375 = vld [vmem:[#allocation7 + $0x30] sm:$0xf]
    %v2376 = vld [vmem:[#allocation7 + $0x34] sm:$0xf]
    %v2377 = vld [vmem:[#allocation7 + $0x38] sm:$0xf]
    %v2378 = vld [vmem:[#allocation7 + $0x3c] sm:$0xf]
    %v2379 = vld [vmem:[%s4] sm:$0x1]
    %v2381 = vlaneseq
    %v2382 = vshrl.u32 %v2381, 7
    %v2383 = vsub.s32 0, %v2382
    %v2384 = vrot.slane %v2379, %v2383
    %v2402 = vunpack.c.l.b16 %v2363
    %v2403 = vunpack.c.l.b16 %v2364
    %v2404 = vunpack.c.l.b16 %v2365
    %v2405 = vunpack.c.l.b16 %v2366
    %v2406 = vunpack.c.l.b16 %v2367
    %v2407 = vunpack.c.l.b16 %v2368
    %v2408 = vunpack.c.l.b16 %v2369
    %v2409 = vunpack.c.l.b16 %v2370
    %v2410 = vunpack.c.l.b16 %v2371
    %v2411 = vunpack.c.l.b16 %v2372
    %v2412 = vunpack.c.l.b16 %v2373
    %v2413 = vunpack.c.l.b16 %v2374
    %v2414 = vunpack.c.l.b16 %v2375
    %v2415 = vunpack.c.l.b16 %v2376
    %v2416 = vunpack.c.l.b16 %v2377
    %v2417 = vunpack.c.l.b16 %v2378
    %v2418 = vpack.c.b16 %v2403, %v2402
    %v2419 = vpack.c.b16 %v2405, %v2404
    %v2420 = vpack.c.b16 %v2407, %v2406
    %v2421 = vpack.c.b16 %v2409, %v2408
    %v2422 = vpack.c.b16 %v2411, %v2410
    %v2423 = vpack.c.b16 %v2413, %v2412
    %v2424 = vpack.c.b16 %v2415, %v2414
    %v2425 = vpack.c.b16 %v2417, %v2416
    %2434 = vmatprep.subr.bf16.mxu0 0
    %2435 = vmatpush1.bf16.msra.mxu0 %v2425
    %2436 = vmatprep.subr.bf16.mxu0 0
    %2437 = vmatpush1.bf16.msra.mxu0 %v2424
    %2438 = vmatprep.subr.bf16.mxu0 0
    %2439 = vmatpush1.bf16.msra.mxu0 %v2423
    %2440 = vmatprep.subr.bf16.mxu0 0
    %2441 = vmatpush1.bf16.msra.mxu0 %v2422
    %2442 = vmatprep.subr.bf16.mxu0 0
    %2443 = vmatpush1.bf16.msra.mxu0 %v2421
    %2444 = vmatprep.subr.bf16.mxu0 0
    %2445 = vmatpush1.bf16.msra.mxu0 %v2420
    %2446 = vmatprep.subr.bf16.mxu0 0
    %2447 = vmatpush1.bf16.msra.mxu0 %v2419
    %2448 = vmatprep.subr.bf16.mxu0 0
    %2449 = vmatpush1.bf16.msra.mxu0 %v2418
    %2450 = vmatprep.subr.bf16.mxu0 0
    %2451 = vmatpush2.bf16.msra.mxu0 0
    %2452 = vmatprep.subr.bf16.mxu0 0
    %2453 = vmatpush2.bf16.msra.mxu0 0
    %2454 = vmatprep.subr.bf16.mxu0 0
    %2455 = vmatpush2.bf16.msra.mxu0 0
    %2456 = vmatprep.subr.bf16.mxu0 0
    %2457 = vmatpush2.bf16.msra.mxu0 0
    %2458 = vmatprep.subr.bf16.mxu0 0
    %2459 = vmatpush2.bf16.msra.mxu0 0
    %2460 = vmatprep.subr.bf16.mxu0 0
    %2461 = vmatpush2.bf16.msra.mxu0 0
    %2462 = vmatprep.subr.bf16.mxu0 0
    %2463 = vmatpush2.bf16.msra.mxu0 0
    %2464 = vmatprep.subr.bf16.mxu0 0
    %2465 = vmatpush2.bf16.msra.mxu0 0
    %2466 = vmatprep.mubr.bf16.mxu0 0
    %2467 = vmatmul.mubr.bf16.gmra.mxu0 %v2362
    %v2468 = vpop.f32.mrf.mxu0
    %v2469 = vadd.f32 %v2384, %v2468
    %v2470 = vpop.f32.mrf.mxu0
    %v2471 = vpop.f32.mrf.mxu0
    %v2472 = vadd.f32 %v2384, %v2471
    %v2473 = vpop.f32.mrf.mxu0
    %2474 = vdwg.mxu0
    %v2477 = vcombine.high %v2469, %v2469
    %v2479 = vunpack.c.l.s4 1983009808
    %v2480 = vunpack.c.0.s8 %v2479
    %v2481 = vlaneseq
    %v2482 = vshrl.u32 %v2481, 7
    %v2483 = vsub.s32 %v2480, %v2482
    %v2484 = vrot.slane %v2469, %v2483
    %v2486 = vunpack.c.l.s4 1983009808
    %v2487 = vunpack.c.0.s8 %v2486
    %v2488 = vlaneseq
    %v2489 = vshrl.u32 %v2488, 7
    %v2490 = vsub.s32 %v2487, %v2489
    %v2491 = vrot.slane %v2477, %v2490
    %v2492 = vcombine.high %v2484, %v2484
    %v2493 = vcombine.high %v2491, %v2491
    %v2494 = vcombine.high %v2472, %v2472
    %v2496 = vunpack.c.l.s4 1983009808
    %v2497 = vunpack.c.0.s8 %v2496
    %v2498 = vlaneseq
    %v2499 = vshrl.u32 %v2498, 7
    %v2500 = vsub.s32 %v2497, %v2499
    %v2501 = vrot.slane %v2472, %v2500
    %v2503 = vunpack.c.l.s4 1983009808
    %v2504 = vunpack.c.0.s8 %v2503
    %v2505 = vlaneseq
    %v2506 = vshrl.u32 %v2505, 7
    %v2507 = vsub.s32 %v2504, %v2506
    %v2508 = vrot.slane %v2494, %v2507
    %v2509 = vcombine.high %v2501, %v2501
    %v2510 = vcombine.high %v2508, %v2508
    %2519 = vst [vmem:[#allocation8] sm:$0x3] %v2484
    %2520 = vst [vmem:[#allocation8 + $0x2] sm:$0x3] %v2492
    %2521 = vst [vmem:[#allocation8 + $0x4] sm:$0x3] %v2491
    %2522 = vst [vmem:[#allocation8 + $0x6] sm:$0x3] %v2493
    %2523 = vst [vmem:[#allocation8 + $0x8] sm:$0x3] %v2501
    %2524 = vst [vmem:[#allocation8 + $0xa] sm:$0x3] %v2509
    %2525 = vst [vmem:[#allocation8 + $0xc] sm:$0x3] %v2508
    %2526 = vst [vmem:[#allocation8 + $0xe] sm:$0x3] %v2510
    // Predicated region
    $region34: #{tpu_custom_call.1} parent=1 // pred_check
      _
    $region35: #{tpu_custom_call.1} parent=1 // pred_check_branch
      %2528 = sbr.rel (0) target = $region37
    $region36: #{tpu_custom_call.1} parent=1 // pred_region
      %s2530 = ssub.s32 256, 256
      %2531 = vsyncadd [#allocation4], %s2530
      %s2532 = sshll.u32 [#allocation8], 4
      %s2533 = int_to_ptr.vmem [resolvable:$true] %s2532
      %2538 = dma.vmem_to_hbm [thread:$0]  %s2533, 256, %s5, [#allocation4], 32, 32, 2
    $region37: #{tpu_custom_call.1} parent=1 // pred_fallthru
      _
    // Predicated region
    $region38: #{tpu_custom_call.1} parent=1 // pred_check
      _
    $region39: #{tpu_custom_call.1} parent=1 // pred_check_branch
      %2540 = sbr.rel (0) target = $region41
    $region40: #{tpu_custom_call.1} parent=1 // pred_region
      %2541 = dma.done [#allocation4], 256
    $region41: #{tpu_custom_call.1} parent=1 // pred_fallthru
      _
    %2542 = vsyncpa [#allocation3], 1
    %2543 = vsyncpa [#allocation6], 1
    %2544 = vsyncpa [#allocation4], 1

// kernel: tpu_custom_call.1
$region0: #{tpu_custom_call.1}
  #allocation0 [shape = 'u32[]', space=smem, size = 0x4, offset = 0x4, fixed_abs, tag = 'smem constant byte address 0x4 - core index']
  #allocation1 [shape = 'u32[144,128]{1,0:T(1,128)}', space=vmem, size = 0x12000, scoped, tag = 'internal scratch']
  %s0 = inlined_call_operand.hbm [shape: f32[8,2,128], index: 0, kind: input, shape index: {}]
  %s1 = inlined_call_operand.hbm [shape: bf16[128,384], index: 1, kind: input, shape index: {}]
  %s2 = inlined_call_operand.vmem [shape: f32[1,384], index: 2, kind: input, shape index: {}]
  %s3 = inlined_call_operand.hbm [shape: bf16[128,128], index: 3, kind: input, shape index: {}]
  %s4 = inlined_call_operand.vmem [shape: f32[1,128], index: 4, kind: input, shape index: {}]
  %s5 = inlined_call_operand.hbm [shape: f32[8,2,128], index: 5, kind: output, shape index: {}]
  %s6 = sld [smem:[#allocation0]]
  $region42: #{tpu_custom_call.1} parent=0
    _
  %s8 = ssub.s32 1, %s6
  %s9 = scalar_select 0, %s8, %s6
  $region1: #{tpu_custom_call.1} parent=0
    #allocation2 [shape = 'u8[8192]{0}', space=vmem, size = 0x2000, scoped, tag = 'input window, operand 0, single buffered']
    #allocation3 [shape = 's32[1]{0}', space=sflag, size = 0x4, scoped, tag = 'scoped memory for tpu_custom_call.1']
    #allocation4 [shape = 's32[1]{0}', space=sflag, size = 0x4, scoped, tag = 'scoped memory for tpu_custom_call.1']
    #allocation5 [shape = 'u8[98304]{0}', space=vmem, size = 0x18000, scoped, tag = 'input window, operand 1, single buffered']
    #allocation6 [shape = 's32[1]{0}', space=sflag, size = 0x4, scoped, tag = 'scoped memory for tpu_custom_call.1']
    #allocation7 [shape = 'u8[32768]{0}', space=vmem, size = 0x8000, scoped, tag = 'input window, operand 3, single buffered']
    #allocation8 [shape = 'u8[8192]{0}', space=vmem, size = 0x2000, scoped, tag = 'output window, operand 0, single buffered']
    %10 = vsyncpa [#allocation3], 0
    %11 = vsyncpa [#allocation6], 0
    %12 = vsyncpa [#allocation4], 0
    // Predicated region
    $region2: #{tpu_custom_call.1} parent=1 // pred_check
      _
    $region3: #{tpu_custom_call.1} parent=1 // pred_check_branch
      %14 = sbr.rel (0) target = $region5
    $region4: #{tpu_custom_call.1} parent=1 // pred_region
      %s16 = ssub.s32 256, 256
      %17 = vsyncadd [#allocation3], %s16
      %s18 = sshll.u32 [#allocation2], 4
      %s19 = int_to_ptr.vmem [resolvable:$true] %s18
      %24 = dma.hbm_to_vmem [thread:$0]  %s0, 256, %s19, [#allocation3], 32, 32, 2
    $region5: #{tpu_custom_call.1} parent=1 // pred_fallthru
      _
    // Predicated region
    $region6: #{tpu_custom_call.1} parent=1 // pred_check
      _
    $region7: #{tpu_custom_call.1} parent=1 // pred_check_branch
      %26 = sbr.rel (0) target = $region9
    $region8: #{tpu_custom_call.1} parent=1 // pred_region
      %s28 = ssub.s32 3072, 3072
      %29 = vsyncadd [#allocation6], %s28
      %s30 = sshll.u32 [#allocation5], 4
      %s31 = int_to_ptr.vmem [resolvable:$true] %s30
      %36 = dma.hbm_to_vmem [thread:$0]  %s1, 3072, %s31, [#allocation6], 192, 192, 12
    $region9: #{tpu_custom_call.1} parent=1 // pred_fallthru
      _
    // Predicated region
    $region10: #{tpu_custom_call.1} parent=1 // pred_check
      _
    $region11: #{tpu_custom_call.1} parent=1 // pred_check_branch
      %38 = sbr.rel (0) target = $region13
    $region12: #{tpu_custom_call.1} parent=1 // pred_region
      _
    $region13: #{tpu_custom_call.1} parent=1 // pred_fallthru
      _
    // Predicated region
    $region14: #{tpu_custom_call.1} parent=1 // pred_check
      _
    $region15: #{tpu_custom_call.1} parent=1 // pred_check_branch
      %40 = sbr.rel (0) target = $region17
    $region16: #{tpu_custom_call.1} parent=1 // pred_region
      %s42 = ssub.s32 1024, 1024
      %43 = vsyncadd [#allocation6], %s42
      %s44 = sshll.u32 [#allocation7], 4
      %s45 = int_to_ptr.vmem [resolvable:$true] %s44
      %50 = dma.hbm_to_vmem [thread:$0]  %s3, 1024, %s45, [#allocation6], 64, 64, 4
    $region17: #{tpu_custom_call.1} parent=1 // pred_fallthru
      _
    // Predicated region
    $region18: #{tpu_custom_call.1} parent=1 // pred_check
      _
    $region19: #{tpu_custom_call.1} parent=1 // pred_check_branch
      %52 = sbr.rel (0) target = $region21
    $region20: #{tpu_custom_call.1} parent=1 // pred_region
      _
    $region21: #{tpu_custom_call.1} parent=1 // pred_fallthru
      _
    // Predicated region
    $region22: #{tpu_custom_call.1} parent=1 // pred_check
      _
    $region23: #{tpu_custom_call.1} parent=1 // pred_check_branch
      %54 = sbr.rel (0) target = $region25
    $region24: #{tpu_custom_call.1} parent=1 // pred_region
      %55 = dma.done [#allocation3], 256
    $region25: #{tpu_custom_call.1} parent=1 // pred_fallthru
      _
    // Predicated region
    $region26: #{tpu_custom_call.1} parent=1 // pred_check
      _
    $region27: #{tpu_custom_call.1} parent=1 // pred_check_branch
      %57 = sbr.rel (0) target = $region29
    $region28: #{tpu_custom_call.1} parent=1 // pred_region
      %58 = dma.done [#allocation6], 3072
    $region29: #{tpu_custom_call.1} parent=1 // pred_fallthru
      _
    // Predicated region
    $region30: #{tpu_custom_call.1} parent=1 // pred_check
      _
    $region31: #{tpu_custom_call.1} parent=1 // pred_check_branch
      %60 = sbr.rel (0) target = $region33
    $region32: #{tpu_custom_call.1} parent=1 // pred_region
      %61 = dma.done [#allocation6], 1024
    $region33: #{tpu_custom_call.1} parent=1 // pred_fallthru
      _
    %v63 = vld [vmem:[#allocation2] sm:$0x3]
    %v64 = vld [vmem:[#allocation2 + $0x2] sm:$0x3]
    %v65 = vld [vmem:[#allocation2 + $0x4] sm:$0x3]
    %v66 = vld [vmem:[#allocation2 + $0x6] sm:$0x3]
    %v67 = vld [vmem:[#allocation2 + $0x8] sm:$0x3]
    %v68 = vld [vmem:[#allocation2 + $0xa] sm:$0x3]
    %v69 = vld [vmem:[#allocation2 + $0xc] sm:$0x3]
    %v70 = vld [vmem:[#allocation2 + $0xe] sm:$0x3]
    %v79 = vcombine.low %v63, %v64
    %v80 = vcombine.low %v65, %v66
    %v82 = vunpack.c.l.s4 1983009808
    %v83 = vunpack.c.0.s8 %v82
    %v84 = vlaneseq
    %v85 = vshrl.u32 %v84, 7
    %v86 = vsub.s32 %v83, %v85
    %v87 = vrot.slane %v79, %v86
    %v89 = vunpack.c.l.s4 1983009808
    %v90 = vunpack.c.0.s8 %v89
    %v91 = vlaneseq
    %v92 = vshrl.u32 %v91, 7
    %v93 = vsub.s32 %v90, %v92
    %v94 = vrot.slane %v80, %v93
    %v95 = vcombine.low %v87, %v94
    %v96 = vcombine.low %v67, %v68
    %v97 = vcombine.low %v69, %v70
    %v99 = vunpack.c.l.s4 1983009808
    %v100 = vunpack.c.0.s8 %v99
    %v101 = vlaneseq
    %v102 = vshrl.u32 %v101, 7
    %v103 = vsub.s32 %v100, %v102
    %v104 = vrot.slane %v96, %v103
    %v106 = vunpack.c.l.s4 1983009808
    %v107 = vunpack.c.0.s8 %v106
    %v108 = vlaneseq
    %v109 = vshrl.u32 %v108, 7
    %v110 = vsub.s32 %v107, %v109
    %v111 = vrot.slane %v97, %v110
    %v112 = vcombine.low %v104, %v111
    %v115 = vpack.c.bf16 %v112, %v95
    %v116 = vld [vmem:[#allocation5] sm:$0xff]
    %v117 = vld [vmem:[#allocation5 + $0x8] sm:$0xf]
    %v118 = vld [vmem:[#allocation5 + $0xc] sm:$0xff]
    %v119 = vld [vmem:[#allocation5 + $0x14] sm:$0xf]
    %v120 = vld [vmem:[#allocation5 + $0x18] sm:$0xff]
    %v121 = vld [vmem:[#allocation5 + $0x20] sm:$0xf]
    %v122 = vld [vmem:[#allocation5 + $0x24] sm:$0xff]
    %v123 = vld [vmem:[#allocation5 + $0x2c] sm:$0xf]
    %v124 = vld [vmem:[#allocation5 + $0x30] sm:$0xff]
    %v125 = vld [vmem:[#allocation5 + $0x38] sm:$0xf]
    %v126 = vld [vmem:[#allocation5 + $0x3c] sm:$0xff]
    %v127 = vld [vmem:[#allocation5 + $0x44] sm:$0xf]
    %v128 = vld [vmem:[#allocation5 + $0x48] sm:$0xff]
    %v129 = vld [vmem:[#allocation5 + $0x50] sm:$0xf]
    %v130 = vld [vmem:[#allocation5 + $0x54] sm:$0xff]
    %v131 = vld [vmem:[#allocation5 + $0x5c] sm:$0xf]
    %v132 = vld [vmem:[#allocation5 + $0x60] sm:$0xff]
    %v133 = vld [vmem:[#allocation5 + $0x68] sm:$0xf]
    %v134 = vld [vmem:[#allocation5 + $0x6c] sm:$0xff]
    %v135 = vld [vmem:[#allocation5 + $0x74] sm:$0xf]
    %v136 = vld [vmem:[#allocation5 + $0x78] sm:$0xff]
    %v137 = vld [vmem:[#allocation5 + $0x80] sm:$0xf]
    %v138 = vld [vmem:[#allocation5 + $0x84] sm:$0xff]
    %v139 = vld [vmem:[#allocation5 + $0x8c] sm:$0xf]
    %v140 = vld [vmem:[#allocation5 + $0x90] sm:$0xff]
    %v141 = vld [vmem:[#allocation5 + $0x98] sm:$0xf]
    %v142 = vld [vmem:[#allocation5 + $0x9c] sm:$0xff]
    %v143 = vld [vmem:[#allocation5 + $0xa4] sm:$0xf]
    %v144 = vld [vmem:[#allocation5 + $0xa8] sm:$0xff]
    %v145 = vld [vmem:[#allocation5 + $0xb0] sm:$0xf]
    %v146 = vld [vmem:[#allocation5 + $0xb4] sm:$0xff]
    %v147 = vld [vmem:[#allocation5 + $0xbc] sm:$0xf]
    %v148 = vld [vmem:[%s2] sm:$0x7]
    %v150 = vlaneseq
    %v151 = vshrl.u32 %v150, 7
    %v152 = vsub.s32 0, %v151
    %v153 = vrot.slane %v148, %v152
    %v154 = vlaneseq
    %v155 = vshrl.u32 %v154, 7
    %v156 = vsub.s32 1, %v155
    %v157 = vrot.slane %v148, %v156
    %v158 = vlaneseq
    %v159 = vshrl.u32 %v158, 7
    %v160 = vsub.s32 2, %v159
    %v161 = vrot.slane %v148, %v160
    %v197 = vunpack.c.l.b16 %v116
    %v198 = vunpack.c.h.b16 %v116
    %v199 = vunpack.c.l.b16 %v117
    %v200 = vunpack.c.l.b16 %v118
    %v201 = vunpack.c.h.b16 %v118
    %v202 = vunpack.c.l.b16 %v119
    %v203 = vunpack.c.l.b16 %v120
    %v204 = vunpack.c.h.b16 %v120
    %v205 = vunpack.c.l.b16 %v121
    %v206 = vunpack.c.l.b16 %v122
    %v207 = vunpack.c.h.b16 %v122
    %v208 = vunpack.c.l.b16 %v123
    %v209 = vunpack.c.l.b16 %v124
    %v210 = vunpack.c.h.b16 %v124
    %v211 = vunpack.c.l.b16 %v125
    %v212 = vunpack.c.l.b16 %v126
    %v213 = vunpack.c.h.b16 %v126
    %v214 = vunpack.c.l.b16 %v127
    %v215 = vunpack.c.l.b16 %v128
    %v216 = vunpack.c.h.b16 %v128
    %v217 = vunpack.c.l.b16 %v129
    %v218 = vunpack.c.l.b16 %v130
    %v219 = vunpack.c.h.b16 %v130
    %v220 = vunpack.c.l.b16 %v131
    %v221 = vunpack.c.l.b16 %v132
    %v222 = vunpack.c.h.b16 %v132
    %v223 = vunpack.c.l.b16 %v133
    %v224 = vunpack.c.l.b16 %v134
    %v225 = vunpack.c.h.b16 %v134
    %v226 = vunpack.c.l.b16 %v135
    %v227 = vunpack.c.l.b16 %v136
    %v228 = vunpack.c.h.b16 %v136
    %v229 = vunpack.c.l.b16 %v137
    %v230 = vunpack.c.l.b16 %v138
    %v231 = vunpack.c.h.b16 %v138
    %v232 = vunpack.c.l.b16 %v139
    %v233 = vunpack.c.l.b16 %v140
    %v234 = vunpack.c.h.b16 %v140
    %v235 = vunpack.c.l.b16 %v141
    %v236 = vunpack.c.l.b16 %v142
    %v237 = vunpack.c.h.b16 %v142
    %v238 = vunpack.c.l.b16 %v143
    %v239 = vunpack.c.l.b16 %v144
    %v240 = vunpack.c.h.b16 %v144
    %v241 = vunpack.c.l.b16 %v145
    %v242 = vunpack.c.l.b16 %v146
    %v243 = vunpack.c.h.b16 %v146
    %v244 = vunpack.c.l.b16 %v147
    %v245 = vpack.c.b16 %v200, %v197
    %v246 = vpack.c.b16 %v201, %v198
    %v247 = vpack.c.b16 %v202, %v199
    %v248 = vpack.c.b16 %v206, %v203
    %v249 = vpack.c.b16 %v207, %v204
    %v250 = vpack.c.b16 %v208, %v205
    %v251 = vpack.c.b16 %v212, %v209
    %v252 = vpack.c.b16 %v213, %v210
    %v253 = vpack.c.b16 %v214, %v211
    %v254 = vpack.c.b16 %v218, %v215
    %v255 = vpack.c.b16 %v219, %v216
    %v256 = vpack.c.b16 %v220, %v217
    %v257 = vpack.c.b16 %v224, %v221
    %v258 = vpack.c.b16 %v225, %v222
    %v259 = vpack.c.b16 %v226, %v223
    %v260 = vpack.c.b16 %v230, %v227
    %v261 = vpack.c.b16 %v231, %v228
    %v262 = vpack.c.b16 %v232, %v229
    %v263 = vpack.c.b16 %v236, %v233
    %v264 = vpack.c.b16 %v237, %v234
    %v265 = vpack.c.b16 %v238, %v235
    %v266 = vpack.c.b16 %v242, %v239
    %v267 = vpack.c.b16 %v243, %v240
    %v268 = vpack.c.b16 %v244, %v241
    %293 = vmatprep.subr.bf16.mxu0 %v267
    %294 = vmatpush1.bf16.msra.mxu0 %v266
    %295 = vmatprep.subr.bf16.mxu0 %v264
    %296 = vmatpush1.bf16.msra.mxu0 %v263
    %297 = vmatprep.subr.bf16.mxu0 %v261
    %298 = vmatpush1.bf16.msra.mxu0 %v260
    %299 = vmatprep.subr.bf16.mxu0 %v258
    %300 = vmatpush1.bf16.msra.mxu0 %v257
    %301 = vmatprep.subr.bf16.mxu0 %v255
    %302 = vmatpush1.bf16.msra.mxu0 %v254
    %303 = vmatprep.subr.bf16.mxu0 %v252
    %304 = vmatpush1.bf16.msra.mxu0 %v251
    %305 = vmatprep.subr.bf16.mxu0 %v249
    %306 = vmatpush1.bf16.msra.mxu0 %v248
    %307 = vmatprep.subr.bf16.mxu0 %v246
    %308 = vmatpush1.bf16.msra.mxu0 %v245
    %309 = vmatprep.subr.bf16.mxu0 0
    %310 = vmatpush2.bf16.msra.mxu0 0
    %311 = vmatprep.subr.bf16.mxu0 0
    %312 = vmatpush2.bf16.msra.mxu0 0
    %313 = vmatprep.subr.bf16.mxu0 0
    %314 = vmatpush2.bf16.msra.mxu0 0
    %315 = vmatprep.subr.bf16.mxu0 0
    %316 = vmatpush2.bf16.msra.mxu0 0
    %317 = vmatprep.subr.bf16.mxu0 0
    %318 = vmatpush2.bf16.msra.mxu0 0
    %319 = vmatprep.subr.bf16.mxu0 0
    %320 = vmatpush2.bf16.msra.mxu0 0
    %321 = vmatprep.subr.bf16.mxu0 0
    %322 = vmatpush2.bf16.msra.mxu0 0
    %323 = vmatprep.subr.bf16.mxu0 0
    %324 = vmatpush2.bf16.msra.mxu0 0
    %325 = vmatprep.mubr.bf16.mxu0 0
    %326 = vmatmul.mubr.bf16.gmra.mxu0 %v115
    %v327 = vpop.f32.mrf.mxu0
    %v328 = vadd.f32 %v153, %v327
    %v329 = vpop.f32.mrf.mxu0
    %v330 = vadd.f32 %v157, %v329
    %v331 = vpop.f32.mrf.mxu0
    %v332 = vadd.f32 %v153, %v331
    %v333 = vpop.f32.mrf.mxu0
    %v334 = vadd.f32 %v157, %v333
    %335 = vdwg.mxu0
    %336 = vmatprep.subr.bf16.mxu0 0
    %337 = vmatpush1.bf16.msra.mxu0 %v268
    %338 = vmatprep.subr.bf16.mxu0 0
    %339 = vmatpush1.bf16.msra.mxu0 %v265
    %340 = vmatprep.subr.bf16.mxu0 0
    %341 = vmatpush1.bf16.msra.mxu0 %v262
    %342 = vmatprep.subr.bf16.mxu0 0
    %343 = vmatpush1.bf16.msra.mxu0 %v259
    %344 = vmatprep.subr.bf16.mxu0 0
    %345 = vmatpush1.bf16.msra.mxu0 %v256
    %346 = vmatprep.subr.bf16.mxu0 0
    %347 = vmatpush1.bf16.msra.mxu0 %v253
    %348 = vmatprep.subr.bf16.mxu0 0
    %349 = vmatpush1.bf16.msra.mxu0 %v250
    %350 = vmatprep.subr.bf16.mxu0 0
    %351 = vmatpush1.bf16.msra.mxu0 %v247
    %352 = vmatprep.subr.bf16.mxu0 0
    %353 = vmatpush2.bf16.msra.mxu0 0
    %354 = vmatprep.subr.bf16.mxu0 0
    %355 = vmatpush2.bf16.msra.mxu0 0
    %356 = vmatprep.subr.bf16.mxu0 0
    %357 = vmatpush2.bf16.msra.mxu0 0
    %358 = vmatprep.subr.bf16.mxu0 0
    %359 = vmatpush2.bf16.msra.mxu0 0
    %360 = vmatprep.subr.bf16.mxu0 0
    %361 = vmatpush2.bf16.msra.mxu0 0
    %362 = vmatprep.subr.bf16.mxu0 0
    %363 = vmatpush2.bf16.msra.mxu0 0
    %364 = vmatprep.subr.bf16.mxu0 0
    %365 = vmatpush2.bf16.msra.mxu0 0
    %366 = vmatprep.subr.bf16.mxu0 0
    %367 = vmatpush2.bf16.msra.mxu0 0
    %368 = vmatprep.mubr.bf16.mxu0 0
    %369 = vmatmul.mubr.bf16.gmra.mxu0 %v115
    %v370 = vpop.f32.mrf.mxu0
    %v371 = vadd.f32 %v161, %v370
    %v372 = vpop.f32.mrf.mxu0
    %v373 = vpop.f32.mrf.mxu0
    %v374 = vadd.f32 %v161, %v373
    %v375 = vpop.f32.mrf.mxu0
    %376 = vdwg.mxu0
    %v377 = vpack.c.bf16 %v332, %v328
    %379 = vrot.lane.b32.xlu0 %v377, 96
    %v380 = vpop.permute.xlu0 %379
    %381 = vrot.lane.b32.xlu0 %v377, 64
    %v382 = vpop.permute.xlu0 %381
    %383 = vrot.lane.b32.xlu0 %v377, 32
    %v384 = vpop.permute.xlu0 %383
    %v387 = vpack.i.b16 %v380, %v377
    %v389 = vshrl.u32 %v377, 16
    %v390 = vshrl.u32 %v380, 16
    %v391 = vpack.i.b16 %v390, %v389
    %v395 = vpack.i.b16 %v384, %v382
    %v397 = vshrl.u32 %v382, 16
    %v398 = vshrl.u32 %v384, 16
    %v399 = vpack.i.b16 %v398, %v397
    %v402 = vpack.i.b16 0, 0
    %v404 = vshrl.u32 0, 16
    %v405 = vpack.i.b16 %v404, %v404
    %v407 = vcombine.high %v387, %v402
    %v409 = vunpack.c.l.s4 1983009808
    %v410 = vunpack.c.0.s8 %v409
    %v411 = vlaneseq
    %v412 = vshrl.u32 %v411, 7
    %v413 = vsub.s32 %v410, %v412
    %v414 = vrot.slane %v387, %v413
    %v416 = vunpack.c.l.s4 1983009808
    %v417 = vunpack.c.0.s8 %v416
    %v418 = vlaneseq
    %v419 = vshrl.u32 %v418, 7
    %v420 = vsub.s32 %v417, %v419
    %v421 = vrot.slane %v407, %v420
    %v422 = vcombine.high %v395, %v402
    %v424 = vunpack.c.l.s4 1983009808
    %v425 = vunpack.c.0.s8 %v424
    %v426 = vlaneseq
    %v427 = vshrl.u32 %v426, 7
    %v428 = vsub.s32 %v425, %v427
    %v429 = vrot.slane %v395, %v428
    %v431 = vunpack.c.l.s4 1983009808
    %v432 = vunpack.c.0.s8 %v431
    %v433 = vlaneseq
    %v434 = vshrl.u32 %v433, 7
    %v435 = vsub.s32 %v432, %v434
    %v436 = vrot.slane %v422, %v435
    %v437 = vcombine.low %v414, %v429
    %v438 = vcombine.high %v414, %v429
    %v440 = vunpack.c.l.s4 1934713408
    %v441 = vunpack.c.0.s8 %v440
    %v442 = vlaneseq
    %v443 = vshrl.u32 %v442, 7
    %v444 = vsub.s32 %v441, %v443
    %v445 = vrot.slane %v437, %v444
    %v447 = vunpack.c.l.s4 1934713408
    %v448 = vunpack.c.0.s8 %v447
    %v449 = vlaneseq
    %v450 = vshrl.u32 %v449, 7
    %v451 = vsub.s32 %v448, %v450
    %v452 = vrot.slane %v438, %v451
    %v453 = vcombine.low %v421, %v436
    %v454 = vcombine.high %v421, %v436
    %v456 = vunpack.c.l.s4 1934713408
    %v457 = vunpack.c.0.s8 %v456
    %v458 = vlaneseq
    %v459 = vshrl.u32 %v458, 7
    %v460 = vsub.s32 %v457, %v459
    %v461 = vrot.slane %v453, %v460
    %v463 = vunpack.c.l.s4 1934713408
    %v464 = vunpack.c.0.s8 %v463
    %v465 = vlaneseq
    %v466 = vshrl.u32 %v465, 7
    %v467 = vsub.s32 %v464, %v466
    %v468 = vrot.slane %v454, %v467
    %v469 = vcombine.high %v445, 0
    %v470 = vcombine.high %v452, 0
    %v471 = vcombine.high %v461, 0
    %v472 = vcombine.high %v468, 0
    %v473 = vcombine.high %v391, %v405
    %v475 = vunpack.c.l.s4 1983009808
    %v476 = vunpack.c.0.s8 %v475
    %v477 = vlaneseq
    %v478 = vshrl.u32 %v477, 7
    %v479 = vsub.s32 %v476, %v478
    %v480 = vrot.slane %v391, %v479
    %v482 = vunpack.c.l.s4 1983009808
    %v483 = vunpack.c.0.s8 %v482
    %v484 = vlaneseq
    %v485 = vshrl.u32 %v484, 7
    %v486 = vsub.s32 %v483, %v485
    %v487 = vrot.slane %v473, %v486
    %v488 = vcombine.high %v399, %v405
    %v490 = vunpack.c.l.s4 1983009808
    %v491 = vunpack.c.0.s8 %v490
    %v492 = vlaneseq
    %v493 = vshrl.u32 %v492, 7
    %v494 = vsub.s32 %v491, %v493
    %v495 = vrot.slane %v399, %v494
    %v497 = vunpack.c.l.s4 1983009808
    %v498 = vunpack.c.0.s8 %v497
    %v499 = vlaneseq
    %v500 = vshrl.u32 %v499, 7
    %v501 = vsub.s32 %v498, %v500
    %v502 = vrot.slane %v488, %v501
    %v503 = vcombine.low %v480, %v495
    %v504 = vcombine.high %v480, %v495
    %v506 = vunpack.c.l.s4 1934713408
    %v507 = vunpack.c.0.s8 %v506
    %v508 = vlaneseq
    %v509 = vshrl.u32 %v508, 7
    %v510 = vsub.s32 %v507, %v509
    %v511 = vrot.slane %v503, %v510
    %v513 = vunpack.c.l.s4 1934713408
    %v514 = vunpack.c.0.s8 %v513
    %v515 = vlaneseq
    %v516 = vshrl.u32 %v515, 7
    %v517 = vsub.s32 %v514, %v516
    %v518 = vrot.slane %v504, %v517
    %v519 = vcombine.low %v487, %v502
    %v520 = vcombine.high %v487, %v502
    %v522 = vunpack.c.l.s4 1934713408
    %v523 = vunpack.c.0.s8 %v522
    %v524 = vlaneseq
    %v525 = vshrl.u32 %v524, 7
    %v526 = vsub.s32 %v523, %v525
    %v527 = vrot.slane %v519, %v526
    %v529 = vunpack.c.l.s4 1934713408
    %v530 = vunpack.c.0.s8 %v529
    %v531 = vlaneseq
    %v532 = vshrl.u32 %v531, 7
    %v533 = vsub.s32 %v530, %v532
    %v534 = vrot.slane %v520, %v533
    %v535 = vcombine.high %v511, 0
    %v536 = vcombine.high %v518, 0
    %v537 = vcombine.high %v527, 0
    %v538 = vcombine.high %v534, 0
    %v539 = vcombine.low %v445, %v461
    %v541 = vunpack.c.l.s4 1983009808
    %v542 = vunpack.c.0.s8 %v541
    %v543 = vlaneseq
    %v544 = vshrl.u32 %v543, 7
    %v545 = vsub.s32 %v542, %v544
    %v546 = vrot.slane %v539, %v545
    %v547 = vcombine.low %v452, %v468
    %v549 = vunpack.c.l.s4 1983009808
    %v550 = vunpack.c.0.s8 %v549
    %v551 = vlaneseq
    %v552 = vshrl.u32 %v551, 7
    %v553 = vsub.s32 %v550, %v552
    %v554 = vrot.slane %v547, %v553
    %v555 = vcombine.low %v546, %v554
    %v557 = vunpack.c.l.s4 1934713408
    %v558 = vunpack.c.0.s8 %v557
    %v559 = vlaneseq
    %v560 = vshrl.u32 %v559, 7
    %v561 = vsub.s32 %v558, %v560
    %v562 = vrot.slane %v555, %v561
    %v563 = vcombine.high %v562, 0
    %v564 = vcombine.low %v469, %v471
    %v566 = vunpack.c.l.s4 1983009808
    %v567 = vunpack.c.0.s8 %v566
    %v568 = vlaneseq
    %v569 = vshrl.u32 %v568, 7
    %v570 = vsub.s32 %v567, %v569
    %v571 = vrot.slane %v564, %v570
    %v572 = vcombine.low %v470, %v472
    %v574 = vunpack.c.l.s4 1983009808
    %v575 = vunpack.c.0.s8 %v574
    %v576 = vlaneseq
    %v577 = vshrl.u32 %v576, 7
    %v578 = vsub.s32 %v575, %v577
    %v579 = vrot.slane %v572, %v578
    %v580 = vcombine.low %v571, %v579
    %v582 = vunpack.c.l.s4 1934713408
    %v583 = vunpack.c.0.s8 %v582
    %v584 = vlaneseq
    %v585 = vshrl.u32 %v584, 7
    %v586 = vsub.s32 %v583, %v585
    %v587 = vrot.slane %v580, %v586
    %v588 = vcombine.high %v587, 0
    %v589 = vcombine.low %v511, %v527
    %v591 = vunpack.c.l.s4 1983009808
    %v592 = vunpack.c.0.s8 %v591
    %v593 = vlaneseq
    %v594 = vshrl.u32 %v593, 7
    %v595 = vsub.s32 %v592, %v594
    %v596 = vrot.slane %v589, %v595
    %v597 = vcombine.low %v518, %v534
    %v599 = vunpack.c.l.s4 1983009808
    %v600 = vunpack.c.0.s8 %v599
    %v601 = vlaneseq
    %v602 = vshrl.u32 %v601, 7
    %v603 = vsub.s32 %v600, %v602
    %v604 = vrot.slane %v597, %v603
    %v605 = vcombine.low %v596, %v604
    %v607 = vunpack.c.l.s4 1934713408
    %v608 = vunpack.c.0.s8 %v607
    %v609 = vlaneseq
    %v610 = vshrl.u32 %v609, 7
    %v611 = vsub.s32 %v608, %v610
    %v612 = vrot.slane %v605, %v611
    %v613 = vcombine.high %v612, 0
    %v614 = vcombine.low %v535, %v537
    %v616 = vunpack.c.l.s4 1983009808
    %v617 = vunpack.c.0.s8 %v616
    %v618 = vlaneseq
    %v619 = vshrl.u32 %v618, 7
    %v620 = vsub.s32 %v617, %v619
    %v621 = vrot.slane %v614, %v620
    %v622 = vcombine.low %v536, %v538
    %v624 = vunpack.c.l.s4 1983009808
    %v625 = vunpack.c.0.s8 %v624
    %v626 = vlaneseq
    %v627 = vshrl.u32 %v626, 7
    %v628 = vsub.s32 %v625, %v627
    %v629 = vrot.slane %v622, %v628
    %v630 = vcombine.low %v621, %v629
    %v632 = vunpack.c.l.s4 1934713408
    %v633 = vunpack.c.0.s8 %v632
    %v634 = vlaneseq
    %v635 = vshrl.u32 %v634, 7
    %v636 = vsub.s32 %v633, %v635
    %v637 = vrot.slane %v630, %v636
    %v638 = vcombine.high %v637, 0
    %v641 = vpack.i.b16 %v587, %v562
    %v642 = vshrl.u32 %v562, 16
    %v643 = vshrl.u32 %v587, 16
    %v644 = vpack.i.b16 %v643, %v642
    %v647 = vpack.i.b16 %v588, %v563
    %v648 = vshrl.u32 %v563, 16
    %v649 = vshrl.u32 %v588, 16
    %v650 = vpack.i.b16 %v649, %v648
    %v653 = vpack.i.b16 %v637, %v612
    %v654 = vshrl.u32 %v612, 16
    %v655 = vshrl.u32 %v637, 16
    %v656 = vpack.i.b16 %v655, %v654
    %v659 = vpack.i.b16 %v638, %v613
    %v660 = vshrl.u32 %v613, 16
    %v661 = vshrl.u32 %v638, 16
    %v662 = vpack.i.b16 %v661, %v660
    %v663 = vpack.c.bf16 %v334, %v330
    %665 = vrot.lane.b32.xlu0 %v663, 96
    %v666 = vpop.permute.xlu0 %665
    %667 = vrot.lane.b32.xlu0 %v663, 64
    %v668 = vpop.permute.xlu0 %667
    %669 = vrot.lane.b32.xlu0 %v663, 32
    %v670 = vpop.permute.xlu0 %669
    %v673 = vpack.i.b16 %v666, %v663
    %v675 = vshrl.u32 %v663, 16
    %v676 = vshrl.u32 %v666, 16
    %v677 = vpack.i.b16 %v676, %v675
    %v681 = vpack.i.b16 %v670, %v668
    %v683 = vshrl.u32 %v668, 16
    %v684 = vshrl.u32 %v670, 16
    %v685 = vpack.i.b16 %v684, %v683
    %v687 = vcombine.high %v673, %v402
    %v689 = vunpack.c.l.s4 1983009808
    %v690 = vunpack.c.0.s8 %v689
    %v691 = vlaneseq
    %v692 = vshrl.u32 %v691, 7
    %v693 = vsub.s32 %v690, %v692
    %v694 = vrot.slane %v673, %v693
    %v696 = vunpack.c.l.s4 1983009808
    %v697 = vunpack.c.0.s8 %v696
    %v698 = vlaneseq
    %v699 = vshrl.u32 %v698, 7
    %v700 = vsub.s32 %v697, %v699
    %v701 = vrot.slane %v687, %v700
    %v702 = vcombine.high %v681, %v402
    %v704 = vunpack.c.l.s4 1983009808
    %v705 = vunpack.c.0.s8 %v704
    %v706 = vlaneseq
    %v707 = vshrl.u32 %v706, 7
    %v708 = vsub.s32 %v705, %v707
    %v709 = vrot.slane %v681, %v708
    %v711 = vunpack.c.l.s4 1983009808
    %v712 = vunpack.c.0.s8 %v711
    %v713 = vlaneseq
    %v714 = vshrl.u32 %v713, 7
    %v715 = vsub.s32 %v712, %v714
    %v716 = vrot.slane %v702, %v715
    %v717 = vcombine.low %v694, %v709
    %v718 = vcombine.high %v694, %v709
    %v720 = vunpack.c.l.s4 1934713408
    %v721 = vunpack.c.0.s8 %v720
    %v722 = vlaneseq
    %v723 = vshrl.u32 %v722, 7
    %v724 = vsub.s32 %v721, %v723
    %v725 = vrot.slane %v717, %v724
    %v727 = vunpack.c.l.s4 1934713408
    %v728 = vunpack.c.0.s8 %v727
    %v729 = vlaneseq
    %v730 = vshrl.u32 %v729, 7
    %v731 = vsub.s32 %v728, %v730
    %v732 = vrot.slane %v718, %v731
    %v733 = vcombine.low %v701, %v716
    %v734 = vcombine.high %v701, %v716
    %v736 = vunpack.c.l.s4 1934713408
    %v737 = vunpack.c.0.s8 %v736
    %v738 = vlaneseq
    %v739 = vshrl.u32 %v738, 7
    %v740 = vsub.s32 %v737, %v739
    %v741 = vrot.slane %v733, %v740
    %v743 = vunpack.c.l.s4 1934713408
    %v744 = vunpack.c.0.s8 %v743
    %v745 = vlaneseq
    %v746 = vshrl.u32 %v745, 7
    %v747 = vsub.s32 %v744, %v746
    %v748 = vrot.slane %v734, %v747
    %v749 = vcombine.high %v725, 0
    %v750 = vcombine.high %v732, 0
    %v751 = vcombine.high %v741, 0
    %v752 = vcombine.high %v748, 0
    %v753 = vcombine.high %v677, %v405
    %v755 = vunpack.c.l.s4 1983009808
    %v756 = vunpack.c.0.s8 %v755
    %v757 = vlaneseq
    %v758 = vshrl.u32 %v757, 7
    %v759 = vsub.s32 %v756, %v758
    %v760 = vrot.slane %v677, %v759
    %v762 = vunpack.c.l.s4 1983009808
    %v763 = vunpack.c.0.s8 %v762
    %v764 = vlaneseq
    %v765 = vshrl.u32 %v764, 7
    %v766 = vsub.s32 %v763, %v765
    %v767 = vrot.slane %v753, %v766
    %v768 = vcombine.high %v685, %v405
    %v770 = vunpack.c.l.s4 1983009808
    %v771 = vunpack.c.0.s8 %v770
    %v772 = vlaneseq
    %v773 = vshrl.u32 %v772, 7
    %v774 = vsub.s32 %v771, %v773
    %v775 = vrot.slane %v685, %v774
    %v777 = vunpack.c.l.s4 1983009808
    %v778 = vunpack.c.0.s8 %v777
    %v779 = vlaneseq
    %v780 = vshrl.u32 %v779, 7
    %v781 = vsub.s32 %v778, %v780
    %v782 = vrot.slane %v768, %v781
    %v783 = vcombine.low %v760, %v775
    %v784 = vcombine.high %v760, %v775
    %v786 = vunpack.c.l.s4 1934713408
    %v787 = vunpack.c.0.s8 %v786
    %v788 = vlaneseq
    %v789 = vshrl.u32 %v788, 7
    %v790 = vsub.s32 %v787, %v789
    %v791 = vrot.slane %v783, %v790
    %v793 = vunpack.c.l.s4 1934713408
    %v794 = vunpack.c.0.s8 %v793
    %v795 = vlaneseq
    %v796 = vshrl.u32 %v795, 7
    %v797 = vsub.s32 %v794, %v796
    %v798 = vrot.slane %v784, %v797
    %v799 = vcombine.low %v767, %v782
    %v800 = vcombine.high %v767, %v782
    %v802 = vunpack.c.l.s4 1934713408
    %v803 = vunpack.c.0.s8 %v802
    %v804 = vlaneseq
    %v805 = vshrl.u32 %v804, 7
    %v806 = vsub.s32 %v803, %v805
    %v807 = vrot.slane %v799, %v806
    %v809 = vunpack.c.l.s4 1934713408
    %v810 = vunpack.c.0.s8 %v809
    %v811 = vlaneseq
    %v812 = vshrl.u32 %v811, 7
    %v813 = vsub.s32 %v810, %v812
    %v814 = vrot.slane %v800, %v813
    %v815 = vcombine.high %v791, 0
    %v816 = vcombine.high %v798, 0
    %v817 = vcombine.high %v807, 0
    %v818 = vcombine.high %v814, 0
    %v819 = vcombine.low %v725, %v741
    %v821 = vunpack.c.l.s4 1983009808
    %v822 = vunpack.c.0.s8 %v821
    %v823 = vlaneseq
    %v824 = vshrl.u32 %v823, 7
    %v825 = vsub.s32 %v822, %v824
    %v826 = vrot.slane %v819, %v825
    %v827 = vcombine.low %v732, %v748
    %v829 = vunpack.c.l.s4 1983009808
    %v830 = vunpack.c.0.s8 %v829
    %v831 = vlaneseq
    %v832 = vshrl.u32 %v831, 7
    %v833 = vsub.s32 %v830, %v832
    %v834 = vrot.slane %v827, %v833
    %v835 = vcombine.low %v826, %v834
    %v837 = vunpack.c.l.s4 1934713408
    %v838 = vunpack.c.0.s8 %v837
    %v839 = vlaneseq
    %v840 = vshrl.u32 %v839, 7
    %v841 = vsub.s32 %v838, %v840
    %v842 = vrot.slane %v835, %v841
    %v843 = vcombine.high %v842, 0
    %v844 = vcombine.low %v749, %v751
    %v846 = vunpack.c.l.s4 1983009808
    %v847 = vunpack.c.0.s8 %v846
    %v848 = vlaneseq
    %v849 = vshrl.u32 %v848, 7
    %v850 = vsub.s32 %v847, %v849
    %v851 = vrot.slane %v844, %v850
    %v852 = vcombine.low %v750, %v752
    %v854 = vunpack.c.l.s4 1983009808
    %v855 = vunpack.c.0.s8 %v854
    %v856 = vlaneseq
    %v857 = vshrl.u32 %v856, 7
    %v858 = vsub.s32 %v855, %v857
    %v859 = vrot.slane %v852, %v858
    %v860 = vcombine.low %v851, %v859
    %v862 = vunpack.c.l.s4 1934713408
    %v863 = vunpack.c.0.s8 %v862
    %v864 = vlaneseq
    %v865 = vshrl.u32 %v864, 7
    %v866 = vsub.s32 %v863, %v865
    %v867 = vrot.slane %v860, %v866
    %v868 = vcombine.high %v867, 0
    %v869 = vcombine.low %v791, %v807
    %v871 = vunpack.c.l.s4 1983009808
    %v872 = vunpack.c.0.s8 %v871
    %v873 = vlaneseq
    %v874 = vshrl.u32 %v873, 7
    %v875 = vsub.s32 %v872, %v874
    %v876 = vrot.slane %v869, %v875
    %v877 = vcombine.low %v798, %v814
    %v879 = vunpack.c.l.s4 1983009808
    %v880 = vunpack.c.0.s8 %v879
    %v881 = vlaneseq
    %v882 = vshrl.u32 %v881, 7
    %v883 = vsub.s32 %v880, %v882
    %v884 = vrot.slane %v877, %v883
    %v885 = vcombine.low %v876, %v884
    %v887 = vunpack.c.l.s4 1934713408
    %v888 = vunpack.c.0.s8 %v887
    %v889 = vlaneseq
    %v890 = vshrl.u32 %v889, 7
    %v891 = vsub.s32 %v888, %v890
    %v892 = vrot.slane %v885, %v891
    %v893 = vcombine.high %v892, 0
    %v894 = vcombine.low %v815, %v817
    %v896 = vunpack.c.l.s4 1983009808
    %v897 = vunpack.c.0.s8 %v896
    %v898 = vlaneseq
    %v899 = vshrl.u32 %v898, 7
    %v900 = vsub.s32 %v897, %v899
    %v901 = vrot.slane %v894, %v900
    %v902 = vcombine.low %v816, %v818
    %v904 = vunpack.c.l.s4 1983009808
    %v905 = vunpack.c.0.s8 %v904
    %v906 = vlaneseq
    %v907 = vshrl.u32 %v906, 7
    %v908 = vsub.s32 %v905, %v907
    %v909 = vrot.slane %v902, %v908
    %v910 = vcombine.low %v901, %v909
    %v912 = vunpack.c.l.s4 1934713408
    %v913 = vunpack.c.0.s8 %v912
    %v914 = vlaneseq
    %v915 = vshrl.u32 %v914, 7
    %v916 = vsub.s32 %v913, %v915
    %v917 = vrot.slane %v910, %v916
    %v918 = vcombine.high %v917, 0
    %v921 = vpack.i.b16 %v867, %v842
    %v922 = vshrl.u32 %v842, 16
    %v923 = vshrl.u32 %v867, 16
    %v924 = vpack.i.b16 %v923, %v922
    %v927 = vpack.i.b16 %v868, %v843
    %v928 = vshrl.u32 %v843, 16
    %v929 = vshrl.u32 %v868, 16
    %v930 = vpack.i.b16 %v929, %v928
    %v933 = vpack.i.b16 %v917, %v892
    %v934 = vshrl.u32 %v892, 16
    %v935 = vshrl.u32 %v917, 16
    %v936 = vpack.i.b16 %v935, %v934
    %v939 = vpack.i.b16 %v918, %v893
    %v940 = vshrl.u32 %v893, 16
    %v941 = vshrl.u32 %v918, 16
    %v942 = vpack.i.b16 %v941, %v940
    %v943 = vpack.c.bf16 %v374, %v371
    %945 = vrot.lane.b32.xlu0 %v943, 96
    %v946 = vpop.permute.xlu0 %945
    %947 = vrot.lane.b32.xlu0 %v943, 64
    %v948 = vpop.permute.xlu0 %947
    %949 = vrot.lane.b32.xlu0 %v943, 32
    %v950 = vpop.permute.xlu0 %949
    %v953 = vpack.i.b16 %v946, %v943
    %v955 = vshrl.u32 %v943, 16
    %v956 = vshrl.u32 %v946, 16
    %v957 = vpack.i.b16 %v956, %v955
    %v961 = vpack.i.b16 %v950, %v948
    %v963 = vshrl.u32 %v948, 16
    %v964 = vshrl.u32 %v950, 16
    %v965 = vpack.i.b16 %v964, %v963
    %v967 = vcombine.high %v953, %v402
    %v969 = vunpack.c.l.s4 1983009808
    %v970 = vunpack.c.0.s8 %v969
    %v971 = vlaneseq
    %v972 = vshrl.u32 %v971, 7
    %v973 = vsub.s32 %v970, %v972
    %v974 = vrot.slane %v953, %v973
    %v976 = vunpack.c.l.s4 1983009808
    %v977 = vunpack.c.0.s8 %v976
    %v978 = vlaneseq
    %v979 = vshrl.u32 %v978, 7
    %v980 = vsub.s32 %v977, %v979
    %v981 = vrot.slane %v967, %v980
    %v982 = vcombine.high %v961, %v402
    %v984 = vunpack.c.l.s4 1983009808
    %v985 = vunpack.c.0.s8 %v984
    %v986 = vlaneseq
    %v987 = vshrl.u32 %v986, 7
    %v988 = vsub.s32 %v985, %v987
    %v989 = vrot.slane %v961, %v988
    %v991 = vunpack.c.l.s4 1983009808
    %v992 = vunpack.c.0.s8 %v991
    %v993 = vlaneseq
    %v994 = vshrl.u32 %v993, 7
    %v995 = vsub.s32 %v992, %v994
    %v996 = vrot.slane %v982, %v995
    %v997 = vcombine.low %v974, %v989
    %v998 = vcombine.high %v974, %v989
    %v1000 = vunpack.c.l.s4 1934713408
    %v1001 = vunpack.c.0.s8 %v1000
    %v1002 = vlaneseq
    %v1003 = vshrl.u32 %v1002, 7
    %v1004 = vsub.s32 %v1001, %v1003
    %v1005 = vrot.slane %v997, %v1004
    %v1007 = vunpack.c.l.s4 1934713408
    %v1008 = vunpack.c.0.s8 %v1007
    %v1009 = vlaneseq
    %v1010 = vshrl.u32 %v1009, 7
    %v1011 = vsub.s32 %v1008, %v1010
    %v1012 = vrot.slane %v998, %v1011
    %v1013 = vcombine.low %v981, %v996
    %v1014 = vcombine.high %v981, %v996
    %v1016 = vunpack.c.l.s4 1934713408
    %v1017 = vunpack.c.0.s8 %v1016
    %v1018 = vlaneseq
    %v1019 = vshrl.u32 %v1018, 7
    %v1020 = vsub.s32 %v1017, %v1019
    %v1021 = vrot.slane %v1013, %v1020
    %v1023 = vunpack.c.l.s4 1934713408
    %v1024 = vunpack.c.0.s8 %v1023
    %v1025 = vlaneseq
    %v1026 = vshrl.u32 %v1025, 7
    %v1027 = vsub.s32 %v1024, %v1026
    %v1028 = vrot.slane %v1014, %v1027
    %v1029 = vcombine.high %v1005, 0
    %v1030 = vcombine.high %v1012, 0
    %v1031 = vcombine.high %v1021, 0
    %v1032 = vcombine.high %v1028, 0
    %v1033 = vcombine.high %v957, %v405
    %v1035 = vunpack.c.l.s4 1983009808
    %v1036 = vunpack.c.0.s8 %v1035
    %v1037 = vlaneseq
    %v1038 = vshrl.u32 %v1037, 7
    %v1039 = vsub.s32 %v1036, %v1038
    %v1040 = vrot.slane %v957, %v1039
    %v1042 = vunpack.c.l.s4 1983009808
    %v1043 = vunpack.c.0.s8 %v1042
    %v1044 = vlaneseq
    %v1045 = vshrl.u32 %v1044, 7
    %v1046 = vsub.s32 %v1043, %v1045
    %v1047 = vrot.slane %v1033, %v1046
    %v1048 = vcombine.high %v965, %v405
    %v1050 = vunpack.c.l.s4 1983009808
    %v1051 = vunpack.c.0.s8 %v1050
    %v1052 = vlaneseq
    %v1053 = vshrl.u32 %v1052, 7
    %v1054 = vsub.s32 %v1051, %v1053
    %v1055 = vrot.slane %v965, %v1054
    %v1057 = vunpack.c.l.s4 1983009808
    %v1058 = vunpack.c.0.s8 %v1057
    %v1059 = vlaneseq
    %v1060 = vshrl.u32 %v1059, 7
    %v1061 = vsub.s32 %v1058, %v1060
    %v1062 = vrot.slane %v1048, %v1061
    %v1063 = vcombine.low %v1040, %v1055
    %v1064 = vcombine.high %v1040, %v1055
    %v1066 = vunpack.c.l.s4 1934713408
    %v1067 = vunpack.c.0.s8 %v1066
    %v1068 = vlaneseq
    %v1069 = vshrl.u32 %v1068, 7
    %v1070 = vsub.s32 %v1067, %v1069
    %v1071 = vrot.slane %v1063, %v1070
    %v1073 = vunpack.c.l.s4 1934713408
    %v1074 = vunpack.c.0.s8 %v1073
    %v1075 = vlaneseq
    %v1076 = vshrl.u32 %v1075, 7
    %v1077 = vsub.s32 %v1074, %v1076
    %v1078 = vrot.slane %v1064, %v1077
    %v1079 = vcombine.low %v1047, %v1062
    %v1080 = vcombine.high %v1047, %v1062
    %v1082 = vunpack.c.l.s4 1934713408
    %v1083 = vunpack.c.0.s8 %v1082
    %v1084 = vlaneseq
    %v1085 = vshrl.u32 %v1084, 7
    %v1086 = vsub.s32 %v1083, %v1085
    %v1087 = vrot.slane %v1079, %v1086
    %v1089 = vunpack.c.l.s4 1934713408
    %v1090 = vunpack.c.0.s8 %v1089
    %v1091 = vlaneseq
    %v1092 = vshrl.u32 %v1091, 7
    %v1093 = vsub.s32 %v1090, %v1092
    %v1094 = vrot.slane %v1080, %v1093
    %v1095 = vcombine.high %v1071, 0
    %v1096 = vcombine.high %v1078, 0
    %v1097 = vcombine.high %v1087, 0
    %v1098 = vcombine.high %v1094, 0
    %v1099 = vcombine.low %v1005, %v1021
    %v1101 = vunpack.c.l.s4 1983009808
    %v1102 = vunpack.c.0.s8 %v1101
    %v1103 = vlaneseq
    %v1104 = vshrl.u32 %v1103, 7
    %v1105 = vsub.s32 %v1102, %v1104
    %v1106 = vrot.slane %v1099, %v1105
    %v1107 = vcombine.low %v1012, %v1028
    %v1109 = vunpack.c.l.s4 1983009808
    %v1110 = vunpack.c.0.s8 %v1109
    %v1111 = vlaneseq
    %v1112 = vshrl.u32 %v1111, 7
    %v1113 = vsub.s32 %v1110, %v1112
    %v1114 = vrot.slane %v1107, %v1113
    %v1115 = vcombine.low %v1106, %v1114
    %v1117 = vunpack.c.l.s4 1934713408
    %v1118 = vunpack.c.0.s8 %v1117
    %v1119 = vlaneseq
    %v1120 = vshrl.u32 %v1119, 7
    %v1121 = vsub.s32 %v1118, %v1120
    %v1122 = vrot.slane %v1115, %v1121
    %v1123 = vcombine.high %v1122, 0
    %v1124 = vcombine.low %v1029, %v1031
    %v1126 = vunpack.c.l.s4 1983009808
    %v1127 = vunpack.c.0.s8 %v1126
    %v1128 = vlaneseq
    %v1129 = vshrl.u32 %v1128, 7
    %v1130 = vsub.s32 %v1127, %v1129
    %v1131 = vrot.slane %v1124, %v1130
    %v1132 = vcombine.low %v1030, %v1032
    %v1134 = vunpack.c.l.s4 1983009808
    %v1135 = vunpack.c.0.s8 %v1134
    %v1136 = vlaneseq
    %v1137 = vshrl.u32 %v1136, 7
    %v1138 = vsub.s32 %v1135, %v1137
    %v1139 = vrot.slane %v1132, %v1138
    %v1140 = vcombine.low %v1131, %v1139
    %v1142 = vunpack.c.l.s4 1934713408
    %v1143 = vunpack.c.0.s8 %v1142
    %v1144 = vlaneseq
    %v1145 = vshrl.u32 %v1144, 7
    %v1146 = vsub.s32 %v1143, %v1145
    %v1147 = vrot.slane %v1140, %v1146
    %v1148 = vcombine.high %v1147, 0
    %v1149 = vcombine.low %v1071, %v1087
    %v1151 = vunpack.c.l.s4 1983009808
    %v1152 = vunpack.c.0.s8 %v1151
    %v1153 = vlaneseq
    %v1154 = vshrl.u32 %v1153, 7
    %v1155 = vsub.s32 %v1152, %v1154
    %v1156 = vrot.slane %v1149, %v1155
    %v1157 = vcombine.low %v1078, %v1094
    %v1159 = vunpack.c.l.s4 1983009808
    %v1160 = vunpack.c.0.s8 %v1159
    %v1161 = vlaneseq
    %v1162 = vshrl.u32 %v1161, 7
    %v1163 = vsub.s32 %v1160, %v1162
    %v1164 = vrot.slane %v1157, %v1163
    %v1165 = vcombine.low %v1156, %v1164
    %v1167 = vunpack.c.l.s4 1934713408
    %v1168 = vunpack.c.0.s8 %v1167
    %v1169 = vlaneseq
    %v1170 = vshrl.u32 %v1169, 7
    %v1171 = vsub.s32 %v1168, %v1170
    %v1172 = vrot.slane %v1165, %v1171
    %v1173 = vcombine.high %v1172, 0
    %v1174 = vcombine.low %v1095, %v1097
    %v1176 = vunpack.c.l.s4 1983009808
    %v1177 = vunpack.c.0.s8 %v1176
    %v1178 = vlaneseq
    %v1179 = vshrl.u32 %v1178, 7
    %v1180 = vsub.s32 %v1177, %v1179
    %v1181 = vrot.slane %v1174, %v1180
    %v1182 = vcombine.low %v1096, %v1098
    %v1184 = vunpack.c.l.s4 1983009808
    %v1185 = vunpack.c.0.s8 %v1184
    %v1186 = vlaneseq
    %v1187 = vshrl.u32 %v1186, 7
    %v1188 = vsub.s32 %v1185, %v1187
    %v1189 = vrot.slane %v1182, %v1188
    %v1190 = vcombine.low %v1181, %v1189
    %v1192 = vunpack.c.l.s4 1934713408
    %v1193 = vunpack.c.0.s8 %v1192
    %v1194 = vlaneseq
    %v1195 = vshrl.u32 %v1194, 7
    %v1196 = vsub.s32 %v1193, %v1195
    %v1197 = vrot.slane %v1190, %v1196
    %v1198 = vcombine.high %v1197, 0
    %v1201 = vpack.i.b16 %v1147, %v1122
    %v1202 = vshrl.u32 %v1122, 16
    %v1203 = vshrl.u32 %v1147, 16
    %v1204 = vpack.i.b16 %v1203, %v1202
    %v1207 = vpack.i.b16 %v1148, %v1123
    %v1208 = vshrl.u32 %v1123, 16
    %v1209 = vshrl.u32 %v1148, 16
    %v1210 = vpack.i.b16 %v1209, %v1208
    %v1213 = vpack.i.b16 %v1197, %v1172
    %v1214 = vshrl.u32 %v1172, 16
    %v1215 = vshrl.u32 %v1197, 16
    %v1216 = vpack.i.b16 %v1215, %v1214
    %v1219 = vpack.i.b16 %v1198, %v1173
    %v1220 = vshrl.u32 %v1173, 16
    %v1221 = vshrl.u32 %v1198, 16
    %v1222 = vpack.i.b16 %v1221, %v1220
    %vm1223 = vcmask 261120
    %v1225 = vsel %vm1223, %v641, 0
    %v1228 = vsel %vm1223, %v921, 0
    %1230 = vmatprep.subr.bf16.mxu0 0
    %1231 = vmatpush1.bf16.xpose.msra.mxu0 0
    %1232 = vmatprep.subr.bf16.mxu0 0
    %1233 = vmatpush1.bf16.xpose.msra.mxu0 0
    %1234 = vmatprep.subr.bf16.mxu0 0
    %1235 = vmatpush1.bf16.xpose.msra.mxu0 0
    %1236 = vmatprep.subr.bf16.mxu0 0
    %1237 = vmatpush1.bf16.xpose.msra.mxu0 0
    %1238 = vmatprep.subr.bf16.mxu0 0
    %1239 = vmatpush1.bf16.xpose.msra.mxu0 0
    %1240 = vmatprep.subr.bf16.mxu0 0
    %1241 = vmatpush1.bf16.xpose.msra.mxu0 0
    %1242 = vmatprep.subr.bf16.mxu0 0
    %1243 = vmatpush1.bf16.xpose.msra.mxu0 0
    %1244 = vmatprep.subr.bf16.mxu0 0
    %1245 = vmatpush1.bf16.xpose.msra.mxu0 %v1228
    %1246 = vmatprep.subr.bf16.mxu0 0
    %1247 = vmatpush2.bf16.xpose.msra.mxu0 0
    %1248 = vmatprep.subr.bf16.mxu0 0
    %1249 = vmatpush2.bf16.xpose.msra.mxu0 0
    %1250 = vmatprep.subr.bf16.mxu0 0
    %1251 = vmatpush2.bf16.xpose.msra.mxu0 0
    %1252 = vmatprep.subr.bf16.mxu0 0
    %1253 = vmatpush2.bf16.xpose.msra.mxu0 0
    %1254 = vmatprep.subr.bf16.mxu0 0
    %1255 = vmatpush2.bf16.xpose.msra.mxu0 0
    %1256 = vmatprep.subr.bf16.mxu0 0
    %1257 = vmatpush2.bf16.xpose.msra.mxu0 0
    %1258 = vmatprep.subr.bf16.mxu0 0
    %1259 = vmatpush2.bf16.xpose.msra.mxu0 0
    %1260 = vmatprep.subr.bf16.mxu0 0
    %1261 = vmatpush2.bf16.xpose.msra.mxu0 0
    %1262 = vmatprep.mubr.bf16.mxu0 0
    %1263 = vmatmul.mubr.bf16.gmra.mxu0 %v1225
    %v1264 = vpop.f32.mrf.mxu0
    %v1265 = vadd.f32 0.0, %v1264
    %v1266 = vpop.f32.mrf.mxu0
    %v1267 = vpop.f32.mrf.mxu0
    %v1268 = vpop.f32.mrf.mxu0
    %1269 = vdwg.mxu0
    %v1271 = vsel %vm1223, %v644, 0
    %v1274 = vsel %vm1223, %v924, 0
    %1276 = vmatprep.subr.bf16.mxu0 0
    %1277 = vmatpush1.bf16.xpose.msra.mxu0 0
    %1278 = vmatprep.subr.bf16.mxu0 0
    %1279 = vmatpush1.bf16.xpose.msra.mxu0 0
    %1280 = vmatprep.subr.bf16.mxu0 0
    %1281 = vmatpush1.bf16.xpose.msra.mxu0 0
    %1282 = vmatprep.subr.bf16.mxu0 0
    %1283 = vmatpush1.bf16.xpose.msra.mxu0 0
    %1284 = vmatprep.subr.bf16.mxu0 0
    %1285 = vmatpush1.bf16.xpose.msra.mxu0 0
    %1286 = vmatprep.subr.bf16.mxu0 0
    %1287 = vmatpush1.bf16.xpose.msra.mxu0 0
    %1288 = vmatprep.subr.bf16.mxu0 0
    %1289 = vmatpush1.bf16.xpose.msra.mxu0 0
    %1290 = vmatprep.subr.bf16.mxu0 0
    %1291 = vmatpush1.bf16.xpose.msra.mxu0 %v1274
    %1292 = vmatprep.subr.bf16.mxu0 0
    %1293 = vmatpush2.bf16.xpose.msra.mxu0 0
    %1294 = vmatprep.subr.bf16.mxu0 0
    %1295 = vmatpush2.bf16.xpose.msra.mxu0 0
    %1296 = vmatprep.subr.bf16.mxu0 0
    %1297 = vmatpush2.bf16.xpose.msra.mxu0 0
    %1298 = vmatprep.subr.bf16.mxu0 0
    %1299 = vmatpush2.bf16.xpose.msra.mxu0 0
    %1300 = vmatprep.subr.bf16.mxu0 0
    %1301 = vmatpush2.bf16.xpose.msra.mxu0 0
    %1302 = vmatprep.subr.bf16.mxu0 0
    %1303 = vmatpush2.bf16.xpose.msra.mxu0 0
    %1304 = vmatprep.subr.bf16.mxu0 0
    %1305 = vmatpush2.bf16.xpose.msra.mxu0 0
    %1306 = vmatprep.subr.bf16.mxu0 0
    %1307 = vmatpush2.bf16.xpose.msra.mxu0 0
    %1308 = vmatprep.mubr.bf16.mxu0 0
    %1309 = vmatmul.mubr.bf16.gmra.mxu0 %v1271
    %v1310 = vpop.f32.mrf.mxu0
    %v1311 = vadd.f32 0.0, %v1310
    %v1312 = vpop.f32.mrf.mxu0
    %v1313 = vpop.f32.mrf.mxu0
    %v1314 = vpop.f32.mrf.mxu0
    %1315 = vdwg.mxu0
    %v1317 = vsel %vm1223, %v647, 0
    %v1320 = vsel %vm1223, %v927, 0
    %1322 = vmatprep.subr.bf16.mxu0 0
    %1323 = vmatpush1.bf16.xpose.msra.mxu0 0
    %1324 = vmatprep.subr.bf16.mxu0 0
    %1325 = vmatpush1.bf16.xpose.msra.mxu0 0
    %1326 = vmatprep.subr.bf16.mxu0 0
    %1327 = vmatpush1.bf16.xpose.msra.mxu0 0
    %1328 = vmatprep.subr.bf16.mxu0 0
    %1329 = vmatpush1.bf16.xpose.msra.mxu0 0
    %1330 = vmatprep.subr.bf16.mxu0 0
    %1331 = vmatpush1.bf16.xpose.msra.mxu0 0
    %1332 = vmatprep.subr.bf16.mxu0 0
    %1333 = vmatpush1.bf16.xpose.msra.mxu0 0
    %1334 = vmatprep.subr.bf16.mxu0 0
    %1335 = vmatpush1.bf16.xpose.msra.mxu0 0
    %1336 = vmatprep.subr.bf16.mxu0 0
    %1337 = vmatpush1.bf16.xpose.msra.mxu0 %v1320
    %1338 = vmatprep.subr.bf16.mxu0 0
    %1339 = vmatpush2.bf16.xpose.msra.mxu0 0
    %1340 = vmatprep.subr.bf16.mxu0 0
    %1341 = vmatpush2.bf16.xpose.msra.mxu0 0
    %1342 = vmatprep.subr.bf16.mxu0 0
    %1343 = vmatpush2.bf16.xpose.msra.mxu0 0
    %1344 = vmatprep.subr.bf16.mxu0 0
    %1345 = vmatpush2.bf16.xpose.msra.mxu0 0
    %1346 = vmatprep.subr.bf16.mxu0 0
    %1347 = vmatpush2.bf16.xpose.msra.mxu0 0
    %1348 = vmatprep.subr.bf16.mxu0 0
    %1349 = vmatpush2.bf16.xpose.msra.mxu0 0
    %1350 = vmatprep.subr.bf16.mxu0 0
    %1351 = vmatpush2.bf16.xpose.msra.mxu0 0
    %1352 = vmatprep.subr.bf16.mxu0 0
    %1353 = vmatpush2.bf16.xpose.msra.mxu0 0
    %1354 = vmatprep.mubr.bf16.mxu0 0
    %1355 = vmatmul.mubr.bf16.gmra.mxu0 %v1317
    %v1356 = vpop.f32.mrf.mxu0
    %v1357 = vadd.f32 0.0, %v1356
    %v1358 = vpop.f32.mrf.mxu0
    %v1359 = vpop.f32.mrf.mxu0
    %v1360 = vpop.f32.mrf.mxu0
    %1361 = vdwg.mxu0
    %v1363 = vsel %vm1223, %v650, 0
    %v1366 = vsel %vm1223, %v930, 0
    %1368 = vmatprep.subr.bf16.mxu0 0
    %1369 = vmatpush1.bf16.xpose.msra.mxu0 0
    %1370 = vmatprep.subr.bf16.mxu0 0
    %1371 = vmatpush1.bf16.xpose.msra.mxu0 0
    %1372 = vmatprep.subr.bf16.mxu0 0
    %1373 = vmatpush1.bf16.xpose.msra.mxu0 0
    %1374 = vmatprep.subr.bf16.mxu0 0
    %1375 = vmatpush1.bf16.xpose.msra.mxu0 0
    %1376 = vmatprep.subr.bf16.mxu0 0
    %1377 = vmatpush1.bf16.xpose.msra.mxu0 0
    %1378 = vmatprep.subr.bf16.mxu0 0
    %1379 = vmatpush1.bf16.xpose.msra.mxu0 0
    %1380 = vmatprep.subr.bf16.mxu0 0
    %1381 = vmatpush1.bf16.xpose.msra.mxu0 0
    %1382 = vmatprep.subr.bf16.mxu0 0
    %1383 = vmatpush1.bf16.xpose.msra.mxu0 %v1366
    %1384 = vmatprep.subr.bf16.mxu0 0
    %1385 = vmatpush2.bf16.xpose.msra.mxu0 0
    %1386 = vmatprep.subr.bf16.mxu0 0
    %1387 = vmatpush2.bf16.xpose.msra.mxu0 0
    %1388 = vmatprep.subr.bf16.mxu0 0
    %1389 = vmatpush2.bf16.xpose.msra.mxu0 0
    %1390 = vmatprep.subr.bf16.mxu0 0
    %1391 = vmatpush2.bf16.xpose.msra.mxu0 0
    %1392 = vmatprep.subr.bf16.mxu0 0
    %1393 = vmatpush2.bf16.xpose.msra.mxu0 0
    %1394 = vmatprep.subr.bf16.mxu0 0
    %1395 = vmatpush2.bf16.xpose.msra.mxu0 0
    %1396 = vmatprep.subr.bf16.mxu0 0
    %1397 = vmatpush2.bf16.xpose.msra.mxu0 0
    %1398 = vmatprep.subr.bf16.mxu0 0
    %1399 = vmatpush2.bf16.xpose.msra.mxu0 0
    %1400 = vmatprep.mubr.bf16.mxu0 0
    %1401 = vmatmul.mubr.bf16.gmra.mxu0 %v1363
    %v1402 = vpop.f32.mrf.mxu0
    %v1403 = vadd.f32 0.0, %v1402
    %v1404 = vpop.f32.mrf.mxu0
    %v1405 = vpop.f32.mrf.mxu0
    %v1406 = vpop.f32.mrf.mxu0
    %1407 = vdwg.mxu0
    %v1409 = vsel %vm1223, %v653, 0
    %v1412 = vsel %vm1223, %v933, 0
    %1414 = vmatprep.subr.bf16.mxu0 0
    %1415 = vmatpush1.bf16.xpose.msra.mxu0 0
    %1416 = vmatprep.subr.bf16.mxu0 0
    %1417 = vmatpush1.bf16.xpose.msra.mxu0 0
    %1418 = vmatprep.subr.bf16.mxu0 0
    %1419 = vmatpush1.bf16.xpose.msra.mxu0 0
    %1420 = vmatprep.subr.bf16.mxu0 0
    %1421 = vmatpush1.bf16.xpose.msra.mxu0 0
    %1422 = vmatprep.subr.bf16.mxu0 0
    %1423 = vmatpush1.bf16.xpose.msra.mxu0 0
    %1424 = vmatprep.subr.bf16.mxu0 0
    %1425 = vmatpush1.bf16.xpose.msra.mxu0 0
    %1426 = vmatprep.subr.bf16.mxu0 0
    %1427 = vmatpush1.bf16.xpose.msra.mxu0 0
    %1428 = vmatprep.subr.bf16.mxu0 0
    %1429 = vmatpush1.bf16.xpose.msra.mxu0 %v1412
    %1430 = vmatprep.subr.bf16.mxu0 0
    %1431 = vmatpush2.bf16.xpose.msra.mxu0 0
    %1432 = vmatprep.subr.bf16.mxu0 0
    %1433 = vmatpush2.bf16.xpose.msra.mxu0 0
    %1434 = vmatprep.subr.bf16.mxu0 0
    %1435 = vmatpush2.bf16.xpose.msra.mxu0 0
    %1436 = vmatprep.subr.bf16.mxu0 0
    %1437 = vmatpush2.bf16.xpose.msra.mxu0 0
    %1438 = vmatprep.subr.bf16.mxu0 0
    %1439 = vmatpush2.bf16.xpose.msra.mxu0 0
    %1440 = vmatprep.subr.bf16.mxu0 0
    %1441 = vmatpush2.bf16.xpose.msra.mxu0 0
    %1442 = vmatprep.subr.bf16.mxu0 0
    %1443 = vmatpush2.bf16.xpose.msra.mxu0 0
    %1444 = vmatprep.subr.bf16.mxu0 0
    %1445 = vmatpush2.bf16.xpose.msra.mxu0 0
    %1446 = vmatprep.mubr.bf16.mxu0 0
    %1447 = vmatmul.mubr.bf16.gmra.mxu0 %v1409
    %v1448 = vpop.f32.mrf.mxu0
    %v1449 = vadd.f32 0.0, %v1448
    %v1450 = vpop.f32.mrf.mxu0
    %v1451 = vpop.f32.mrf.mxu0
    %v1452 = vpop.f32.mrf.mxu0
    %1453 = vdwg.mxu0
    %v1455 = vsel %vm1223, %v656, 0
    %v1458 = vsel %vm1223, %v936, 0
    %1460 = vmatprep.subr.bf16.mxu0 0
    %1461 = vmatpush1.bf16.xpose.msra.mxu0 0
    %1462 = vmatprep.subr.bf16.mxu0 0
    %1463 = vmatpush1.bf16.xpose.msra.mxu0 0
    %1464 = vmatprep.subr.bf16.mxu0 0
    %1465 = vmatpush1.bf16.xpose.msra.mxu0 0
    %1466 = vmatprep.subr.bf16.mxu0 0
    %1467 = vmatpush1.bf16.xpose.msra.mxu0 0
    %1468 = vmatprep.subr.bf16.mxu0 0
    %1469 = vmatpush1.bf16.xpose.msra.mxu0 0
    %1470 = vmatprep.subr.bf16.mxu0 0
    %1471 = vmatpush1.bf16.xpose.msra.mxu0 0
    %1472 = vmatprep.subr.bf16.mxu0 0
    %1473 = vmatpush1.bf16.xpose.msra.mxu0 0
    %1474 = vmatprep.subr.bf16.mxu0 0
    %1475 = vmatpush1.bf16.xpose.msra.mxu0 %v1458
    %1476 = vmatprep.subr.bf16.mxu0 0
    %1477 = vmatpush2.bf16.xpose.msra.mxu0 0
    %1478 = vmatprep.subr.bf16.mxu0 0
    %1479 = vmatpush2.bf16.xpose.msra.mxu0 0
    %1480 = vmatprep.subr.bf16.mxu0 0
    %1481 = vmatpush2.bf16.xpose.msra.mxu0 0
    %1482 = vmatprep.subr.bf16.mxu0 0
    %1483 = vmatpush2.bf16.xpose.msra.mxu0 0
    %1484 = vmatprep.subr.bf16.mxu0 0
    %1485 = vmatpush2.bf16.xpose.msra.mxu0 0
    %1486 = vmatprep.subr.bf16.mxu0 0
    %1487 = vmatpush2.bf16.xpose.msra.mxu0 0
    %1488 = vmatprep.subr.bf16.mxu0 0
    %1489 = vmatpush2.bf16.xpose.msra.mxu0 0
    %1490 = vmatprep.subr.bf16.mxu0 0
    %1491 = vmatpush2.bf16.xpose.msra.mxu0 0
    %1492 = vmatprep.mubr.bf16.mxu0 0
    %1493 = vmatmul.mubr.bf16.gmra.mxu0 %v1455
    %v1494 = vpop.f32.mrf.mxu0
    %v1495 = vadd.f32 0.0, %v1494
    %v1496 = vpop.f32.mrf.mxu0
    %v1497 = vpop.f32.mrf.mxu0
    %v1498 = vpop.f32.mrf.mxu0
    %1499 = vdwg.mxu0
    %v1501 = vsel %vm1223, %v659, 0
    %v1504 = vsel %vm1223, %v939, 0
    %1506 = vmatprep.subr.bf16.mxu0 0
    %1507 = vmatpush1.bf16.xpose.msra.mxu0 0
    %1508 = vmatprep.subr.bf16.mxu0 0
    %1509 = vmatpush1.bf16.xpose.msra.mxu0 0
    %1510 = vmatprep.subr.bf16.mxu0 0
    %1511 = vmatpush1.bf16.xpose.msra.mxu0 0
    %1512 = vmatprep.subr.bf16.mxu0 0
    %1513 = vmatpush1.bf16.xpose.msra.mxu0 0
    %1514 = vmatprep.subr.bf16.mxu0 0
    %1515 = vmatpush1.bf16.xpose.msra.mxu0 0
    %1516 = vmatprep.subr.bf16.mxu0 0
    %1517 = vmatpush1.bf16.xpose.msra.mxu0 0
    %1518 = vmatprep.subr.bf16.mxu0 0
    %1519 = vmatpush1.bf16.xpose.msra.mxu0 0
    %1520 = vmatprep.subr.bf16.mxu0 0
    %1521 = vmatpush1.bf16.xpose.msra.mxu0 %v1504
    %1522 = vmatprep.subr.bf16.mxu0 0
    %1523 = vmatpush2.bf16.xpose.msra.mxu0 0
    %1524 = vmatprep.subr.bf16.mxu0 0
    %1525 = vmatpush2.bf16.xpose.msra.mxu0 0
    %1526 = vmatprep.subr.bf16.mxu0 0
    %1527 = vmatpush2.bf16.xpose.msra.mxu0 0
    %1528 = vmatprep.subr.bf16.mxu0 0
    %1529 = vmatpush2.bf16.xpose.msra.mxu0 0
    %1530 = vmatprep.subr.bf16.mxu0 0
    %1531 = vmatpush2.bf16.xpose.msra.mxu0 0
    %1532 = vmatprep.subr.bf16.mxu0 0
    %1533 = vmatpush2.bf16.xpose.msra.mxu0 0
    %1534 = vmatprep.subr.bf16.mxu0 0
    %1535 = vmatpush2.bf16.xpose.msra.mxu0 0
    %1536 = vmatprep.subr.bf16.mxu0 0
    %1537 = vmatpush2.bf16.xpose.msra.mxu0 0
    %1538 = vmatprep.mubr.bf16.mxu0 0
    %1539 = vmatmul.mubr.bf16.gmra.mxu0 %v1501
    %v1540 = vpop.f32.mrf.mxu0
    %v1541 = vadd.f32 0.0, %v1540
    %v1542 = vpop.f32.mrf.mxu0
    %v1543 = vpop.f32.mrf.mxu0
    %v1544 = vpop.f32.mrf.mxu0
    %1545 = vdwg.mxu0
    %v1547 = vsel %vm1223, %v662, 0
    %v1550 = vsel %vm1223, %v942, 0
    %1552 = vmatprep.subr.bf16.mxu0 0
    %1553 = vmatpush1.bf16.xpose.msra.mxu0 0
    %1554 = vmatprep.subr.bf16.mxu0 0
    %1555 = vmatpush1.bf16.xpose.msra.mxu0 0
    %1556 = vmatprep.subr.bf16.mxu0 0
    %1557 = vmatpush1.bf16.xpose.msra.mxu0 0
    %1558 = vmatprep.subr.bf16.mxu0 0
    %1559 = vmatpush1.bf16.xpose.msra.mxu0 0
    %1560 = vmatprep.subr.bf16.mxu0 0
    %1561 = vmatpush1.bf16.xpose.msra.mxu0 0
    %1562 = vmatprep.subr.bf16.mxu0 0
    %1563 = vmatpush1.bf16.xpose.msra.mxu0 0
    %1564 = vmatprep.subr.bf16.mxu0 0
    %1565 = vmatpush1.bf16.xpose.msra.mxu0 0
    %1566 = vmatprep.subr.bf16.mxu0 0
    %1567 = vmatpush1.bf16.xpose.msra.mxu0 %v1550
    %1568 = vmatprep.subr.bf16.mxu0 0
    %1569 = vmatpush2.bf16.xpose.msra.mxu0 0
    %1570 = vmatprep.subr.bf16.mxu0 0
    %1571 = vmatpush2.bf16.xpose.msra.mxu0 0
    %1572 = vmatprep.subr.bf16.mxu0 0
    %1573 = vmatpush2.bf16.xpose.msra.mxu0 0
    %1574 = vmatprep.subr.bf16.mxu0 0
    %1575 = vmatpush2.bf16.xpose.msra.mxu0 0
    %1576 = vmatprep.subr.bf16.mxu0 0
    %1577 = vmatpush2.bf16.xpose.msra.mxu0 0
    %1578 = vmatprep.subr.bf16.mxu0 0
    %1579 = vmatpush2.bf16.xpose.msra.mxu0 0
    %1580 = vmatprep.subr.bf16.mxu0 0
    %1581 = vmatpush2.bf16.xpose.msra.mxu0 0
    %1582 = vmatprep.subr.bf16.mxu0 0
    %1583 = vmatpush2.bf16.xpose.msra.mxu0 0
    %1584 = vmatprep.mubr.bf16.mxu0 0
    %1585 = vmatmul.mubr.bf16.gmra.mxu0 %v1547
    %v1586 = vpop.f32.mrf.mxu0
    %v1587 = vadd.f32 0.0, %v1586
    %v1588 = vpop.f32.mrf.mxu0
    %v1589 = vpop.f32.mrf.mxu0
    %v1590 = vpop.f32.mrf.mxu0
    %1591 = vdwg.mxu0
    %vm1592 = vcmask 64512
    %v1593 = vsel %vm1592, %v1265, -inf
    %1594 = vmax.xlane.f32.xlu0 %v1593
    %v1595 = vpop.xlane.xlu0 %1594
    %v1596 = vsel %vm1592, %v1311, -inf
    %1597 = vmax.xlane.f32.xlu0 %v1596
    %v1598 = vpop.xlane.xlu0 %1597
    %v1599 = vsel %vm1592, %v1357, -inf
    %1600 = vmax.xlane.f32.xlu0 %v1599
    %v1601 = vpop.xlane.xlu0 %1600
    %v1602 = vsel %vm1592, %v1403, -inf
    %1603 = vmax.xlane.f32.xlu0 %v1602
    %v1604 = vpop.xlane.xlu0 %1603
    %v1605 = vsel %vm1592, %v1449, -inf
    %1606 = vmax.xlane.f32.xlu0 %v1605
    %v1607 = vpop.xlane.xlu0 %1606
    %v1608 = vsel %vm1592, %v1495, -inf
    %1609 = vmax.xlane.f32.xlu0 %v1608
    %v1610 = vpop.xlane.xlu0 %1609
    %v1611 = vsel %vm1592, %v1541, -inf
    %1612 = vmax.xlane.f32.xlu0 %v1611
    %v1613 = vpop.xlane.xlu0 %1612
    %v1614 = vsel %vm1592, %v1587, -inf
    %1615 = vmax.xlane.f32.xlu0 %v1614
    %v1616 = vpop.xlane.xlu0 %1615
    %v1617 = vsub.f32 %v1265, %v1595
    %v1618 = vsub.f32 %v1311, %v1598
    %v1619 = vsub.f32 %v1357, %v1601
    %v1620 = vsub.f32 %v1403, %v1604
    %v1621 = vsub.f32 %v1449, %v1607
    %v1622 = vsub.f32 %v1495, %v1610
    %v1623 = vsub.f32 %v1541, %v1613
    %v1624 = vsub.f32 %v1587, %v1616
    %v1625 = vmul.f32 %v1617, 1.442695
    %v1626 = vpow.pop %v1625
    %v1627 = vmul.f32 %v1618, 1.442695
    %v1628 = vpow.pop %v1627
    %v1629 = vmul.f32 %v1619, 1.442695
    %v1630 = vpow.pop %v1629
    %v1631 = vmul.f32 %v1620, 1.442695
    %v1632 = vpow.pop %v1631
    %v1633 = vmul.f32 %v1621, 1.442695
    %v1634 = vpow.pop %v1633
    %v1635 = vmul.f32 %v1622, 1.442695
    %v1636 = vpow.pop %v1635
    %v1637 = vmul.f32 %v1623, 1.442695
    %v1638 = vpow.pop %v1637
    %v1639 = vmul.f32 %v1624, 1.442695
    %v1640 = vpow.pop %v1639
    %v1641 = vsel %vm1592, %v1626, 0.0
    %1642 = vadd.xlane.f32.xlu0 %v1641
    %v1643 = vpop.xlane.xlu0 %1642
    %v1644 = vsel %vm1592, %v1628, 0.0
    %1645 = vadd.xlane.f32.xlu0 %v1644
    %v1646 = vpop.xlane.xlu0 %1645
    %v1647 = vsel %vm1592, %v1630, 0.0
    %1648 = vadd.xlane.f32.xlu0 %v1647
    %v1649 = vpop.xlane.xlu0 %1648
    %v1650 = vsel %vm1592, %v1632, 0.0
    %1651 = vadd.xlane.f32.xlu0 %v1650
    %v1652 = vpop.xlane.xlu0 %1651
    %v1653 = vsel %vm1592, %v1634, 0.0
    %1654 = vadd.xlane.f32.xlu0 %v1653
    %v1655 = vpop.xlane.xlu0 %1654
    %v1656 = vsel %vm1592, %v1636, 0.0
    %1657 = vadd.xlane.f32.xlu0 %v1656
    %v1658 = vpop.xlane.xlu0 %1657
    %v1659 = vsel %vm1592, %v1638, 0.0
    %1660 = vadd.xlane.f32.xlu0 %v1659
    %v1661 = vpop.xlane.xlu0 %1660
    %v1662 = vsel %vm1592, %v1640, 0.0
    %1663 = vadd.xlane.f32.xlu0 %v1662
    %v1664 = vpop.xlane.xlu0 %1663
    %v1665 = vrcp.pop %v1643
    %v1666 = vrcp.pop %v1646
    %v1667 = vrcp.pop %v1649
    %v1668 = vrcp.pop %v1652
    %v1669 = vrcp.pop %v1655
    %v1670 = vrcp.pop %v1658
    %v1671 = vrcp.pop %v1661
    %v1672 = vrcp.pop %v1664
    %v1673 = vmul.f32 %v1626, %v1665
    %v1674 = vmul.f32 %v1628, %v1666
    %v1675 = vmul.f32 %v1630, %v1667
    %v1676 = vmul.f32 %v1632, %v1668
    %v1677 = vmul.f32 %v1634, %v1669
    %v1678 = vmul.f32 %v1636, %v1670
    %v1679 = vmul.f32 %v1638, %v1671
    %v1680 = vmul.f32 %v1640, %v1672
    %v1681 = vpack.c.bf16 %v1673, %v1673
    %v1682 = vpack.c.bf16 %v1674, %v1674
    %v1683 = vpack.c.bf16 %v1675, %v1675
    %v1684 = vpack.c.bf16 %v1676, %v1676
    %v1685 = vpack.c.bf16 %v1677, %v1677
    %v1686 = vpack.c.bf16 %v1678, %v1678
    %v1687 = vpack.c.bf16 %v1679, %v1679
    %v1688 = vpack.c.bf16 %v1680, %v1680
    %v1690 = vsel %vm1592, %v1681, 0
    %vm1692 = vcmask 1043456
    %v1694 = vsel %vm1692, %v1201, 0
    %1696 = vmatprep.subr.bf16.mxu0 0
    %1697 = vmatpush1.bf16.msra.mxu0 0
    %1698 = vmatprep.subr.bf16.mxu0 0
    %1699 = vmatpush1.bf16.msra.mxu0 0
    %1700 = vmatprep.subr.bf16.mxu0 0
    %1701 = vmatpush1.bf16.msra.mxu0 0
    %1702 = vmatprep.subr.bf16.mxu0 0
    %1703 = vmatpush1.bf16.msra.mxu0 0
    %1704 = vmatprep.subr.bf16.mxu0 0
    %1705 = vmatpush1.bf16.msra.mxu0 0
    %1706 = vmatprep.subr.bf16.mxu0 0
    %1707 = vmatpush1.bf16.msra.mxu0 0
    %1708 = vmatprep.subr.bf16.mxu0 0
    %1709 = vmatpush1.bf16.msra.mxu0 0
    %1710 = vmatprep.subr.bf16.mxu0 0
    %1711 = vmatpush1.bf16.msra.mxu0 %v1694
    %1712 = vmatprep.subr.bf16.mxu0 0
    %1713 = vmatpush2.bf16.msra.mxu0 0
    %1714 = vmatprep.subr.bf16.mxu0 0
    %1715 = vmatpush2.bf16.msra.mxu0 0
    %1716 = vmatprep.subr.bf16.mxu0 0
    %1717 = vmatpush2.bf16.msra.mxu0 0
    %1718 = vmatprep.subr.bf16.mxu0 0
    %1719 = vmatpush2.bf16.msra.mxu0 0
    %1720 = vmatprep.subr.bf16.mxu0 0
    %1721 = vmatpush2.bf16.msra.mxu0 0
    %1722 = vmatprep.subr.bf16.mxu0 0
    %1723 = vmatpush2.bf16.msra.mxu0 0
    %1724 = vmatprep.subr.bf16.mxu0 0
    %1725 = vmatpush2.bf16.msra.mxu0 0
    %1726 = vmatprep.subr.bf16.mxu0 0
    %1727 = vmatpush2.bf16.msra.mxu0 0
    %1728 = vmatprep.mubr.bf16.mxu0 0
    %1729 = vmatmul.mubr.bf16.gmra.mxu0 %v1690
    %v1730 = vpop.f32.mrf.mxu0
    %v1731 = vadd.f32 0.0, %v1730
    %v1732 = vpop.f32.mrf.mxu0
    %v1733 = vpop.f32.mrf.mxu0
    %v1734 = vpop.f32.mrf.mxu0
    %1735 = vdwg.mxu0
    %v1737 = vsel %vm1592, %v1682, 0
    %v1740 = vsel %vm1692, %v1204, 0
    %1742 = vmatprep.subr.bf16.mxu0 0
    %1743 = vmatpush1.bf16.msra.mxu0 0
    %1744 = vmatprep.subr.bf16.mxu0 0
    %1745 = vmatpush1.bf16.msra.mxu0 0
    %1746 = vmatprep.subr.bf16.mxu0 0
    %1747 = vmatpush1.bf16.msra.mxu0 0
    %1748 = vmatprep.subr.bf16.mxu0 0
    %1749 = vmatpush1.bf16.msra.mxu0 0
    %1750 = vmatprep.subr.bf16.mxu0 0
    %1751 = vmatpush1.bf16.msra.mxu0 0
    %1752 = vmatprep.subr.bf16.mxu0 0
    %1753 = vmatpush1.bf16.msra.mxu0 0
    %1754 = vmatprep.subr.bf16.mxu0 0
    %1755 = vmatpush1.bf16.msra.mxu0 0
    %1756 = vmatprep.subr.bf16.mxu0 0
    %1757 = vmatpush1.bf16.msra.mxu0 %v1740
    %1758 = vmatprep.subr.bf16.mxu0 0
    %1759 = vmatpush2.bf16.msra.mxu0 0
    %1760 = vmatprep.subr.bf16.mxu0 0
    %1761 = vmatpush2.bf16.msra.mxu0 0
    %1762 = vmatprep.subr.bf16.mxu0 0
    %1763 = vmatpush2.bf16.msra.mxu0 0
    %1764 = vmatprep.subr.bf16.mxu0 0
    %1765 = vmatpush2.bf16.msra.mxu0 0
    %1766 = vmatprep.subr.bf16.mxu0 0
    %1767 = vmatpush2.bf16.msra.mxu0 0
    %1768 = vmatprep.subr.bf16.mxu0 0
    %1769 = vmatpush2.bf16.msra.mxu0 0
    %1770 = vmatprep.subr.bf16.mxu0 0
    %1771 = vmatpush2.bf16.msra.mxu0 0
    %1772 = vmatprep.subr.bf16.mxu0 0
    %1773 = vmatpush2.bf16.msra.mxu0 0
    %1774 = vmatprep.mubr.bf16.mxu0 0
    %1775 = vmatmul.mubr.bf16.gmra.mxu0 %v1737
    %v1776 = vpop.f32.mrf.mxu0
    %v1777 = vadd.f32 0.0, %v1776
    %v1778 = vpop.f32.mrf.mxu0
    %v1779 = vpop.f32.mrf.mxu0
    %v1780 = vpop.f32.mrf.mxu0
    %1781 = vdwg.mxu0
    %v1783 = vsel %vm1592, %v1683, 0
    %v1786 = vsel %vm1692, %v1207, 0
    %1788 = vmatprep.subr.bf16.mxu0 0
    %1789 = vmatpush1.bf16.msra.mxu0 0
    %1790 = vmatprep.subr.bf16.mxu0 0
    %1791 = vmatpush1.bf16.msra.mxu0 0
    %1792 = vmatprep.subr.bf16.mxu0 0
    %1793 = vmatpush1.bf16.msra.mxu0 0
    %1794 = vmatprep.subr.bf16.mxu0 0
    %1795 = vmatpush1.bf16.msra.mxu0 0
    %1796 = vmatprep.subr.bf16.mxu0 0
    %1797 = vmatpush1.bf16.msra.mxu0 0
    %1798 = vmatprep.subr.bf16.mxu0 0
    %1799 = vmatpush1.bf16.msra.mxu0 0
    %1800 = vmatprep.subr.bf16.mxu0 0
    %1801 = vmatpush1.bf16.msra.mxu0 0
    %1802 = vmatprep.subr.bf16.mxu0 0
    %1803 = vmatpush1.bf16.msra.mxu0 %v1786
    %1804 = vmatprep.subr.bf16.mxu0 0
    %1805 = vmatpush2.bf16.msra.mxu0 0
    %1806 = vmatprep.subr.bf16.mxu0 0
    %1807 = vmatpush2.bf16.msra.mxu0 0
    %1808 = vmatprep.subr.bf16.mxu0 0
    %1809 = vmatpush2.bf16.msra.mxu0 0
    %1810 = vmatprep.subr.bf16.mxu0 0
    %1811 = vmatpush2.bf16.msra.mxu0 0
    %1812 = vmatprep.subr.bf16.mxu0 0
    %1813 = vmatpush2.bf16.msra.mxu0 0
    %1814 = vmatprep.subr.bf16.mxu0 0
    %1815 = vmatpush2.bf16.msra.mxu0 0
    %1816 = vmatprep.subr.bf16.mxu0 0
    %1817 = vmatpush2.bf16.msra.mxu0 0
    %1818 = vmatprep.subr.bf16.mxu0 0
    %1819 = vmatpush2.bf16.msra.mxu0 0
    %1820 = vmatprep.mubr.bf16.mxu0 0
    %1821 = vmatmul.mubr.bf16.gmra.mxu0 %v1783
    %v1822 = vpop.f32.mrf.mxu0
    %v1823 = vadd.f32 0.0, %v1822
    %v1824 = vpop.f32.mrf.mxu0
    %v1825 = vpop.f32.mrf.mxu0
    %v1826 = vpop.f32.mrf.mxu0
    %1827 = vdwg.mxu0
    %v1829 = vsel %vm1592, %v1684, 0
    %v1832 = vsel %vm1692, %v1210, 0
    %1834 = vmatprep.subr.bf16.mxu0 0
    %1835 = vmatpush1.bf16.msra.mxu0 0
    %1836 = vmatprep.subr.bf16.mxu0 0
    %1837 = vmatpush1.bf16.msra.mxu0 0
    %1838 = vmatprep.subr.bf16.mxu0 0
    %1839 = vmatpush1.bf16.msra.mxu0 0
    %1840 = vmatprep.subr.bf16.mxu0 0
    %1841 = vmatpush1.bf16.msra.mxu0 0
    %1842 = vmatprep.subr.bf16.mxu0 0
    %1843 = vmatpush1.bf16.msra.mxu0 0
    %1844 = vmatprep.subr.bf16.mxu0 0
    %1845 = vmatpush1.bf16.msra.mxu0 0
    %1846 = vmatprep.subr.bf16.mxu0 0
    %1847 = vmatpush1.bf16.msra.mxu0 0
    %1848 = vmatprep.subr.bf16.mxu0 0
    %1849 = vmatpush1.bf16.msra.mxu0 %v1832
    %1850 = vmatprep.subr.bf16.mxu0 0
    %1851 = vmatpush2.bf16.msra.mxu0 0
    %1852 = vmatprep.subr.bf16.mxu0 0
    %1853 = vmatpush2.bf16.msra.mxu0 0
    %1854 = vmatprep.subr.bf16.mxu0 0
    %1855 = vmatpush2.bf16.msra.mxu0 0
    %1856 = vmatprep.subr.bf16.mxu0 0
    %1857 = vmatpush2.bf16.msra.mxu0 0
    %1858 = vmatprep.subr.bf16.mxu0 0
    %1859 = vmatpush2.bf16.msra.mxu0 0
    %1860 = vmatprep.subr.bf16.mxu0 0
    %1861 = vmatpush2.bf16.msra.mxu0 0
    %1862 = vmatprep.subr.bf16.mxu0 0
    %1863 = vmatpush2.bf16.msra.mxu0 0
    %1864 = vmatprep.subr.bf16.mxu0 0
    %1865 = vmatpush2.bf16.msra.mxu0 0
    %1866 = vmatprep.mubr.bf16.mxu0 0
    %1867 = vmatmul.mubr.bf16.gmra.mxu0 %v1829
    %v1868 = vpop.f32.mrf.mxu0
    %v1869 = vadd.f32 0.0, %v1868
    %v1870 = vpop.f32.mrf.mxu0
    %v1871 = vpop.f32.mrf.mxu0
    %v1872 = vpop.f32.mrf.mxu0
    %1873 = vdwg.mxu0
    %v1875 = vsel %vm1592, %v1685, 0
    %v1878 = vsel %vm1692, %v1213, 0
    %1880 = vmatprep.subr.bf16.mxu0 0
    %1881 = vmatpush1.bf16.msra.mxu0 0
    %1882 = vmatprep.subr.bf16.mxu0 0
    %1883 = vmatpush1.bf16.msra.mxu0 0
    %1884 = vmatprep.subr.bf16.mxu0 0
    %1885 = vmatpush1.bf16.msra.mxu0 0
    %1886 = vmatprep.subr.bf16.mxu0 0
    %1887 = vmatpush1.bf16.msra.mxu0 0
    %1888 = vmatprep.subr.bf16.mxu0 0
    %1889 = vmatpush1.bf16.msra.mxu0 0
    %1890 = vmatprep.subr.bf16.mxu0 0
    %1891 = vmatpush1.bf16.msra.mxu0 0
    %1892 = vmatprep.subr.bf16.mxu0 0
    %1893 = vmatpush1.bf16.msra.mxu0 0
    %1894 = vmatprep.subr.bf16.mxu0 0
    %1895 = vmatpush1.bf16.msra.mxu0 %v1878
    %1896 = vmatprep.subr.bf16.mxu0 0
    %1897 = vmatpush2.bf16.msra.mxu0 0
    %1898 = vmatprep.subr.bf16.mxu0 0
    %1899 = vmatpush2.bf16.msra.mxu0 0
    %1900 = vmatprep.subr.bf16.mxu0 0
    %1901 = vmatpush2.bf16.msra.mxu0 0
    %1902 = vmatprep.subr.bf16.mxu0 0
    %1903 = vmatpush2.bf16.msra.mxu0 0
    %1904 = vmatprep.subr.bf16.mxu0 0
    %1905 = vmatpush2.bf16.msra.mxu0 0
    %1906 = vmatprep.subr.bf16.mxu0 0
    %1907 = vmatpush2.bf16.msra.mxu0 0
    %1908 = vmatprep.subr.bf16.mxu0 0
    %1909 = vmatpush2.bf16.msra.mxu0 0
    %1910 = vmatprep.subr.bf16.mxu0 0
    %1911 = vmatpush2.bf16.msra.mxu0 0
    %1912 = vmatprep.mubr.bf16.mxu0 0
    %1913 = vmatmul.mubr.bf16.gmra.mxu0 %v1875
    %v1914 = vpop.f32.mrf.mxu0
    %v1915 = vadd.f32 0.0, %v1914
    %v1916 = vpop.f32.mrf.mxu0
    %v1917 = vpop.f32.mrf.mxu0
    %v1918 = vpop.f32.mrf.mxu0
    %1919 = vdwg.mxu0
    %v1921 = vsel %vm1592, %v1686, 0
    %v1924 = vsel %vm1692, %v1216, 0
    %1926 = vmatprep.subr.bf16.mxu0 0
    %1927 = vmatpush1.bf16.msra.mxu0 0
    %1928 = vmatprep.subr.bf16.mxu0 0
    %1929 = vmatpush1.bf16.msra.mxu0 0
    %1930 = vmatprep.subr.bf16.mxu0 0
    %1931 = vmatpush1.bf16.msra.mxu0 0
    %1932 = vmatprep.subr.bf16.mxu0 0
    %1933 = vmatpush1.bf16.msra.mxu0 0
    %1934 = vmatprep.subr.bf16.mxu0 0
    %1935 = vmatpush1.bf16.msra.mxu0 0
    %1936 = vmatprep.subr.bf16.mxu0 0
    %1937 = vmatpush1.bf16.msra.mxu0 0
    %1938 = vmatprep.subr.bf16.mxu0 0
    %1939 = vmatpush1.bf16.msra.mxu0 0
    %1940 = vmatprep.subr.bf16.mxu0 0
    %1941 = vmatpush1.bf16.msra.mxu0 %v1924
    %1942 = vmatprep.subr.bf16.mxu0 0
    %1943 = vmatpush2.bf16.msra.mxu0 0
    %1944 = vmatprep.subr.bf16.mxu0 0
    %1945 = vmatpush2.bf16.msra.mxu0 0
    %1946 = vmatprep.subr.bf16.mxu0 0
    %1947 = vmatpush2.bf16.msra.mxu0 0
    %1948 = vmatprep.subr.bf16.mxu0 0
    %1949 = vmatpush2.bf16.msra.mxu0 0
    %1950 = vmatprep.subr.bf16.mxu0 0
    %1951 = vmatpush2.bf16.msra.mxu0 0
    %1952 = vmatprep.subr.bf16.mxu0 0
    %1953 = vmatpush2.bf16.msra.mxu0 0
    %1954 = vmatprep.subr.bf16.mxu0 0
    %1955 = vmatpush2.bf16.msra.mxu0 0
    %1956 = vmatprep.subr.bf16.mxu0 0
    %1957 = vmatpush2.bf16.msra.mxu0 0
    %1958 = vmatprep.mubr.bf16.mxu0 0
    %1959 = vmatmul.mubr.bf16.gmra.mxu0 %v1921
    %v1960 = vpop.f32.mrf.mxu0
    %v1961 = vadd.f32 0.0, %v1960
    %v1962 = vpop.f32.mrf.mxu0
    %v1963 = vpop.f32.mrf.mxu0
    %v1964 = vpop.f32.mrf.mxu0
    %1965 = vdwg.mxu0
    %v1967 = vsel %vm1592, %v1687, 0
    %v1970 = vsel %vm1692, %v1219, 0
    %1972 = vmatprep.subr.bf16.mxu0 0
    %1973 = vmatpush1.bf16.msra.mxu0 0
    %1974 = vmatprep.subr.bf16.mxu0 0
    %1975 = vmatpush1.bf16.msra.mxu0 0
    %1976 = vmatprep.subr.bf16.mxu0 0
    %1977 = vmatpush1.bf16.msra.mxu0 0
    %1978 = vmatprep.subr.bf16.mxu0 0
    %1979 = vmatpush1.bf16.msra.mxu0 0
    %1980 = vmatprep.subr.bf16.mxu0 0
    %1981 = vmatpush1.bf16.msra.mxu0 0
    %1982 = vmatprep.subr.bf16.mxu0 0
    %1983 = vmatpush1.bf16.msra.mxu0 0
    %1984 = vmatprep.subr.bf16.mxu0 0
    %1985 = vmatpush1.bf16.msra.mxu0 0
    %1986 = vmatprep.subr.bf16.mxu0 0
    %1987 = vmatpush1.bf16.msra.mxu0 %v1970
    %1988 = vmatprep.subr.bf16.mxu0 0
    %1989 = vmatpush2.bf16.msra.mxu0 0
    %1990 = vmatprep.subr.bf16.mxu0 0
    %1991 = vmatpush2.bf16.msra.mxu0 0
    %1992 = vmatprep.subr.bf16.mxu0 0
    %1993 = vmatpush2.bf16.msra.mxu0 0
    %1994 = vmatprep.subr.bf16.mxu0 0
    %1995 = vmatpush2.bf16.msra.mxu0 0
    %1996 = vmatprep.subr.bf16.mxu0 0
    %1997 = vmatpush2.bf16.msra.mxu0 0
    %1998 = vmatprep.subr.bf16.mxu0 0
    %1999 = vmatpush2.bf16.msra.mxu0 0
    %2000 = vmatprep.subr.bf16.mxu0 0
    %2001 = vmatpush2.bf16.msra.mxu0 0
    %2002 = vmatprep.subr.bf16.mxu0 0
    %2003 = vmatpush2.bf16.msra.mxu0 0
    %2004 = vmatprep.mubr.bf16.mxu0 0
    %2005 = vmatmul.mubr.bf16.gmra.mxu0 %v1967
    %v2006 = vpop.f32.mrf.mxu0
    %v2007 = vadd.f32 0.0, %v2006
    %v2008 = vpop.f32.mrf.mxu0
    %v2009 = vpop.f32.mrf.mxu0
    %v2010 = vpop.f32.mrf.mxu0
    %2011 = vdwg.mxu0
    %v2013 = vsel %vm1592, %v1688, 0
    %v2016 = vsel %vm1692, %v1222, 0
    %2018 = vmatprep.subr.bf16.mxu0 0
    %2019 = vmatpush1.bf16.msra.mxu0 0
    %2020 = vmatprep.subr.bf16.mxu0 0
    %2021 = vmatpush1.bf16.msra.mxu0 0
    %2022 = vmatprep.subr.bf16.mxu0 0
    %2023 = vmatpush1.bf16.msra.mxu0 0
    %2024 = vmatprep.subr.bf16.mxu0 0
    %2025 = vmatpush1.bf16.msra.mxu0 0
    %2026 = vmatprep.subr.bf16.mxu0 0
    %2027 = vmatpush1.bf16.msra.mxu0 0
    %2028 = vmatprep.subr.bf16.mxu0 0
    %2029 = vmatpush1.bf16.msra.mxu0 0
    %2030 = vmatprep.subr.bf16.mxu0 0
    %2031 = vmatpush1.bf16.msra.mxu0 0
    %2032 = vmatprep.subr.bf16.mxu0 0
    %2033 = vmatpush1.bf16.msra.mxu0 %v2016
    %2034 = vmatprep.subr.bf16.mxu0 0
    %2035 = vmatpush2.bf16.msra.mxu0 0
    %2036 = vmatprep.subr.bf16.mxu0 0
    %2037 = vmatpush2.bf16.msra.mxu0 0
    %2038 = vmatprep.subr.bf16.mxu0 0
    %2039 = vmatpush2.bf16.msra.mxu0 0
    %2040 = vmatprep.subr.bf16.mxu0 0
    %2041 = vmatpush2.bf16.msra.mxu0 0
    %2042 = vmatprep.subr.bf16.mxu0 0
    %2043 = vmatpush2.bf16.msra.mxu0 0
    %2044 = vmatprep.subr.bf16.mxu0 0
    %2045 = vmatpush2.bf16.msra.mxu0 0
    %2046 = vmatprep.subr.bf16.mxu0 0
    %2047 = vmatpush2.bf16.msra.mxu0 0
    %2048 = vmatprep.subr.bf16.mxu0 0
    %2049 = vmatpush2.bf16.msra.mxu0 0
    %2050 = vmatprep.mubr.bf16.mxu0 0
    %2051 = vmatmul.mubr.bf16.gmra.mxu0 %v2013
    %v2052 = vpop.f32.mrf.mxu0
    %v2053 = vadd.f32 0.0, %v2052
    %v2054 = vpop.f32.mrf.mxu0
    %v2055 = vpop.f32.mrf.mxu0
    %v2056 = vpop.f32.mrf.mxu0
    %2057 = vdwg.mxu0
    %v2058 = vcombine.low %v1731, %v1823
    %v2059 = vcombine.high %v1731, %v1823
    %v2061 = vunpack.c.l.s4 1983009808
    %v2062 = vunpack.c.0.s8 %v2061
    %v2063 = vlaneseq
    %v2064 = vshrl.u32 %v2063, 7
    %v2065 = vsub.s32 %v2062, %v2064
    %v2066 = vrot.slane %v2058, %v2065
    %v2068 = vunpack.c.l.s4 1983009808
    %v2069 = vunpack.c.0.s8 %v2068
    %v2070 = vlaneseq
    %v2071 = vshrl.u32 %v2070, 7
    %v2072 = vsub.s32 %v2069, %v2071
    %v2073 = vrot.slane %v2059, %v2072
    %v2074 = vcombine.low %v1777, %v1869
    %v2075 = vcombine.high %v1777, %v1869
    %v2077 = vunpack.c.l.s4 1983009808
    %v2078 = vunpack.c.0.s8 %v2077
    %v2079 = vlaneseq
    %v2080 = vshrl.u32 %v2079, 7
    %v2081 = vsub.s32 %v2078, %v2080
    %v2082 = vrot.slane %v2074, %v2081
    %v2084 = vunpack.c.l.s4 1983009808
    %v2085 = vunpack.c.0.s8 %v2084
    %v2086 = vlaneseq
    %v2087 = vshrl.u32 %v2086, 7
    %v2088 = vsub.s32 %v2085, %v2087
    %v2089 = vrot.slane %v2075, %v2088
    %v2090 = vcombine.low %v2066, %v2082
    %v2091 = vcombine.high %v2066, %v2082
    %v2093 = vunpack.c.l.s4 1934713408
    %v2094 = vunpack.c.0.s8 %v2093
    %v2095 = vlaneseq
    %v2096 = vshrl.u32 %v2095, 7
    %v2097 = vsub.s32 %v2094, %v2096
    %v2098 = vrot.slane %v2090, %v2097
    %v2100 = vunpack.c.l.s4 1934713408
    %v2101 = vunpack.c.0.s8 %v2100
    %v2102 = vlaneseq
    %v2103 = vshrl.u32 %v2102, 7
    %v2104 = vsub.s32 %v2101, %v2103
    %v2105 = vrot.slane %v2091, %v2104
    %v2106 = vcombine.low %v2073, %v2089
    %v2107 = vcombine.high %v2073, %v2089
    %v2109 = vunpack.c.l.s4 1934713408
    %v2110 = vunpack.c.0.s8 %v2109
    %v2111 = vlaneseq
    %v2112 = vshrl.u32 %v2111, 7
    %v2113 = vsub.s32 %v2110, %v2112
    %v2114 = vrot.slane %v2106, %v2113
    %v2116 = vunpack.c.l.s4 1934713408
    %v2117 = vunpack.c.0.s8 %v2116
    %v2118 = vlaneseq
    %v2119 = vshrl.u32 %v2118, 7
    %v2120 = vsub.s32 %v2117, %v2119
    %v2121 = vrot.slane %v2107, %v2120
    %v2122 = vcombine.high %v2098, 0.0
    %v2123 = vcombine.high %v2105, 0.0
    %v2124 = vcombine.high %v2114, 0.0
    %v2125 = vcombine.high %v2121, 0.0
    %v2126 = vcombine.low %v1915, %v2007
    %v2127 = vcombine.high %v1915, %v2007
    %v2129 = vunpack.c.l.s4 1983009808
    %v2130 = vunpack.c.0.s8 %v2129
    %v2131 = vlaneseq
    %v2132 = vshrl.u32 %v2131, 7
    %v2133 = vsub.s32 %v2130, %v2132
    %v2134 = vrot.slane %v2126, %v2133
    %v2136 = vunpack.c.l.s4 1983009808
    %v2137 = vunpack.c.0.s8 %v2136
    %v2138 = vlaneseq
    %v2139 = vshrl.u32 %v2138, 7
    %v2140 = vsub.s32 %v2137, %v2139
    %v2141 = vrot.slane %v2127, %v2140
    %v2142 = vcombine.low %v1961, %v2053
    %v2143 = vcombine.high %v1961, %v2053
    %v2145 = vunpack.c.l.s4 1983009808
    %v2146 = vunpack.c.0.s8 %v2145
    %v2147 = vlaneseq
    %v2148 = vshrl.u32 %v2147, 7
    %v2149 = vsub.s32 %v2146, %v2148
    %v2150 = vrot.slane %v2142, %v2149
    %v2152 = vunpack.c.l.s4 1983009808
    %v2153 = vunpack.c.0.s8 %v2152
    %v2154 = vlaneseq
    %v2155 = vshrl.u32 %v2154, 7
    %v2156 = vsub.s32 %v2153, %v2155
    %v2157 = vrot.slane %v2143, %v2156
    %v2158 = vcombine.low %v2134, %v2150
    %v2159 = vcombine.high %v2134, %v2150
    %v2161 = vunpack.c.l.s4 1934713408
    %v2162 = vunpack.c.0.s8 %v2161
    %v2163 = vlaneseq
    %v2164 = vshrl.u32 %v2163, 7
    %v2165 = vsub.s32 %v2162, %v2164
    %v2166 = vrot.slane %v2158, %v2165
    %v2168 = vunpack.c.l.s4 1934713408
    %v2169 = vunpack.c.0.s8 %v2168
    %v2170 = vlaneseq
    %v2171 = vshrl.u32 %v2170, 7
    %v2172 = vsub.s32 %v2169, %v2171
    %v2173 = vrot.slane %v2159, %v2172
    %v2174 = vcombine.low %v2141, %v2157
    %v2175 = vcombine.high %v2141, %v2157
    %v2177 = vunpack.c.l.s4 1934713408
    %v2178 = vunpack.c.0.s8 %v2177
    %v2179 = vlaneseq
    %v2180 = vshrl.u32 %v2179, 7
    %v2181 = vsub.s32 %v2178, %v2180
    %v2182 = vrot.slane %v2174, %v2181
    %v2184 = vunpack.c.l.s4 1934713408
    %v2185 = vunpack.c.0.s8 %v2184
    %v2186 = vlaneseq
    %v2187 = vshrl.u32 %v2186, 7
    %v2188 = vsub.s32 %v2185, %v2187
    %v2189 = vrot.slane %v2175, %v2188
    %v2190 = vcombine.high %v2166, 0.0
    %v2191 = vcombine.high %v2173, 0.0
    %v2192 = vcombine.high %v2182, 0.0
    %v2193 = vcombine.high %v2189, 0.0
    %v2194 = vcombine.low %v2098, %v2122
    %v2196 = vunpack.c.l.s4 1983009808
    %v2197 = vunpack.c.0.s8 %v2196
    %v2198 = vlaneseq
    %v2199 = vshrl.u32 %v2198, 7
    %v2200 = vsub.s32 %v2197, %v2199
    %v2201 = vrot.slane %v2194, %v2200
    %v2202 = vcombine.low %v2166, %v2190
    %v2204 = vunpack.c.l.s4 1983009808
    %v2205 = vunpack.c.0.s8 %v2204
    %v2206 = vlaneseq
    %v2207 = vshrl.u32 %v2206, 7
    %v2208 = vsub.s32 %v2205, %v2207
    %v2209 = vrot.slane %v2202, %v2208
    %v2210 = vcombine.low %v2105, %v2123
    %v2212 = vunpack.c.l.s4 1983009808
    %v2213 = vunpack.c.0.s8 %v2212
    %v2214 = vlaneseq
    %v2215 = vshrl.u32 %v2214, 7
    %v2216 = vsub.s32 %v2213, %v2215
    %v2217 = vrot.slane %v2210, %v2216
    %v2218 = vcombine.low %v2173, %v2191
    %v2220 = vunpack.c.l.s4 1983009808
    %v2221 = vunpack.c.0.s8 %v2220
    %v2222 = vlaneseq
    %v2223 = vshrl.u32 %v2222, 7
    %v2224 = vsub.s32 %v2221, %v2223
    %v2225 = vrot.slane %v2218, %v2224
    %v2226 = vcombine.low %v2201, %v2209
    %v2227 = vcombine.high %v2201, %v2209
    %v2229 = vunpack.c.l.s4 1934713408
    %v2230 = vunpack.c.0.s8 %v2229
    %v2231 = vlaneseq
    %v2232 = vshrl.u32 %v2231, 7
    %v2233 = vsub.s32 %v2230, %v2232
    %v2234 = vrot.slane %v2226, %v2233
    %v2236 = vunpack.c.l.s4 1934713408
    %v2237 = vunpack.c.0.s8 %v2236
    %v2238 = vlaneseq
    %v2239 = vshrl.u32 %v2238, 7
    %v2240 = vsub.s32 %v2237, %v2239
    %v2241 = vrot.slane %v2227, %v2240
    %v2242 = vcombine.low %v2217, %v2225
    %v2243 = vcombine.high %v2217, %v2225
    %v2245 = vunpack.c.l.s4 1934713408
    %v2246 = vunpack.c.0.s8 %v2245
    %v2247 = vlaneseq
    %v2248 = vshrl.u32 %v2247, 7
    %v2249 = vsub.s32 %v2246, %v2248
    %v2250 = vrot.slane %v2242, %v2249
    %v2252 = vunpack.c.l.s4 1934713408
    %v2253 = vunpack.c.0.s8 %v2252
    %v2254 = vlaneseq
    %v2255 = vshrl.u32 %v2254, 7
    %v2256 = vsub.s32 %v2253, %v2255
    %v2257 = vrot.slane %v2243, %v2256
    %v2258 = vcombine.low %v2234, %v2250
    %v2259 = vcombine.high %v2234, %v2250
    %v2260 = vcombine.low %v2241, %v2257
    %v2261 = vcombine.high %v2241, %v2257
    %v2262 = vcombine.low %v2114, %v2124
    %v2264 = vunpack.c.l.s4 1983009808
    %v2265 = vunpack.c.0.s8 %v2264
    %v2266 = vlaneseq
    %v2267 = vshrl.u32 %v2266, 7
    %v2268 = vsub.s32 %v2265, %v2267
    %v2269 = vrot.slane %v2262, %v2268
    %v2270 = vcombine.low %v2182, %v2192
    %v2272 = vunpack.c.l.s4 1983009808
    %v2273 = vunpack.c.0.s8 %v2272
    %v2274 = vlaneseq
    %v2275 = vshrl.u32 %v2274, 7
    %v2276 = vsub.s32 %v2273, %v2275
    %v2277 = vrot.slane %v2270, %v2276
    %v2278 = vcombine.low %v2121, %v2125
    %v2280 = vunpack.c.l.s4 1983009808
    %v2281 = vunpack.c.0.s8 %v2280
    %v2282 = vlaneseq
    %v2283 = vshrl.u32 %v2282, 7
    %v2284 = vsub.s32 %v2281, %v2283
    %v2285 = vrot.slane %v2278, %v2284
    %v2286 = vcombine.low %v2189, %v2193
    %v2288 = vunpack.c.l.s4 1983009808
    %v2289 = vunpack.c.0.s8 %v2288
    %v2290 = vlaneseq
    %v2291 = vshrl.u32 %v2290, 7
    %v2292 = vsub.s32 %v2289, %v2291
    %v2293 = vrot.slane %v2286, %v2292
    %v2294 = vcombine.low %v2269, %v2277
    %v2295 = vcombine.high %v2269, %v2277
    %v2297 = vunpack.c.l.s4 1934713408
    %v2298 = vunpack.c.0.s8 %v2297
    %v2299 = vlaneseq
    %v2300 = vshrl.u32 %v2299, 7
    %v2301 = vsub.s32 %v2298, %v2300
    %v2302 = vrot.slane %v2294, %v2301
    %v2304 = vunpack.c.l.s4 1934713408
    %v2305 = vunpack.c.0.s8 %v2304
    %v2306 = vlaneseq
    %v2307 = vshrl.u32 %v2306, 7
    %v2308 = vsub.s32 %v2305, %v2307
    %v2309 = vrot.slane %v2295, %v2308
    %v2310 = vcombine.low %v2285, %v2293
    %v2311 = vcombine.high %v2285, %v2293
    %v2313 = vunpack.c.l.s4 1934713408
    %v2314 = vunpack.c.0.s8 %v2313
    %v2315 = vlaneseq
    %v2316 = vshrl.u32 %v2315, 7
    %v2317 = vsub.s32 %v2314, %v2316
    %v2318 = vrot.slane %v2310, %v2317
    %v2320 = vunpack.c.l.s4 1934713408
    %v2321 = vunpack.c.0.s8 %v2320
    %v2322 = vlaneseq
    %v2323 = vshrl.u32 %v2322, 7
    %v2324 = vsub.s32 %v2321, %v2323
    %v2325 = vrot.slane %v2311, %v2324
    %v2326 = vcombine.low %v2302, %v2318
    %v2327 = vcombine.high %v2302, %v2318
    %v2328 = vcombine.low %v2309, %v2325
    %v2329 = vcombine.high %v2309, %v2325
    %2332 = vrot.lane.b32.xlu0 %v2259, 32
    %v2333 = vpop.permute.xlu0 %2332
    %2334 = vrot.lane.b32.xlu0 %v2327, 32
    %v2335 = vpop.permute.xlu0 %2334
    %2340 = vrot.lane.b32.xlu0 %v2260, 64
    %v2341 = vpop.permute.xlu0 %2340
    %2342 = vrot.lane.b32.xlu0 %v2328, 64
    %v2343 = vpop.permute.xlu0 %2342
    %2348 = vrot.lane.b32.xlu0 %v2261, 96
    %v2349 = vpop.permute.xlu0 %2348
    %2350 = vrot.lane.b32.xlu0 %v2329, 96
    %v2351 = vpop.permute.xlu0 %2350
    %v2354 = vsel %vm1223, %v2258, %v2333
    %v2355 = vsel %vm1223, %v2326, %v2335
    %vm2356 = vcmask 523264
    %v2357 = vsel %vm2356, %v2354, %v2341
    %v2358 = vsel %vm2356, %v2355, %v2343
    %vm2359 = vcmask 785408
    %v2360 = vsel %vm2359, %v2357, %v2349
    %v2361 = vsel %vm2359, %v2358, %v2351
    %v2362 = vpack.c.bf16 %v2361, %v2360
    %v2363 = vld [vmem:[#allocation7] sm:$0xf]
    %v2364 = vld [vmem:[#allocation7 + $0x4] sm:$0xf]
    %v2365 = vld [vmem:[#allocation7 + $0x8] sm:$0xf]
    %v2366 = vld [vmem:[#allocation7 + $0xc] sm:$0xf]
    %v2367 = vld [vmem:[#allocation7 + $0x10] sm:$0xf]
    %v2368 = vld [vmem:[#allocation7 + $0x14] sm:$0xf]
    %v2369 = vld [vmem:[#allocation7 + $0x18] sm:$0xf]
    %v2370 = vld [vmem:[#allocation7 + $0x1c] sm:$0xf]
    %v2371 = vld [vmem:[#allocation7 + $0x20] sm:$0xf]
    %v2372 = vld [vmem:[#allocation7 + $0x24] sm:$0xf]
    %v2373 = vld [vmem:[#allocation7 + $0x28] sm:$0xf]
    %v2374 = vld [vmem:[#allocation7 + $0x2c] sm:$0xf]
    %v2375 = vld [vmem:[#allocation7 + $0x30] sm:$0xf]
    %v2376 = vld [vmem:[#allocation7 + $0x34] sm:$0xf]
    %v2377 = vld [vmem:[#allocation7 + $0x38] sm:$0xf]
    %v2378 = vld [vmem:[#allocation7 + $0x3c] sm:$0xf]
    %v2379 = vld [vmem:[%s4] sm:$0x1]
    %v2381 = vlaneseq
    %v2382 = vshrl.u32 %v2381, 7
    %v2383 = vsub.s32 0, %v2382
    %v2384 = vrot.slane %v2379, %v2383
    %v2402 = vunpack.c.l.b16 %v2363
    %v2403 = vunpack.c.l.b16 %v2364
    %v2404 = vunpack.c.l.b16 %v2365
    %v2405 = vunpack.c.l.b16 %v2366
    %v2406 = vunpack.c.l.b16 %v2367
    %v2407 = vunpack.c.l.b16 %v2368
    %v2408 = vunpack.c.l.b16 %v2369
    %v2409 = vunpack.c.l.b16 %v2370
    %v2410 = vunpack.c.l.b16 %v2371
    %v2411 = vunpack.c.l.b16 %v2372
    %v2412 = vunpack.c.l.b16 %v2373
    %v2413 = vunpack.c.l.b16 %v2374
    %v2414 = vunpack.c.l.b16 %v2375
    %v2415 = vunpack.c.l.b16 %v2376
    %v2416 = vunpack.c.l.b16 %v2377
    %v2417 = vunpack.c.l.b16 %v2378
    %v2418 = vpack.c.b16 %v2403, %v2402
    %v2419 = vpack.c.b16 %v2405, %v2404
    %v2420 = vpack.c.b16 %v2407, %v2406
    %v2421 = vpack.c.b16 %v2409, %v2408
    %v2422 = vpack.c.b16 %v2411, %v2410
    %v2423 = vpack.c.b16 %v2413, %v2412
    %v2424 = vpack.c.b16 %v2415, %v2414
    %v2425 = vpack.c.b16 %v2417, %v2416
    %2434 = vmatprep.subr.bf16.mxu0 0
    %2435 = vmatpush1.bf16.msra.mxu0 %v2425
    %2436 = vmatprep.subr.bf16.mxu0 0
    %2437 = vmatpush1.bf16.msra.mxu0 %v2424
    %2438 = vmatprep.subr.bf16.mxu0 0
    %2439 = vmatpush1.bf16.msra.mxu0 %v2423
    %2440 = vmatprep.subr.bf16.mxu0 0
    %2441 = vmatpush1.bf16.msra.mxu0 %v2422
    %2442 = vmatprep.subr.bf16.mxu0 0
    %2443 = vmatpush1.bf16.msra.mxu0 %v2421
    %2444 = vmatprep.subr.bf16.mxu0 0
    %2445 = vmatpush1.bf16.msra.mxu0 %v2420
    %2446 = vmatprep.subr.bf16.mxu0 0
    %2447 = vmatpush1.bf16.msra.mxu0 %v2419
    %2448 = vmatprep.subr.bf16.mxu0 0
    %2449 = vmatpush1.bf16.msra.mxu0 %v2418
    %2450 = vmatprep.subr.bf16.mxu0 0
    %2451 = vmatpush2.bf16.msra.mxu0 0
    %2452 = vmatprep.subr.bf16.mxu0 0
    %2453 = vmatpush2.bf16.msra.mxu0 0
    %2454 = vmatprep.subr.bf16.mxu0 0
    %2455 = vmatpush2.bf16.msra.mxu0 0
    %2456 = vmatprep.subr.bf16.mxu0 0
    %2457 = vmatpush2.bf16.msra.mxu0 0
    %2458 = vmatprep.subr.bf16.mxu0 0
    %2459 = vmatpush2.bf16.msra.mxu0 0
    %2460 = vmatprep.subr.bf16.mxu0 0
    %2461 = vmatpush2.bf16.msra.mxu0 0
    %2462 = vmatprep.subr.bf16.mxu0 0
    %2463 = vmatpush2.bf16.msra.mxu0 0
    %2464 = vmatprep.subr.bf16.mxu0 0
    %2465 = vmatpush2.bf16.msra.mxu0 0
    %2466 = vmatprep.mubr.bf16.mxu0 0
    %2467 = vmatmul.mubr.bf16.gmra.mxu0 %v2362
    %v2468 = vpop.f32.mrf.mxu0
    %v2469 = vadd.f32 %v2384, %v2468
    %v2470 = vpop.f32.mrf.mxu0
    %v2471 = vpop.f32.mrf.mxu0
    %v2472 = vadd.f32 %v2384, %v2471
    %v2473 = vpop.f32.mrf.mxu0
    %2474 = vdwg.mxu0
    %v2477 = vcombine.high %v2469, %v2469
    %v2479 = vunpack.c.l.s4 1983009808
    %v2480 = vunpack.c.0.s8 %v2479
    %v2481 = vlaneseq
    %v2482 = vshrl.u32 %v2481, 7
    %v2483 = vsub.s32 %v2480, %v2482
    %v2484 = vrot.slane %v2469, %v2483
    %v2486 = vunpack.c.l.s4 1983009808
    %v2487 = vunpack.c.0.s8 %v2486
    %v2488 = vlaneseq
    %v2489 = vshrl.u32 %v2488, 7
    %v2490 = vsub.s32 %v2487, %v2489
    %v2491 = vrot.slane %v2477, %v2490
    %v2492 = vcombine.high %v2484, %v2484
    %v2493 = vcombine.high %v2491, %v2491
    %v2494 = vcombine.high %v2472, %v2472
    %v2496 = vunpack.c.l.s4 1983009808
    %v2497 = vunpack.c.0.s8 %v2496
    %v2498 = vlaneseq
    %v2499 = vshrl.u32 %v2498, 7
    %v2500 = vsub.s32 %v2497, %v2499
    %v2501 = vrot.slane %v2472, %v2500
    %v2503 = vunpack.c.l.s4 1983009808
    %v2504 = vunpack.c.0.s8 %v2503
    %v2505 = vlaneseq
    %v2506 = vshrl.u32 %v2505, 7
    %v2507 = vsub.s32 %v2504, %v2506
    %v2508 = vrot.slane %v2494, %v2507
    %v2509 = vcombine.high %v2501, %v2501
    %v2510 = vcombine.high %v2508, %v2508
    %2519 = vst [vmem:[#allocation8] sm:$0x3] %v2484
    %2520 = vst [vmem:[#allocation8 + $0x2] sm:$0x3] %v2492
    %2521 = vst [vmem:[#allocation8 + $0x4] sm:$0x3] %v2491
    %2522 = vst [vmem:[#allocation8 + $0x6] sm:$0x3] %v2493
    %2523 = vst [vmem:[#allocation8 + $0x8] sm:$0x3] %v2501
    %2524 = vst [vmem:[#allocation8 + $0xa] sm:$0x3] %v2509
    %2525 = vst [vmem:[#allocation8 + $0xc] sm:$0x3] %v2508
    %2526 = vst [vmem:[#allocation8 + $0xe] sm:$0x3] %v2510
    // Predicated region
    $region34: #{tpu_custom_call.1} parent=1 // pred_check
      _
    $region35: #{tpu_custom_call.1} parent=1 // pred_check_branch
      %2528 = sbr.rel (0) target = $region37
    $region36: #{tpu_custom_call.1} parent=1 // pred_region
      %s2530 = ssub.s32 256, 256
      %2531 = vsyncadd [#allocation4], %s2530
      %s2532 = sshll.u32 [#allocation8], 4
      %s2533 = int_to_ptr.vmem [resolvable:$true] %s2532
      %2538 = dma.vmem_to_hbm [thread:$0]  %s2533, 256, %s5, [#allocation4], 32, 32, 2
    $region37: #{tpu_custom_call.1} parent=1 // pred_fallthru
      _
    // Predicated region
    $region38: #{tpu_custom_call.1} parent=1 // pred_check
      _
    $region39: #{tpu_custom_call.1} parent=1 // pred_check_branch
      %2540 = sbr.rel (0) target = $region41
    $region40: #{tpu_custom_call.1} parent=1 // pred_region
      %2541 = dma.done [#allocation4], 256
    $region41: #{tpu_custom_call.1} parent=1 // pred_fallthru
      _
    %2542 = vsyncpa [#allocation3], 1
    %2543 = vsyncpa [#allocation6], 1
    %2544 = vsyncpa [#allocation4], 1

</llo_original>
